<compile_context>
chip_gen: v6e
topology: v6e:2x2x1
jax: 0.10.0
libtpu: 0.0.40
codegen_flags: <defaults>
</compile_context>

<pallas_src>
import jax
import jax.numpy as jnp
import numpy as np
from jax.experimental import pallas as pl
from jax.experimental.pallas import tpu as pltpu

# ----- module hyper-params (mirrors TransformerLM(vocab_size, d_model, nhead, num_layers))
corpus = ['나는 사과를 먹었고 딸기도 먹었지만 오렌지도 먹고 싶다']
tokens = corpus[0].split()
vocab = sorted(set(tokens))
VOCAB_SIZE = len(vocab)          # 8

D_MODEL = 32
NHEAD = 4
HEAD_DIM = D_MODEL // NHEAD
FF = 2048                        # nn.TransformerEncoderLayer default dim_feedforward
NUM_LAYERS = 2
EPS = 1e-5                       # LayerNorm default eps
VPAD = 128                       # lane-dense padding for vocab / one-hot / fc output

# ---- layout of the per-layer "small parameter" pack: (PACK_ROWS, 128) float32 ----------
#   rows [0, D)      : Wq|Wk|Wv fused into cols [0, 3D), cols [3D, 128) zero
#   rows [D, 2D)     : Wo in cols [0, D), rest zero
#   single rows below (zero-padded lanes):
ROW_BQKV = 2 * D_MODEL           # 64 : bq|bk|bv
ROW_BO   = ROW_BQKV + 1
ROW_G1   = ROW_BQKV + 2
ROW_BE1  = ROW_BQKV + 3
ROW_B2   = ROW_BQKV + 4
ROW_G2   = ROW_BQKV + 5
ROW_BE2  = ROW_BQKV + 6
PACK_ROWS = 72                   # multiple of 8 (sublane tile)


# ---------------------------------------------------------------------------
# Fused Pallas kernel: embedding -> NUM_LAYERS encoder layers -> last-token FC
# ---------------------------------------------------------------------------
def fused_lm_kernel(onehot_ref, emb_ref, pack_ref, b1_ref, w1_ref, w2t_ref,
                    fcw_ref, fcb_ref, o_ref, x_scr):
    layer = pl.program_id(0)
    BS, D = x_scr.shape
    B = o_ref.shape[0]
    S = BS // B

    # ---- layer 0: embedding lookup as one lane-dense MXU matmul ----------------------
    # NOTE: x_scr is uninitialized VMEM; it is only defined by this write.  Do not move
    # the x_scr read above this pl.when block.
    @pl.when(layer == 0)
    def _():
        x_scr[...] = jnp.dot(onehot_ref[...], emb_ref[...],
                             preferred_element_type=jnp.float32)          # (BS, D)

    x = x_scr[...]                                                        # (BS, D) f32
    pack = pack_ref[0]                                                    # (PACK_ROWS, 128)

    # ---- fused QKV projection against the full 128-lane weight tile ------------------
    # cols 96:128 of the weight rows and of the bias row are zero, so the padded output
    # lanes are zero and simply never read; no masked weight relayout before the MXU.
    qkv = (jnp.dot(x, pack[0:D, :], preferred_element_type=jnp.float32)
           + pack[ROW_BQKV:ROW_BQKV + 1, :])                              # (BS, 128)

    # ---- multi-head self-attention (B-batched einsums, static unroll over NHEAD) -----
    scale = 1.0 / float(HEAD_DIM) ** 0.5
    head_outs = []
    for h in range(NHEAD):
        lo = h * HEAD_DIM
        qh = qkv[:, lo:lo + HEAD_DIM].reshape(B, S, HEAD_DIM)
        kh = qkv[:, D + lo:D + lo + HEAD_DIM].reshape(B, S, HEAD_DIM)
        vh = qkv[:, 2 * D + lo:2 * D + lo + HEAD_DIM].reshape(B, S, HEAD_DIM)
        s = jnp.einsum('bqd,bkd->bqk', qh, kh,
                       preferred_element_type=jnp.float32) * scale        # (B, S, S)
        s = s - jnp.max(s, axis=-1, keepdims=True)
        p = jnp.exp(s)
        p = p / jnp.sum(p, axis=-1, keepdims=True)       # exact softmax (parity w/ torch)
        head_outs.append(jnp.einsum('bqk,bkd->bqd', p, vh,
                                    preferred_element_type=jnp.float32))
    attn = jnp.concatenate(head_outs, axis=-1).reshape(BS, D)             # (BS, D)

    # ---- out-projection: contract against full 128 lanes, slice the result -----------
    attn = (jnp.dot(attn, pack[D:2 * D, :], preferred_element_type=jnp.float32)
            + pack[ROW_BO:ROW_BO + 1, :])[:, 0:D]                          # (BS, D)

    # ---- residual + LayerNorm 1 --------------------------------------------------------
    g1 = pack[ROW_G1:ROW_G1 + 1, 0:D]
    be1 = pack[ROW_BE1:ROW_BE1 + 1, 0:D]
    y = x + attn
    mu = jnp.mean(y, axis=-1, keepdims=True)
    var = jnp.mean((y - mu) ** 2, axis=-1, keepdims=True)
    y = (y - mu) * jax.lax.rsqrt(var + EPS) * g1 + be1

    # ---- feed-forward: bf16 weights on the MXU, f32 accumulation & element-wise -------
    w1 = w1_ref[0]                                                        # (D, FF)  bf16
    w2t = w2t_ref[0]                                                      # (D, FF)  bf16 (lane-dense transpose of w2)
    b1 = b1_ref[0]                                                        # (1, FF)  f32
    b2 = pack[ROW_B2:ROW_B2 + 1, 0:D]
    h1 = jnp.dot(y.astype(jnp.bfloat16), w1,
                 preferred_element_type=jnp.float32) + b1                 # (BS, FF)
    h1 = jnp.maximum(h1, 0.0)
    # contraction over the last dims of both operands (A @ B^T): keeps w2 lane-dense.
    h2 = jax.lax.dot_general(h1.astype(jnp.bfloat16), w2t,
                             (((1,), (1,)), ((), ())),
                             preferred_element_type=jnp.float32) + b2      # (BS, D)

    # ---- residual + LayerNorm 2 --------------------------------------------------------
    g2 = pack[ROW_G2:ROW_G2 + 1, 0:D]
    be2 = pack[ROW_BE2:ROW_BE2 + 1, 0:D]
    z = y + h2
    mu2 = jnp.mean(z, axis=-1, keepdims=True)
    var2 = jnp.mean((z - mu2) ** 2, axis=-1, keepdims=True)
    z = (z - mu2) * jax.lax.rsqrt(var2 + EPS) * g2 + be2
    x_scr[...] = z                                                        # persists to next layer

    # ---- last layer: last-token Linear head (lane-dense, 128-wide output) -------------
    @pl.when(layer == pl.num_programs(0) - 1)
    def _():
        x_last = jnp.concatenate(
            [z[(b + 1) * S - 1:(b + 1) * S, :] for b in range(B)], axis=0)    # (B, D)
        o_ref[...] = (jnp.dot(x_last, fcw_ref[...],
                              preferred_element_type=jnp.float32) + fcb_ref[...])


# ---------------------------------------------------------------------------
# Wrapper
# ---------------------------------------------------------------------------
def transformer_lm_forward(ids, kp):
    B, S = ids.shape
    BS = B * S
    # Lane-dense one-hot (padded to 128 classes); keeps the iota/compare work and a
    # lane-width-1 int32 DMA out of the kernel (review item 5).
    onehot = jax.nn.one_hot(ids.reshape(BS).astype(jnp.int32), VPAD, dtype=jnp.float32)

    out = pl.pallas_call(
        fused_lm_kernel,
        out_shape=jax.ShapeDtypeStruct((B, VPAD), jnp.float32),
        grid=(NUM_LAYERS,),
        in_specs=[
            pl.BlockSpec((BS, VPAD), lambda l: (0, 0)),                   # one-hot tokens
            pl.BlockSpec((VPAD, D_MODEL), lambda l: (0, 0)),              # padded embedding table
            pl.BlockSpec((1, PACK_ROWS, 128), lambda l: (l, 0, 0)),       # packed small params
            pl.BlockSpec((1, 1, FF), lambda l: (l, 0, 0)),                # FF bias 1 (f32)
            pl.BlockSpec((1, D_MODEL, FF), lambda l: (l, 0, 0)),          # FF w1   (bf16)
            pl.BlockSpec((1, D_MODEL, FF), lambda l: (l, 0, 0)),          # FF w2^T (bf16, lane-dense)
            pl.BlockSpec((D_MODEL, VPAD), lambda l: (0, 0)),              # fc weight (padded)
            pl.BlockSpec((1, VPAD), lambda l: (0, 0)),                    # fc bias   (padded)
        ],
        out_specs=pl.BlockSpec((B, VPAD), lambda l: (0, 0)),
        scratch_shapes=[pltpu.VMEM((BS, D_MODEL), jnp.float32)],          # resident activations
        compiler_params=pltpu.CompilerParams(
            # Layer axis is a sequential dependency chain -> "arbitrary".
            # TODO(synk): on v7x, add a leading "parallel" axis sharding BS rows across
            # the 2 TensorCores once the batch grows beyond one (128, *) row tile.
            dimension_semantics=("arbitrary",)),
    )(onehot, kp['embed_pad'], kp['pack'], kp['b1'], kp['w1'], kp['w2t'],
      kp['fc_w_pad'], kp['fc_b_pad'])
    return out[:, :VOCAB_SIZE]


# ---------------------------------------------------------------------------
# Deterministic parameter init (synthetic; shapes match the nn.Module)
# ---------------------------------------------------------------------------
def init_params(key):
    keys = iter(jax.random.split(key, 64))

    def w(shape, scale=0.05):
        return (scale * jax.random.normal(next(keys), shape)).astype(jnp.float32)

    params = {'embed': w((VOCAB_SIZE, D_MODEL))}
    layers = []
    for _ in range(NUM_LAYERS):
        layers.append(dict(
            wq=w((D_MODEL, D_MODEL)), wk=w((D_MODEL, D_MODEL)), wv=w((D_MODEL, D_MODEL)),
            bq=w((1, D_MODEL)), bk=w((1, D_MODEL)), bv=w((1, D_MODEL)),
            wo=w((D_MODEL, D_MODEL)), bo=w((1, D_MODEL)),
            g1=jnp.ones((1, D_MODEL), jnp.float32), be1=jnp.zeros((1, D_MODEL), jnp.float32),
            # FF weights kept in bf16: they are >95% of all parameter bytes moved.
            w1=w((D_MODEL, FF)).astype(jnp.bfloat16), b1=w((1, FF)),
            w2=w((FF, D_MODEL)).astype(jnp.bfloat16), b2=w((1, D_MODEL)),
            g2=jnp.ones((1, D_MODEL), jnp.float32), be2=jnp.zeros((1, D_MODEL), jnp.float32),
        ))
    params['layers'] = layers
    params['fc_w'] = w((D_MODEL, VOCAB_SIZE))
    params['fc_b'] = w((1, VOCAB_SIZE))
    return params


def pack_params(params):
    """Stack per-layer weights on a leading layer axis, lane-dense, for the fused kernel."""
    def pack_one(p):
        buf = jnp.zeros((PACK_ROWS, 128), jnp.float32)
        buf = buf.at[0:D_MODEL, 0:3 * D_MODEL].set(
            jnp.concatenate([p['wq'], p['wk'], p['wv']], axis=1))
        buf = buf.at[D_MODEL:2 * D_MODEL, 0:D_MODEL].set(p['wo'])
        buf = buf.at[ROW_BQKV, 0:3 * D_MODEL].set(
            jnp.concatenate([p['bq'], p['bk'], p['bv']], axis=1)[0])
        buf = buf.at[ROW_BO, 0:D_MODEL].set(p['bo'][0])
        buf = buf.at[ROW_G1, 0:D_MODEL].set(p['g1'][0])
        buf = buf.at[ROW_BE1, 0:D_MODEL].set(p['be1'][0])
        buf = buf.at[ROW_B2, 0:D_MODEL].set(p['b2'][0])
        buf = buf.at[ROW_G2, 0:D_MODEL].set(p['g2'][0])
        buf = buf.at[ROW_BE2, 0:D_MODEL].set(p['be2'][0])
        return buf

    L = params['layers']
    embed_pad = jnp.zeros((VPAD, D_MODEL), jnp.float32).at[:VOCAB_SIZE].set(params['embed'])
    fc_w_pad = jnp.zeros((D_MODEL, VPAD), jnp.float32).at[:, :VOCAB_SIZE].set(params['fc_w'])
    fc_b_pad = jnp.zeros((1, VPAD), jnp.float32).at[:, :VOCAB_SIZE].set(params['fc_b'])
    return dict(
        embed_pad=embed_pad,                                    # (128, D)   f32
        pack=jnp.stack([pack_one(p) for p in L]),               # (L, 72, 128) f32
        # NOTE(review item 11): b1 stays a separate (L,1,FF) input; its 8 KiB block is
        # prefetched by the same BlockSpec pipeline as w1/w2, off the critical path.
        b1=jnp.stack([p['b1'] for p in L]),                     # (L, 1, FF) f32
        w1=jnp.stack([p['w1'] for p in L]),                     # (L, D, FF) bf16
        w2t=jnp.stack([p['w2'].T for p in L]),                  # (L, D, FF) bf16, lane-dense
        fc_w_pad=fc_w_pad, fc_b_pad=fc_b_pad,
    )


# ---------------------------------------------------------------------------
# Pure-JAX reference (same math, same bf16 FF operands) for a correctness check
# ---------------------------------------------------------------------------
def _ln(x, g, b):
    mu = jnp.mean(x, axis=-1, keepdims=True)
    var = jnp.mean((x - mu) ** 2, axis=-1, keepdims=True)
    return (x - mu) * jax.lax.rsqrt(var + EPS) * g + b


def ref_forward(ids, params):
    x = jnp.take(params['embed'], ids, axis=0).astype(jnp.float32)
    B, S, D = x.shape
    for p in params['layers']:
        q = x @ p['wq'] + p['bq'][0]
        k = x @ p['wk'] + p['bk'][0]
        v = x @ p['wv'] + p['bv'][0]
        split = lambda t: t.reshape(B, S, NHEAD, HEAD_DIM).transpose(0, 2, 1, 3)
        qh, kh, vh = split(q), split(k), split(v)
        s = jnp.einsum('bhqd,bhkd->bhqk', qh, kh) / jnp.sqrt(jnp.float32(HEAD_DIM))
        att = jax.nn.softmax(s, axis=-1)
        o = jnp.einsum('bhqk,bhkd->bhqd', att, vh).transpose(0, 2, 1, 3).reshape(B, S, D)
        o = o @ p['wo'] + p['bo'][0]
        y = _ln(x + o, p['g1'][0], p['be1'][0])
        h1 = jnp.dot(y.astype(jnp.bfloat16), p['w1'],
                     preferred_element_type=jnp.float32) + p['b1'][0]
        h1 = jax.nn.relu(h1)
        h2 = jnp.dot(h1.astype(jnp.bfloat16), p['w2'],
                     preferred_element_type=jnp.float32) + p['b2'][0]
        x = _ln(y + h2, p['g2'][0], p['be2'][0])
    return x[:, -1, :] @ params['fc_w'] + params['fc_b'][0]


# ---------------------------------------------------------------------------
if __name__ == "__main__":
    key = jax.random.PRNGKey(0)
    pkey, ikey = jax.random.split(key)
    params = init_params(pkey)
    kparams = pack_params(params)

    B, S = 2, 8
    ids = jax.random.randint(ikey, (B, S), 0, VOCAB_SIZE, dtype=jnp.int32)

    out = transformer_lm_forward(ids, kparams)
    out = jax.block_until_ready(out)

    ref = ref_forward(ids, params)
    # tolerance covers f32 MXU accumulation-order differences vs the XLA reference
    np.testing.assert_allclose(np.asarray(out), np.asarray(ref), rtol=2e-3, atol=2e-3)

    print("KERNEL_OK")
</pallas_src>

<mosaic_0001>
module attributes {stable_mosaic.version = 11 : i64} {
  func.func @fused_lm_kernel(%arg0: i32, %arg1: memref<16x128xf32, #tpu.memory_space<vmem>>, %arg2: memref<128x32xf32, #tpu.memory_space<vmem>>, %arg3: memref<1x72x128xf32, #tpu.memory_space<vmem>>, %arg4: memref<1x1x2048xf32, #tpu.memory_space<vmem>>, %arg5: memref<1x32x2048xbf16, #tpu.memory_space<vmem>>, %arg6: memref<1x32x2048xbf16, #tpu.memory_space<vmem>>, %arg7: memref<32x128xf32, #tpu.memory_space<vmem>>, %arg8: memref<1x128xf32, #tpu.memory_space<vmem>>, %arg9: memref<2x128xf32, #tpu.memory_space<vmem>>, %arg10: memref<16x32xf32, #tpu.memory_space<vmem>>) attributes {dimension_semantics = [#tpu.dimension_semantics<arbitrary>], iteration_bounds = array<i64: 2>, scalar_prefetch = 0 : i64, scratch_operands = 1 : i64, tpu.core_type = #tpu.core_type<tc>, window_params = [{pipeline_mode = #tpu.pipeline_mode<synchronous>, transform_indices = @transform_0, window_bounds = array<i64: 16, 128>}, {pipeline_mode = #tpu.pipeline_mode<synchronous>, transform_indices = @transform_1, window_bounds = array<i64: 128, 32>}, {transform_indices = @transform_2, window_bounds = array<i64: 1, 72, 128>}, {transform_indices = @transform_3, window_bounds = array<i64: 1, 1, 2048>}, {transform_indices = @transform_4, window_bounds = array<i64: 1, 32, 2048>}, {transform_indices = @transform_5, window_bounds = array<i64: 1, 32, 2048>}, {pipeline_mode = #tpu.pipeline_mode<synchronous>, transform_indices = @transform_6, window_bounds = array<i64: 32, 128>}, {pipeline_mode = #tpu.pipeline_mode<synchronous>, transform_indices = @transform_7, window_bounds = array<i64: 1, 128>}, {pipeline_mode = #tpu.pipeline_mode<synchronous>, transform_indices = @transform_8, window_bounds = array<i64: 2, 128>}]} {
    %c0_i32 = arith.constant 0 : i32
    %0 = arith.cmpi eq, %arg0, %c0_i32 : i32
    %1 = arith.extui %0 : i1 to i32
    %c0_i32_0 = arith.constant 0 : i32
    %2 = arith.cmpi ne, %1, %c0_i32_0 : i32
    scf.if %2 {
      %c0_51 = arith.constant 0 : index
      %c0_52 = arith.constant 0 : index
      %166 = vector.load %arg1[%c0_51, %c0_52] : memref<16x128xf32, #tpu.memory_space<vmem>>, vector<16x128xf32>
      %c0_53 = arith.constant 0 : index
      %c0_54 = arith.constant 0 : index
      %167 = vector.load %arg2[%c0_53, %c0_54] : memref<128x32xf32, #tpu.memory_space<vmem>>, vector<128x32xf32>
      %cst_55 = arith.constant dense<0.000000e+00> : vector<16x32xf32>
      %168 = tpu.matmul %166, %167, %cst_55 {dimension_numbers = #tpu.dot_dimension_numbers<[1], [0], [0], [1], [0, 0, 1, 1], [], []>} : vector<16x128xf32>, vector<128x32xf32>, vector<16x32xf32> -> vector<16x32xf32>
      %c0_56 = arith.constant 0 : index
      %c0_57 = arith.constant 0 : index
      %169 = vector.load %arg10[%c0_56, %c0_57] : memref<16x32xf32, #tpu.memory_space<vmem>>, vector<16x32xf32>
      tpu.vector_store %arg10[%c0_56, %c0_57], %168 {strides = array<i32>} : memref<16x32xf32, #tpu.memory_space<vmem>>, vector<16x32xf32>,
    } else {
    }
    %c0 = arith.constant 0 : index
    %c0_1 = arith.constant 0 : index
    %3 = vector.load %arg10[%c0, %c0_1] : memref<16x32xf32, #tpu.memory_space<vmem>>, vector<16x32xf32>
    %c0_2 = arith.constant 0 : index
    %c0_3 = arith.constant 0 : index
    %c0_4 = arith.constant 0 : index
    %4 = vector.load %arg3[%c0_2, %c0_3, %c0_4] : memref<1x72x128xf32, #tpu.memory_space<vmem>>, vector<1x72x128xf32>
    %5 = vector.shape_cast %4 : vector<1x72x128xf32> to vector<72x128xf32>
    %6 = vector.extract_strided_slice %5 {offsets = [0, 0], sizes = [32, 128], strides = [1, 1]} : vector<72x128xf32> to vector<32x128xf32>
    %cst = arith.constant dense<0.000000e+00> : vector<16x128xf32>
    %7 = tpu.matmul %3, %6, %cst {dimension_numbers = #tpu.dot_dimension_numbers<[1], [0], [0], [1], [0, 0, 1, 1], [], []>} : vector<16x32xf32>, vector<32x128xf32>, vector<16x128xf32> -> vector<16x128xf32>
    %8 = vector.extract_strided_slice %5 {offsets = [64, 0], sizes = [1, 128], strides = [1, 1]} : vector<72x128xf32> to vector<1x128xf32>
    %9 = vector.broadcast %8 : vector<1x128xf32> to vector<16x128xf32>
    %10 = arith.addf %7, %9 : vector<16x128xf32>
    %11 = vector.extract_strided_slice %10 {offsets = [0, 0], sizes = [16, 8], strides = [1, 1]} : vector<16x128xf32> to vector<16x8xf32>
    %12 = vector.shape_cast %11 : vector<16x8xf32> to vector<2x8x8xf32>
    %13 = vector.extract_strided_slice %10 {offsets = [0, 32], sizes = [16, 8], strides = [1, 1]} : vector<16x128xf32> to vector<16x8xf32>
    %14 = vector.shape_cast %13 : vector<16x8xf32> to vector<2x8x8xf32>
    %15 = vector.extract_strided_slice %10 {offsets = [0, 64], sizes = [16, 8], strides = [1, 1]} : vector<16x128xf32> to vector<16x8xf32>
    %16 = vector.shape_cast %15 : vector<16x8xf32> to vector<2x8x8xf32>
    "tpu.trace_start"() <{level = 10 : i32, message = "bqd,bkd->bqk"}> : () -> ()
    %cst_5 = arith.constant dense<0.000000e+00> : vector<2x8x8xf32>
    %17 = tpu.matmul %12, %14, %cst_5 {dimension_numbers = #tpu.dot_dimension_numbers<[2], [2], [1], [1], [0, 0, 0, 1, 1, 1], [0], [0]>} : vector<2x8x8xf32>, vector<2x8x8xf32>, vector<2x8x8xf32> -> vector<2x8x8xf32>
    "tpu.trace_stop"() : () -> ()
    %cst_6 = arith.constant 0.353553385 : f32
    %18 = vector.broadcast %cst_6 : f32 to vector<2x8x8xf32>
    %19 = arith.mulf %17, %18 : vector<2x8x8xf32>
    %cst_7 = arith.constant dense<0xFF800000> : vector<2x8xf32>
    %20 = vector.multi_reduction <maximumf>, %19, %cst_7 [2] : vector<2x8x8xf32> to vector<2x8xf32>
    %21 = vector.shape_cast %20 : vector<2x8xf32> to vector<2x8x1xf32>
    %22 = vector.broadcast %21 : vector<2x8x1xf32> to vector<2x8x8xf32>
    %23 = arith.subf %19, %22 : vector<2x8x8xf32>
    %24 = math.exp %23 : vector<2x8x8xf32>
    %cst_8 = arith.constant dense<0.000000e+00> : vector<2x8xf32>
    %25 = vector.multi_reduction <add>, %24, %cst_8 [2] : vector<2x8x8xf32> to vector<2x8xf32>
    %26 = vector.shape_cast %25 : vector<2x8xf32> to vector<2x8x1xf32>
    %27 = vector.broadcast %26 : vector<2x8x1xf32> to vector<2x8x8xf32>
    %28 = arith.divf %24, %27 : vector<2x8x8xf32>
    "tpu.trace_start"() <{level = 10 : i32, message = "bqk,bkd->bqd"}> : () -> ()
    %cst_9 = arith.constant dense<0.000000e+00> : vector<2x8x8xf32>
    %29 = tpu.matmul %28, %16, %cst_9 {dimension_numbers = #tpu.dot_dimension_numbers<[2], [1], [1], [2], [0, 0, 0, 1, 1, 2], [0], [0]>} : vector<2x8x8xf32>, vector<2x8x8xf32>, vector<2x8x8xf32> -> vector<2x8x8xf32>
    "tpu.trace_stop"() : () -> ()
    %30 = vector.extract_strided_slice %10 {offsets = [0, 8], sizes = [16, 8], strides = [1, 1]} : vector<16x128xf32> to vector<16x8xf32>
    %31 = vector.shape_cast %30 : vector<16x8xf32> to vector<2x8x8xf32>
    %32 = vector.extract_strided_slice %10 {offsets = [0, 40], sizes = [16, 8], strides = [1, 1]} : vector<16x128xf32> to vector<16x8xf32>
    %33 = vector.shape_cast %32 : vector<16x8xf32> to vector<2x8x8xf32>
    %34 = vector.extract_strided_slice %10 {offsets = [0, 72], sizes = [16, 8], strides = [1, 1]} : vector<16x128xf32> to vector<16x8xf32>
    %35 = vector.shape_cast %34 : vector<16x8xf32> to vector<2x8x8xf32>
    "tpu.trace_start"() <{level = 10 : i32, message = "bqd,bkd->bqk"}> : () -> ()
    %cst_10 = arith.constant dense<0.000000e+00> : vector<2x8x8xf32>
    %36 = tpu.matmul %31, %33, %cst_10 {dimension_numbers = #tpu.dot_dimension_numbers<[2], [2], [1], [1], [0, 0, 0, 1, 1, 1], [0], [0]>} : vector<2x8x8xf32>, vector<2x8x8xf32>, vector<2x8x8xf32> -> vector<2x8x8xf32>
    "tpu.trace_stop"() : () -> ()
    %cst_11 = arith.constant 0.353553385 : f32
    %37 = vector.broadcast %cst_11 : f32 to vector<2x8x8xf32>
    %38 = arith.mulf %36, %37 : vector<2x8x8xf32>
    %cst_12 = arith.constant dense<0xFF800000> : vector<2x8xf32>
    %39 = vector.multi_reduction <maximumf>, %38, %cst_12 [2] : vector<2x8x8xf32> to vector<2x8xf32>
    %40 = vector.shape_cast %39 : vector<2x8xf32> to vector<2x8x1xf32>
    %41 = vector.broadcast %40 : vector<2x8x1xf32> to vector<2x8x8xf32>
    %42 = arith.subf %38, %41 : vector<2x8x8xf32>
    %43 = math.exp %42 : vector<2x8x8xf32>
    %cst_13 = arith.constant dense<0.000000e+00> : vector<2x8xf32>
    %44 = vector.multi_reduction <add>, %43, %cst_13 [2] : vector<2x8x8xf32> to vector<2x8xf32>
    %45 = vector.shape_cast %44 : vector<2x8xf32> to vector<2x8x1xf32>
    %46 = vector.broadcast %45 : vector<2x8x1xf32> to vector<2x8x8xf32>
    %47 = arith.divf %43, %46 : vector<2x8x8xf32>
    "tpu.trace_start"() <{level = 10 : i32, message = "bqk,bkd->bqd"}> : () -> ()
    %cst_14 = arith.constant dense<0.000000e+00> : vector<2x8x8xf32>
    %48 = tpu.matmul %47, %35, %cst_14 {dimension_numbers = #tpu.dot_dimension_numbers<[2], [1], [1], [2], [0, 0, 0, 1, 1, 2], [0], [0]>} : vector<2x8x8xf32>, vector<2x8x8xf32>, vector<2x8x8xf32> -> vector<2x8x8xf32>
    "tpu.trace_stop"() : () -> ()
    %49 = vector.extract_strided_slice %10 {offsets = [0, 16], sizes = [16, 8], strides = [1, 1]} : vector<16x128xf32> to vector<16x8xf32>
    %50 = vector.shape_cast %49 : vector<16x8xf32> to vector<2x8x8xf32>
    %51 = vector.extract_strided_slice %10 {offsets = [0, 48], sizes = [16, 8], strides = [1, 1]} : vector<16x128xf32> to vector<16x8xf32>
    %52 = vector.shape_cast %51 : vector<16x8xf32> to vector<2x8x8xf32>
    %53 = vector.extract_strided_slice %10 {offsets = [0, 80], sizes = [16, 8], strides = [1, 1]} : vector<16x128xf32> to vector<16x8xf32>
    %54 = vector.shape_cast %53 : vector<16x8xf32> to vector<2x8x8xf32>
    "tpu.trace_start"() <{level = 10 : i32, message = "bqd,bkd->bqk"}> : () -> ()
    %cst_15 = arith.constant dense<0.000000e+00> : vector<2x8x8xf32>
    %55 = tpu.matmul %50, %52, %cst_15 {dimension_numbers = #tpu.dot_dimension_numbers<[2], [2], [1], [1], [0, 0, 0, 1, 1, 1], [0], [0]>} : vector<2x8x8xf32>, vector<2x8x8xf32>, vector<2x8x8xf32> -> vector<2x8x8xf32>
    "tpu.trace_stop"() : () -> ()
    %cst_16 = arith.constant 0.353553385 : f32
    %56 = vector.broadcast %cst_16 : f32 to vector<2x8x8xf32>
    %57 = arith.mulf %55, %56 : vector<2x8x8xf32>
    %cst_17 = arith.constant dense<0xFF800000> : vector<2x8xf32>
    %58 = vector.multi_reduction <maximumf>, %57, %cst_17 [2] : vector<2x8x8xf32> to vector<2x8xf32>
    %59 = vector.shape_cast %58 : vector<2x8xf32> to vector<2x8x1xf32>
    %60 = vector.broadcast %59 : vector<2x8x1xf32> to vector<2x8x8xf32>
    %61 = arith.subf %57, %60 : vector<2x8x8xf32>
    %62 = math.exp %61 : vector<2x8x8xf32>
    %cst_18 = arith.constant dense<0.000000e+00> : vector<2x8xf32>
    %63 = vector.multi_reduction <add>, %62, %cst_18 [2] : vector<2x8x8xf32> to vector<2x8xf32>
    %64 = vector.shape_cast %63 : vector<2x8xf32> to vector<2x8x1xf32>
    %65 = vector.broadcast %64 : vector<2x8x1xf32> to vector<2x8x8xf32>
    %66 = arith.divf %62, %65 : vector<2x8x8xf32>
    "tpu.trace_start"() <{level = 10 : i32, message = "bqk,bkd->bqd"}> : () -> ()
    %cst_19 = arith.constant dense<0.000000e+00> : vector<2x8x8xf32>
    %67 = tpu.matmul %66, %54, %cst_19 {dimension_numbers = #tpu.dot_dimension_numbers<[2], [1], [1], [2], [0, 0, 0, 1, 1, 2], [0], [0]>} : vector<2x8x8xf32>, vector<2x8x8xf32>, vector<2x8x8xf32> -> vector<2x8x8xf32>
    "tpu.trace_stop"() : () -> ()
    %68 = vector.extract_strided_slice %10 {offsets = [0, 24], sizes = [16, 8], strides = [1, 1]} : vector<16x128xf32> to vector<16x8xf32>
    %69 = vector.shape_cast %68 : vector<16x8xf32> to vector<2x8x8xf32>
    %70 = vector.extract_strided_slice %10 {offsets = [0, 56], sizes = [16, 8], strides = [1, 1]} : vector<16x128xf32> to vector<16x8xf32>
    %71 = vector.shape_cast %70 : vector<16x8xf32> to vector<2x8x8xf32>
    %72 = vector.extract_strided_slice %10 {offsets = [0, 88], sizes = [16, 8], strides = [1, 1]} : vector<16x128xf32> to vector<16x8xf32>
    %73 = vector.shape_cast %72 : vector<16x8xf32> to vector<2x8x8xf32>
    "tpu.trace_start"() <{level = 10 : i32, message = "bqd,bkd->bqk"}> : () -> ()
    %cst_20 = arith.constant dense<0.000000e+00> : vector<2x8x8xf32>
    %74 = tpu.matmul %69, %71, %cst_20 {dimension_numbers = #tpu.dot_dimension_numbers<[2], [2], [1], [1], [0, 0, 0, 1, 1, 1], [0], [0]>} : vector<2x8x8xf32>, vector<2x8x8xf32>, vector<2x8x8xf32> -> vector<2x8x8xf32>
    "tpu.trace_stop"() : () -> ()
    %cst_21 = arith.constant 0.353553385 : f32
    %75 = vector.broadcast %cst_21 : f32 to vector<2x8x8xf32>
    %76 = arith.mulf %74, %75 : vector<2x8x8xf32>
    %cst_22 = arith.constant dense<0xFF800000> : vector<2x8xf32>
    %77 = vector.multi_reduction <maximumf>, %76, %cst_22 [2] : vector<2x8x8xf32> to vector<2x8xf32>
    %78 = vector.shape_cast %77 : vector<2x8xf32> to vector<2x8x1xf32>
    %79 = vector.broadcast %78 : vector<2x8x1xf32> to vector<2x8x8xf32>
    %80 = arith.subf %76, %79 : vector<2x8x8xf32>
    %81 = math.exp %80 : vector<2x8x8xf32>
    %cst_23 = arith.constant dense<0.000000e+00> : vector<2x8xf32>
    %82 = vector.multi_reduction <add>, %81, %cst_23 [2] : vector<2x8x8xf32> to vector<2x8xf32>
    %83 = vector.shape_cast %82 : vector<2x8xf32> to vector<2x8x1xf32>
    %84 = vector.broadcast %83 : vector<2x8x1xf32> to vector<2x8x8xf32>
    %85 = arith.divf %81, %84 : vector<2x8x8xf32>
    "tpu.trace_start"() <{level = 10 : i32, message = "bqk,bkd->bqd"}> : () -> ()
    %cst_24 = arith.constant dense<0.000000e+00> : vector<2x8x8xf32>
    %86 = tpu.matmul %85, %73, %cst_24 {dimension_numbers = #tpu.dot_dimension_numbers<[2], [1], [1], [2], [0, 0, 0, 1, 1, 2], [0], [0]>} : vector<2x8x8xf32>, vector<2x8x8xf32>, vector<2x8x8xf32> -> vector<2x8x8xf32>
    "tpu.trace_stop"() : () -> ()
    %87 = tpu.concatenate %29, %48, %67, %86 in 2 : vector<2x8x8xf32>, vector<2x8x8xf32>, vector<2x8x8xf32>, vector<2x8x8xf32> -> vector<2x8x32xf32>
    %88 = vector.shape_cast %87 : vector<2x8x32xf32> to vector<16x32xf32>
    %89 = vector.extract_strided_slice %5 {offsets = [32, 0], sizes = [32, 128], strides = [1, 1]} : vector<72x128xf32> to vector<32x128xf32>
    %cst_25 = arith.constant dense<0.000000e+00> : vector<16x128xf32>
    %90 = tpu.matmul %88, %89, %cst_25 {dimension_numbers = #tpu.dot_dimension_numbers<[1], [0], [0], [1], [0, 0, 1, 1], [], []>} : vector<16x32xf32>, vector<32x128xf32>, vector<16x128xf32> -> vector<16x128xf32>
    %91 = vector.extract_strided_slice %5 {offsets = [65, 0], sizes = [1, 128], strides = [1, 1]} : vector<72x128xf32> to vector<1x128xf32>
    %92 = vector.broadcast %91 : vector<1x128xf32> to vector<16x128xf32>
    %93 = arith.addf %90, %92 : vector<16x128xf32>
    %94 = vector.extract_strided_slice %93 {offsets = [0, 0], sizes = [16, 32], strides = [1, 1]} : vector<16x128xf32> to vector<16x32xf32>
    %95 = vector.extract_strided_slice %5 {offsets = [66, 0], sizes = [1, 32], strides = [1, 1]} : vector<72x128xf32> to vector<1x32xf32>
    %96 = vector.extract_strided_slice %5 {offsets = [67, 0], sizes = [1, 32], strides = [1, 1]} : vector<72x128xf32> to vector<1x32xf32>
    %97 = arith.addf %3, %94 : vector<16x32xf32>
    %cst_26 = arith.constant dense<0.000000e+00> : vector<16xf32>
    %98 = vector.multi_reduction <add>, %97, %cst_26 [1] : vector<16x32xf32> to vector<16xf32>
    %99 = vector.shape_cast %98 : vector<16xf32> to vector<16x1xf32>
    %cst_27 = arith.constant 3.200000e+01 : f32
    %100 = vector.broadcast %cst_27 : f32 to vector<16x1xf32>
    %101 = arith.divf %99, %100 : vector<16x1xf32>
    %102 = vector.broadcast %101 : vector<16x1xf32> to vector<16x32xf32>
    %103 = arith.subf %97, %102 : vector<16x32xf32>
    %104 = arith.mulf %103, %103 : vector<16x32xf32>
    %cst_28 = arith.constant dense<0.000000e+00> : vector<16xf32>
    %105 = vector.multi_reduction <add>, %104, %cst_28 [1] : vector<16x32xf32> to vector<16xf32>
    %106 = vector.shape_cast %105 : vector<16xf32> to vector<16x1xf32>
    %cst_29 = arith.constant 3.200000e+01 : f32
    %107 = vector.broadcast %cst_29 : f32 to vector<16x1xf32>
    %108 = arith.divf %106, %107 : vector<16x1xf32>
    %109 = vector.broadcast %101 : vector<16x1xf32> to vector<16x32xf32>
    %110 = arith.subf %97, %109 : vector<16x32xf32>
    %cst_30 = arith.constant 9.99999974E-6 : f32
    %111 = vector.broadcast %cst_30 : f32 to vector<16x1xf32>
    %112 = arith.addf %108, %111 : vector<16x1xf32>
    %113 = math.rsqrt %112 : vector<16x1xf32>
    %114 = vector.broadcast %113 : vector<16x1xf32> to vector<16x32xf32>
    %115 = arith.mulf %110, %114 : vector<16x32xf32>
    %116 = vector.broadcast %95 : vector<1x32xf32> to vector<16x32xf32>
    %117 = arith.mulf %115, %116 : vector<16x32xf32>
    %118 = vector.broadcast %96 : vector<1x32xf32> to vector<16x32xf32>
    %119 = arith.addf %117, %118 : vector<16x32xf32>
    %c0_31 = arith.constant 0 : index
    %c0_32 = arith.constant 0 : index
    %c0_33 = arith.constant 0 : index
    %120 = vector.load %arg5[%c0_31, %c0_32, %c0_33] : memref<1x32x2048xbf16, #tpu.memory_space<vmem>>, vector<1x32x2048xbf16>
    %121 = vector.shape_cast %120 : vector<1x32x2048xbf16> to vector<32x2048xbf16>
    %c0_34 = arith.constant 0 : index
    %c0_35 = arith.constant 0 : index
    %c0_36 = arith.constant 0 : index
    %122 = vector.load %arg6[%c0_34, %c0_35, %c0_36] : memref<1x32x2048xbf16, #tpu.memory_space<vmem>>, vector<1x32x2048xbf16>
    %123 = vector.shape_cast %122 : vector<1x32x2048xbf16> to vector<32x2048xbf16>
    %c0_37 = arith.constant 0 : index
    %c0_38 = arith.constant 0 : index
    %c0_39 = arith.constant 0 : index
    %124 = vector.load %arg4[%c0_37, %c0_38, %c0_39] : memref<1x1x2048xf32, #tpu.memory_space<vmem>>, vector<1x1x2048xf32>
    %125 = vector.shape_cast %124 : vector<1x1x2048xf32> to vector<1x2048xf32>
    %126 = vector.extract_strided_slice %5 {offsets = [68, 0], sizes = [1, 32], strides = [1, 1]} : vector<72x128xf32> to vector<1x32xf32>
    %127 = arith.truncf %119 : vector<16x32xf32> to vector<16x32xbf16>
    %cst_40 = arith.constant dense<0.000000e+00> : vector<16x2048xf32>
    %128 = tpu.matmul %127, %121, %cst_40 {dimension_numbers = #tpu.dot_dimension_numbers<[1], [0], [0], [1], [0, 0, 1, 1], [], []>} : vector<16x32xbf16>, vector<32x2048xbf16>, vector<16x2048xf32> -> vector<16x2048xf32>
    %129 = vector.broadcast %125 : vector<1x2048xf32> to vector<16x2048xf32>
    %130 = arith.addf %128, %129 : vector<16x2048xf32>
    %cst_41 = arith.constant 0.000000e+00 : f32
    %131 = vector.broadcast %cst_41 : f32 to vector<16x2048xf32>
    %132 = arith.maximumf %130, %131 : vector<16x2048xf32>
    %133 = arith.truncf %132 : vector<16x2048xf32> to vector<16x2048xbf16>
    %cst_42 = arith.constant dense<0.000000e+00> : vector<16x32xf32>
    %134 = tpu.matmul %133, %123, %cst_42 {dimension_numbers = #tpu.dot_dimension_numbers<[1], [1], [0], [0], [0, 0, 1, 0], [], []>} : vector<16x2048xbf16>, vector<32x2048xbf16>, vector<16x32xf32> -> vector<16x32xf32>
    %135 = vector.broadcast %126 : vector<1x32xf32> to vector<16x32xf32>
    %136 = arith.addf %134, %135 : vector<16x32xf32>
    %137 = vector.extract_strided_slice %5 {offsets = [69, 0], sizes = [1, 32], strides = [1, 1]} : vector<72x128xf32> to vector<1x32xf32>
    %138 = vector.extract_strided_slice %5 {offsets = [70, 0], sizes = [1, 32], strides = [1, 1]} : vector<72x128xf32> to vector<1x32xf32>
    %139 = arith.addf %119, %136 : vector<16x32xf32>
    %cst_43 = arith.constant dense<0.000000e+00> : vector<16xf32>
    %140 = vector.multi_reduction <add>, %139, %cst_43 [1] : vector<16x32xf32> to vector<16xf32>
    %141 = vector.shape_cast %140 : vector<16xf32> to vector<16x1xf32>
    %cst_44 = arith.constant 3.200000e+01 : f32
    %142 = vector.broadcast %cst_44 : f32 to vector<16x1xf32>
    %143 = arith.divf %141, %142 : vector<16x1xf32>
    %144 = vector.broadcast %143 : vector<16x1xf32> to vector<16x32xf32>
    %145 = arith.subf %139, %144 : vector<16x32xf32>
    %146 = arith.mulf %145, %145 : vector<16x32xf32>
    %cst_45 = arith.constant dense<0.000000e+00> : vector<16xf32>
    %147 = vector.multi_reduction <add>, %146, %cst_45 [1] : vector<16x32xf32> to vector<16xf32>
    %148 = vector.shape_cast %147 : vector<16xf32> to vector<16x1xf32>
    %cst_46 = arith.constant 3.200000e+01 : f32
    %149 = vector.broadcast %cst_46 : f32 to vector<16x1xf32>
    %150 = arith.divf %148, %149 : vector<16x1xf32>
    %151 = vector.broadcast %143 : vector<16x1xf32> to vector<16x32xf32>
    %152 = arith.subf %139, %151 : vector<16x32xf32>
    %cst_47 = arith.constant 9.99999974E-6 : f32
    %153 = vector.broadcast %cst_47 : f32 to vector<16x1xf32>
    %154 = arith.addf %150, %153 : vector<16x1xf32>
    %155 = math.rsqrt %154 : vector<16x1xf32>
    %156 = vector.broadcast %155 : vector<16x1xf32> to vector<16x32xf32>
    %157 = arith.mulf %152, %156 : vector<16x32xf32>
    %158 = vector.broadcast %137 : vector<1x32xf32> to vector<16x32xf32>
    %159 = arith.mulf %157, %158 : vector<16x32xf32>
    %160 = vector.broadcast %138 : vector<1x32xf32> to vector<16x32xf32>
    %161 = arith.addf %159, %160 : vector<16x32xf32>
    %c0_48 = arith.constant 0 : index
    %c0_49 = arith.constant 0 : index
    %162 = vector.load %arg10[%c0_48, %c0_49] : memref<16x32xf32, #tpu.memory_space<vmem>>, vector<16x32xf32>
    tpu.vector_store %arg10[%c0_48, %c0_49], %161 {strides = array<i32>} : memref<16x32xf32, #tpu.memory_space<vmem>>, vector<16x32xf32>,
    %c1_i32 = arith.constant 1 : i32
    %163 = arith.cmpi eq, %arg0, %c1_i32 : i32
    %164 = arith.extui %163 : i1 to i32
    %c0_i32_50 = arith.constant 0 : i32
    %165 = arith.cmpi ne, %164, %c0_i32_50 : i32
    scf.if %165 {
      %166 = vector.extract_strided_slice %161 {offsets = [7, 0], sizes = [1, 32], strides = [1, 1]} : vector<16x32xf32> to vector<1x32xf32>
      %167 = vector.extract_strided_slice %161 {offsets = [15, 0], sizes = [1, 32], strides = [1, 1]} : vector<16x32xf32> to vector<1x32xf32>
      %168 = tpu.concatenate %166, %167 in 0 : vector<1x32xf32>, vector<1x32xf32> -> vector<2x32xf32>
      %c0_51 = arith.constant 0 : index
      %c0_52 = arith.constant 0 : index
      %169 = vector.load %arg7[%c0_51, %c0_52] : memref<32x128xf32, #tpu.memory_space<vmem>>, vector<32x128xf32>
      %cst_53 = arith.constant dense<0.000000e+00> : vector<2x128xf32>
      %170 = tpu.matmul %168, %169, %cst_53 {dimension_numbers = #tpu.dot_dimension_numbers<[1], [0], [0], [1], [0, 0, 1, 1], [], []>} : vector<2x32xf32>, vector<32x128xf32>, vector<2x128xf32> -> vector<2x128xf32>
      %c0_54 = arith.constant 0 : index
      %c0_55 = arith.constant 0 : index
      %171 = vector.load %arg8[%c0_54, %c0_55] : memref<1x128xf32, #tpu.memory_space<vmem>>, vector<1x128xf32>
      %172 = vector.broadcast %171 : vector<1x128xf32> to vector<2x128xf32>
      %173 = arith.addf %170, %172 : vector<2x128xf32>
      %c0_56 = arith.constant 0 : index
      %c0_57 = arith.constant 0 : index
      %174 = vector.load %arg9[%c0_56, %c0_57] : memref<2x128xf32, #tpu.memory_space<vmem>>, vector<2x128xf32>
      tpu.vector_store %arg9[%c0_56, %c0_57], %173 {strides = array<i32>} : memref<2x128xf32, #tpu.memory_space<vmem>>, vector<2x128xf32>,
    } else {
    }
    return
  }
  func.func @transform_0(%arg0: i32) -> (i32, i32) {
    %c0_i32 = arith.constant 0 : i32
    %c0_i32_0 = arith.constant 0 : i32
    %c0_i32_1 = arith.constant 0 : i32
    return %c0_i32, %c0_i32_0 : i32, i32
  }
  func.func @transform_1(%arg0: i32) -> (i32, i32) {
    %c0_i32 = arith.constant 0 : i32
    %c0_i32_0 = arith.constant 0 : i32
    %c0_i32_1 = arith.constant 0 : i32
    return %c0_i32, %c0_i32_0 : i32, i32
  }
  func.func @transform_2(%arg0: i32) -> (i32, i32, i32) {
    %c0_i32 = arith.constant 0 : i32
    %c0_i32_0 = arith.constant 0 : i32
    %c0_i32_1 = arith.constant 0 : i32
    return %arg0, %c0_i32, %c0_i32_0 : i32, i32, i32
  }
  func.func @transform_3(%arg0: i32) -> (i32, i32, i32) {
    %c0_i32 = arith.constant 0 : i32
    %c0_i32_0 = arith.constant 0 : i32
    %c0_i32_1 = arith.constant 0 : i32
    return %arg0, %c0_i32, %c0_i32_0 : i32, i32, i32
  }
  func.func @transform_4(%arg0: i32) -> (i32, i32, i32) {
    %c0_i32 = arith.constant 0 : i32
    %c0_i32_0 = arith.constant 0 : i32
    %c0_i32_1 = arith.constant 0 : i32
    return %arg0, %c0_i32, %c0_i32_0 : i32, i32, i32
  }
  func.func @transform_5(%arg0: i32) -> (i32, i32, i32) {
    %c0_i32 = arith.constant 0 : i32
    %c0_i32_0 = arith.constant 0 : i32
    %c0_i32_1 = arith.constant 0 : i32
    return %arg0, %c0_i32, %c0_i32_0 : i32, i32, i32
  }
  func.func @transform_6(%arg0: i32) -> (i32, i32) {
    %c0_i32 = arith.constant 0 : i32
    %c0_i32_0 = arith.constant 0 : i32
    %c0_i32_1 = arith.constant 0 : i32
    return %c0_i32, %c0_i32_0 : i32, i32
  }
  func.func @transform_7(%arg0: i32) -> (i32, i32) {
    %c0_i32 = arith.constant 0 : i32
    %c0_i32_0 = arith.constant 0 : i32
    %c0_i32_1 = arith.constant 0 : i32
    return %c0_i32, %c0_i32_0 : i32, i32
  }
  func.func @transform_8(%arg0: i32) -> (i32, i32) {
    %c0_i32 = arith.constant 0 : i32
    %c0_i32_0 = arith.constant 0 : i32
    %c0_i32_1 = arith.constant 0 : i32
    return %c0_i32, %c0_i32_0 : i32, i32
  }
}

</mosaic_0001>

<llo_original>
// kernel: tpu_custom_call.1
$region0: #{tpu_custom_call.1}
  #allocation0 [shape = 'u32[]', space=smem, size = 0x4, offset = 0x4, fixed_abs, tag = 'smem constant byte address 0x4 - core index']
  #allocation1 [shape = 'u32[144,128]{1,0:T(1,128)}', space=vmem, size = 0x12000, scoped, tag = 'internal scratch']
  #allocation2 [shape = 'f32[16,32]{1,0:T(8,128)}', space=vmem, size = 0x2000, scoped, tag = 'scratch operand']
  %s0 = inlined_call_operand.vmem [shape: f32[16,128], index: 0, kind: input, shape index: {}]
  %s1 = inlined_call_operand.vmem [shape: f32[128,32], index: 1, kind: input, shape index: {}]
  %s2 = inlined_call_operand.vmem [shape: f32[2,72,128], index: 2, kind: input, shape index: {}]
  %s3 = inlined_call_operand.hbm [shape: f32[2,1,2048], index: 3, kind: input, shape index: {}]
  %s4 = inlined_call_operand.hbm [shape: bf16[2,32,2048], index: 4, kind: input, shape index: {}]
  %s5 = inlined_call_operand.hbm [shape: bf16[2,32,2048], index: 5, kind: input, shape index: {}]
  %s6 = inlined_call_operand.hbm [shape: f32[32,128], index: 6, kind: input, shape index: {}]
  %s7 = inlined_call_operand.vmem [shape: f32[1,128], index: 7, kind: input, shape index: {}]
  %s8 = inlined_call_operand.hbm [shape: f32[2,128], index: 8, kind: output, shape index: {}]
  %s9 = sld [smem:[#allocation0]]
  $region89: #{tpu_custom_call.1} parent=0
    _
  %s11 = ssub.s32 1, %s9
  %s12 = scalar_select 0, %s11, %s9
  $region1: #{tpu_custom_call.1} parent=0
    #allocation3 [shape = 'u8[16384]{0}', space=vmem, size = 0x4000, scoped, tag = 'input window, operand 3']
    #allocation4 [shape = 's32[2]{0}', space=sflag, size = 0x8, scoped, tag = 'scoped memory for tpu_custom_call.1']
    #allocation5 [shape = 's32[2]{0}', space=sflag, size = 0x8, scoped, tag = 'scoped memory for tpu_custom_call.1']
    #allocation6 [shape = 'u8[262144]{0}', space=vmem, size = 0x40000, scoped, tag = 'input window, operand 4']
    #allocation7 [shape = 's32[2]{0}', space=sflag, size = 0x8, scoped, tag = 'scoped memory for tpu_custom_call.1']
    #allocation8 [shape = 'u8[262144]{0}', space=vmem, size = 0x40000, scoped, tag = 'input window, operand 5']
    #allocation9 [shape = 'u8[16384]{0}', space=vmem, size = 0x4000, scoped, tag = 'input window, operand 6, single buffered']
    #allocation10 [shape = 's32[1]{0}', space=sflag, size = 0x4, scoped, tag = 'scoped memory for tpu_custom_call.1']
    #allocation11 [shape = 'u8[1024]{0}', space=vmem, size = 0x400, scoped, tag = 'output window, operand 0, single buffered']
    %13 = vsyncpa [#allocation4], 0
    %s14 = scalar_lea.sflag [#allocation4], 1
    %15 = vsyncpa %s14, 0
    %16 = vsyncpa [#allocation7], 0
    %s17 = scalar_lea.sflag [#allocation7], 1
    %18 = vsyncpa %s17, 0
    %19 = vsyncpa [#allocation10], 0
    %20 = vsyncpa [#allocation5], 0
    loop: start=0, step=1, limit=4
    $region2: #{tpu_custom_call.1} parent=1 // loop_pre_header
      _
    $region3: #{tpu_custom_call.1} parent=1 // loop_header
      %s22 = sphi 0, %s26
      %p23 = scmp.ge.s32.totalorder %s22, 4
      %s30 = sphi 0, %s30
      %s32 = sphi 0, %s30
      %s33 = sphi 0, %s32
      %s47 = sphi 0, %s33
      %s51 = sphi 0, %s51
      %s53 = sphi 0, %s51
      %s54 = sphi 0, %s53
      %s68 = sphi 0, %s54
      %s74 = sphi 0, %s76
      %s77 = sphi 0, %s74
      %s78 = sphi 0, %s77
      %s94 = sphi 0, %s78
      %s100 = sphi 0, %s102
      %s103 = sphi 0, %s100
      %s104 = sphi 0, %s103
      %s120 = sphi 0, %s104
      %s126 = sphi 0, %s128
      %s129 = sphi 0, %s126
      %s130 = sphi 0, %s129
      %s146 = sphi 0, %s130
      %s152 = sphi 0, %s154
      %s155 = sphi 0, %s152
      %s156 = sphi 0, %s155
      %s172 = sphi 0, %s156
      %s176 = sphi 0, %s176
      %s178 = sphi 0, %s176
      %s179 = sphi 0, %s178
      %s193 = sphi 0, %s179
      %s197 = sphi 0, %s197
      %s199 = sphi 0, %s197
      %s200 = sphi 0, %s199
      %s214 = sphi 0, %s200
      %s218 = sphi 0, %s218
      %s220 = sphi 0, %s218
      %s221 = sphi 0, %s220
      %s235 = sphi 0, %s221
    $region4: #{tpu_custom_call.1} parent=1 // loop_header_branch
      %25 = sbr.rel (%p23) target = $region8
    $region5: #{tpu_custom_call.1} parent=1 // loop_body
      %s27 = ssub.s32 %s22, 1
      %s28 = ssub.s32 %s22, 2
      %s29 = sadd.s32 %s22, 1
      %s31 = sadd.s32 %s30, 1
      %p34 = scmp.eq.s32.totalorder %s22, 1
      %p35 = scmp.ne.s32.totalorder %s30, %s32
      %p36 = scmp.eq.s32.totalorder %s22, 0
      %p37 = por %p35, %p36
      %p38 = scmp.ne.s32.totalorder %s30, %s32
      %p39 = scmp.eq.s32.totalorder %s27, 1
      %p40 = por %p38, %p39
      %p41 = scmp.ne.s32.totalorder %s32, %s33
      %p42 = scmp.eq.s32.totalorder %s27, 0
      %p43 = por %p41, %p42
      %p44 = scmp.ne.s32.totalorder %s32, %s33
      %p45 = scmp.eq.s32.totalorder %s28, 1
      %p46 = por %p44, %p45
      %p48 = scmp.ne.s32.totalorder %s33, %s47
      %p49 = scmp.eq.s32.totalorder %s28, 0
      %p50 = por %p48, %p49
      %s52 = sadd.s32 %s51, 1
      %p55 = scmp.eq.s32.totalorder %s22, 1
      %p56 = scmp.ne.s32.totalorder %s51, %s53
      %p57 = scmp.eq.s32.totalorder %s22, 0
      %p58 = por %p56, %p57
      %p59 = scmp.ne.s32.totalorder %s51, %s53
      %p60 = scmp.eq.s32.totalorder %s27, 1
      %p61 = por %p59, %p60
      %p62 = scmp.ne.s32.totalorder %s53, %s54
      %p63 = scmp.eq.s32.totalorder %s27, 0
      %p64 = por %p62, %p63
      %p65 = scmp.ne.s32.totalorder %s53, %s54
      %p66 = scmp.eq.s32.totalorder %s28, 1
      %p67 = por %p65, %p66
      %p69 = scmp.ne.s32.totalorder %s54, %s68
      %p70 = scmp.eq.s32.totalorder %s28, 0
      %p71 = por %p69, %p70
      %s72 = ssub.s32 %s22, %s29
      %p73 = scmp.eq.s32.totalorder %s72, 0
      %s75 = sadd.s32 %s74, 1
      %s76 = scalar_select %p73, %s74, %s75
      %p79 = pneg %p73
      %p80 = scmp.eq.s32.totalorder %s22, 1
      %p81 = por %p79, %p80
      %p82 = scmp.ne.s32.totalorder %s74, %s77
      %p83 = scmp.eq.s32.totalorder %s22, 0
      %p84 = por %p82, %p83
      %p85 = scmp.ne.s32.totalorder %s74, %s77
      %p86 = scmp.eq.s32.totalorder %s27, 1
      %p87 = por %p85, %p86
      %p88 = scmp.ne.s32.totalorder %s77, %s78
      %p89 = scmp.eq.s32.totalorder %s27, 0
      %p90 = por %p88, %p89
      %p91 = scmp.ne.s32.totalorder %s77, %s78
      %p92 = scmp.eq.s32.totalorder %s28, 1
      %p93 = por %p91, %p92
      %p95 = scmp.ne.s32.totalorder %s78, %s94
      %p96 = scmp.eq.s32.totalorder %s28, 0
      %p97 = por %p95, %p96
      %s98 = ssub.s32 %s22, %s29
      %p99 = scmp.eq.s32.totalorder %s98, 0
      %s101 = sadd.s32 %s100, 1
      %s102 = scalar_select %p99, %s100, %s101
      %p105 = pneg %p99
      %p106 = scmp.eq.s32.totalorder %s22, 1
      %p107 = por %p105, %p106
      %p108 = scmp.ne.s32.totalorder %s100, %s103
      %p109 = scmp.eq.s32.totalorder %s22, 0
      %p110 = por %p108, %p109
      %p111 = scmp.ne.s32.totalorder %s100, %s103
      %p112 = scmp.eq.s32.totalorder %s27, 1
      %p113 = por %p111, %p112
      %p114 = scmp.ne.s32.totalorder %s103, %s104
      %p115 = scmp.eq.s32.totalorder %s27, 0
      %p116 = por %p114, %p115
      %p117 = scmp.ne.s32.totalorder %s103, %s104
      %p118 = scmp.eq.s32.totalorder %s28, 1
      %p119 = por %p117, %p118
      %p121 = scmp.ne.s32.totalorder %s104, %s120
      %p122 = scmp.eq.s32.totalorder %s28, 0
      %p123 = por %p121, %p122
      %s124 = ssub.s32 %s22, %s29
      %p125 = scmp.eq.s32.totalorder %s124, 0
      %s127 = sadd.s32 %s126, 1
      %s128 = scalar_select %p125, %s126, %s127
      %p131 = pneg %p125
      %p132 = scmp.eq.s32.totalorder %s22, 1
      %p133 = por %p131, %p132
      %p134 = scmp.ne.s32.totalorder %s126, %s129
      %p135 = scmp.eq.s32.totalorder %s22, 0
      %p136 = por %p134, %p135
      %p137 = scmp.ne.s32.totalorder %s126, %s129
      %p138 = scmp.eq.s32.totalorder %s27, 1
      %p139 = por %p137, %p138
      %p140 = scmp.ne.s32.totalorder %s129, %s130
      %p141 = scmp.eq.s32.totalorder %s27, 0
      %p142 = por %p140, %p141
      %p143 = scmp.ne.s32.totalorder %s129, %s130
      %p144 = scmp.eq.s32.totalorder %s28, 1
      %p145 = por %p143, %p144
      %p147 = scmp.ne.s32.totalorder %s130, %s146
      %p148 = scmp.eq.s32.totalorder %s28, 0
      %p149 = por %p147, %p148
      %s150 = ssub.s32 %s22, %s29
      %p151 = scmp.eq.s32.totalorder %s150, 0
      %s153 = sadd.s32 %s152, 1
      %s154 = scalar_select %p151, %s152, %s153
      %p157 = pneg %p151
      %p158 = scmp.eq.s32.totalorder %s22, 1
      %p159 = por %p157, %p158
      %p160 = scmp.ne.s32.totalorder %s152, %s155
      %p161 = scmp.eq.s32.totalorder %s22, 0
      %p162 = por %p160, %p161
      %p163 = scmp.ne.s32.totalorder %s152, %s155
      %p164 = scmp.eq.s32.totalorder %s27, 1
      %p165 = por %p163, %p164
      %p166 = scmp.ne.s32.totalorder %s155, %s156
      %p167 = scmp.eq.s32.totalorder %s27, 0
      %p168 = por %p166, %p167
      %p169 = scmp.ne.s32.totalorder %s155, %s156
      %p170 = scmp.eq.s32.totalorder %s28, 1
      %p171 = por %p169, %p170
      %p173 = scmp.ne.s32.totalorder %s156, %s172
      %p174 = scmp.eq.s32.totalorder %s28, 0
      %p175 = por %p173, %p174
      %s177 = sadd.s32 %s176, 1
      %p180 = scmp.eq.s32.totalorder %s22, 1
      %p181 = scmp.ne.s32.totalorder %s176, %s178
      %p182 = scmp.eq.s32.totalorder %s22, 0
      %p183 = por %p181, %p182
      %p184 = scmp.ne.s32.totalorder %s176, %s178
      %p185 = scmp.eq.s32.totalorder %s27, 1
      %p186 = por %p184, %p185
      %p187 = scmp.ne.s32.totalorder %s178, %s179
      %p188 = scmp.eq.s32.totalorder %s27, 0
      %p189 = por %p187, %p188
      %p190 = scmp.ne.s32.totalorder %s178, %s179
      %p191 = scmp.eq.s32.totalorder %s28, 1
      %p192 = por %p190, %p191
      %p194 = scmp.ne.s32.totalorder %s179, %s193
      %p195 = scmp.eq.s32.totalorder %s28, 0
      %p196 = por %p194, %p195
      %s198 = sadd.s32 %s197, 1
      %p201 = scmp.eq.s32.totalorder %s22, 1
      %p202 = scmp.ne.s32.totalorder %s197, %s199
      %p203 = scmp.eq.s32.totalorder %s22, 0
      %p204 = por %p202, %p203
      %p205 = scmp.ne.s32.totalorder %s197, %s199
      %p206 = scmp.eq.s32.totalorder %s27, 1
      %p207 = por %p205, %p206
      %p208 = scmp.ne.s32.totalorder %s199, %s200
      %p209 = scmp.eq.s32.totalorder %s27, 0
      %p210 = por %p208, %p209
      %p211 = scmp.ne.s32.totalorder %s199, %s200
      %p212 = scmp.eq.s32.totalorder %s28, 1
      %p213 = por %p211, %p212
      %p215 = scmp.ne.s32.totalorder %s200, %s214
      %p216 = scmp.eq.s32.totalorder %s28, 0
      %p217 = por %p215, %p216
      %s219 = sadd.s32 %s218, 1
      %p222 = scmp.eq.s32.totalorder %s22, 1
      %p223 = scmp.ne.s32.totalorder %s218, %s220
      %p224 = scmp.eq.s32.totalorder %s22, 0
      %p225 = por %p223, %p224
      %p226 = scmp.ne.s32.totalorder %s218, %s220
      %p227 = scmp.eq.s32.totalorder %s27, 1
      %p228 = por %p226, %p227
      %p229 = scmp.ne.s32.totalorder %s220, %s221
      %p230 = scmp.eq.s32.totalorder %s27, 0
      %p231 = por %p229, %p230
      %p232 = scmp.ne.s32.totalorder %s220, %s221
      %p233 = scmp.eq.s32.totalorder %s28, 1
      %p234 = por %p232, %p233
      %p236 = scmp.ne.s32.totalorder %s221, %s235
      %p237 = scmp.eq.s32.totalorder %s28, 0
      %p238 = por %p236, %p237
      %p239 = scmp.le.s32.totalorder 1, %s22
      %p240 = scmp.lt.s32.totalorder %s22, 3
      %p241 = pnand %p239, %p240
      %p242 = pneg %p241
      // Predicated region
      $region9: #{tpu_custom_call.1} parent=5 // pred_check
        _
      $region10: #{tpu_custom_call.1} parent=5 // pred_check_branch
        %244 = sbr.rel (%p241) target = $region12
      $region11: #{tpu_custom_call.1} parent=5 // pred_region
        %s245 = ssub.s32 %s22, 1
        // Predicated region
        $region13: #{tpu_custom_call.1} parent=11 // pred_check
          %p246 = pneg %p43
        $region14: #{tpu_custom_call.1} parent=11 // pred_check_branch
          %248 = sbr.rel (%p246) target = $region16
        $region15: #{tpu_custom_call.1} parent=11 // pred_region
          _
        $region16: #{tpu_custom_call.1} parent=11 // pred_fallthru
          _
        // Predicated region
        $region17: #{tpu_custom_call.1} parent=11 // pred_check
          %p249 = pneg %p64
        $region18: #{tpu_custom_call.1} parent=11 // pred_check_branch
          %251 = sbr.rel (%p249) target = $region20
        $region19: #{tpu_custom_call.1} parent=11 // pred_region
          _
        $region20: #{tpu_custom_call.1} parent=11 // pred_fallthru
          _
        // Predicated region
        $region21: #{tpu_custom_call.1} parent=11 // pred_check
          %p252 = pneg %p189
        $region22: #{tpu_custom_call.1} parent=11 // pred_check_branch
          %254 = sbr.rel (%p252) target = $region24
        $region23: #{tpu_custom_call.1} parent=11 // pred_region
          %s256 = ssub.s32 512, 512
          %257 = vsyncadd [#allocation10], %s256
          %s258 = sshll.u32 [#allocation9], 4
          %s259 = int_to_ptr.vmem [resolvable:$true] %s258
          %264 = dma.hbm_to_vmem [thread:$0]  %s6, 512, %s259, [#allocation10], 128, 128, 8
        $region24: #{tpu_custom_call.1} parent=11 // pred_fallthru
          _
        // Predicated region
        $region25: #{tpu_custom_call.1} parent=11 // pred_check
          %p265 = pneg %p210
        $region26: #{tpu_custom_call.1} parent=11 // pred_check_branch
          %267 = sbr.rel (%p265) target = $region28
        $region27: #{tpu_custom_call.1} parent=11 // pred_region
          _
        $region28: #{tpu_custom_call.1} parent=11 // pred_fallthru
          _
      $region12: #{tpu_custom_call.1} parent=5 // pred_fallthru
        _
      %p268 = scmp.lt.s32.totalorder %s22, 2
      // Predicated region
      $region29: #{tpu_custom_call.1} parent=5 // pred_check
        %p269 = pneg %p268
      $region30: #{tpu_custom_call.1} parent=5 // pred_check_branch
        %271 = sbr.rel (%p269) target = $region32
      $region31: #{tpu_custom_call.1} parent=5 // pred_region
        // Predicated region
        $region33: #{tpu_custom_call.1} parent=31 // pred_check
          %p272 = pneg %p84
        $region34: #{tpu_custom_call.1} parent=31 // pred_check_branch
          %274 = sbr.rel (%p272) target = $region36
        $region35: #{tpu_custom_call.1} parent=31 // pred_region
          %p275 = scmp.lt.s32.totalorder %s22, 1
          %s276 = scalar_select %p275, %s22, 1
          %s277 = smul.addr %s276, 9
          %s278 = smul.addr %s277, 8
          %s279 = scalar_lea.vmem %s2, %s278
        $region36: #{tpu_custom_call.1} parent=31 // pred_fallthru
          _
        // Predicated region
        $region37: #{tpu_custom_call.1} parent=31 // pred_check
          %p280 = pneg %p110
        $region38: #{tpu_custom_call.1} parent=31 // pred_check_branch
          %282 = sbr.rel (%p280) target = $region40
        $region39: #{tpu_custom_call.1} parent=31 // pred_region
          %s283 = sand.u32 %s100, 1
          %s284 = scalar_lea.sflag [#allocation4], %s283
          %s285 = sand.u32 %s100, 1
          %s286 = smul.addr %s285, 16
          %s287 = scalar_lea.vmem [#allocation3], %s286
          %s289 = ssub.s32 256, 256
          %290 = vsyncadd %s284, %s289
          %s291 = smul.addr %s22, 16
          %s292 = smul.addr %s291, 16
          %s293 = scalar_lea.hbm %s3, %s292
          %s295 = sshll.u32 %s287, 4
          %s296 = int_to_ptr.vmem [resolvable:$true] %s295
          %298 = dma.hbm_to_vmem [thread:$0]  %s293, 256, %s296, %s284
        $region40: #{tpu_custom_call.1} parent=31 // pred_fallthru
          _
        // Predicated region
        $region41: #{tpu_custom_call.1} parent=31 // pred_check
          %p299 = pneg %p136
        $region42: #{tpu_custom_call.1} parent=31 // pred_check_branch
          %301 = sbr.rel (%p299) target = $region44
        $region43: #{tpu_custom_call.1} parent=31 // pred_region
          %s302 = sand.u32 %s22, 1
          %s303 = scalar_lea.sflag [#allocation7], %s302
          %s304 = sand.u32 %s126, 1
          %s305 = smul.addr %s304, 256
          %s306 = scalar_lea.vmem [#allocation6], %s305
          %s308 = ssub.s32 4096, 4096
          %309 = vsyncadd %s303, %s308
          %s310 = smul.addr %s22, 64
          %s311 = smul.addr %s310, 64
          %s312 = scalar_lea.hbm %s4, %s311
          %s313 = sshll.u32 %s306, 4
          %s314 = int_to_ptr.vmem [resolvable:$true] %s313
          %319 = dma.hbm_to_vmem [thread:$0]  %s312, 4096, %s314, %s303, 1024, 1024, 64
        $region44: #{tpu_custom_call.1} parent=31 // pred_fallthru
          _
        // Predicated region
        $region45: #{tpu_custom_call.1} parent=31 // pred_check
          %p320 = pneg %p162
        $region46: #{tpu_custom_call.1} parent=31 // pred_check_branch
          %322 = sbr.rel (%p320) target = $region48
        $region47: #{tpu_custom_call.1} parent=31 // pred_region
          %s323 = sand.u32 %s22, 1
          %s324 = scalar_lea.sflag [#allocation7], %s323
          %s325 = sand.u32 %s152, 1
          %s326 = smul.addr %s325, 256
          %s327 = scalar_lea.vmem [#allocation8], %s326
          %s329 = ssub.s32 4096, 4096
          %330 = vsyncadd %s324, %s329
          %s331 = smul.addr %s22, 64
          %s332 = smul.addr %s331, 64
          %s333 = scalar_lea.hbm %s5, %s332
          %s334 = sshll.u32 %s327, 4
          %s335 = int_to_ptr.vmem [resolvable:$true] %s334
          %340 = dma.hbm_to_vmem [thread:$0]  %s333, 4096, %s335, %s324, 1024, 1024, 64
        $region48: #{tpu_custom_call.1} parent=31 // pred_fallthru
          _
      $region32: #{tpu_custom_call.1} parent=5 // pred_fallthru
        _
      %p341 = scmp.le.s32.totalorder 1, %s22
      %p342 = scmp.lt.s32.totalorder %s22, 3
      %p343 = pnand %p341, %p342
      %p344 = pneg %p343
      // Predicated region
      $region49: #{tpu_custom_call.1} parent=5 // pred_check
        _
      $region50: #{tpu_custom_call.1} parent=5 // pred_check_branch
        %346 = sbr.rel (%p343) target = $region52
      $region51: #{tpu_custom_call.1} parent=5 // pred_region
        %s347 = ssub.s32 %s22, 1
        %s348 = sand.u32 %s103, 1
        %s349 = scalar_lea.sflag [#allocation4], %s348
        %s350 = sand.u32 %s103, 1
        %s351 = smul.addr %s350, 16
        %s352 = scalar_lea.vmem [#allocation3], %s351
        // Predicated region
        $region53: #{tpu_custom_call.1} parent=51 // pred_check
          %p353 = pneg %p116
        $region54: #{tpu_custom_call.1} parent=51 // pred_check_branch
          %355 = sbr.rel (%p353) target = $region56
        $region55: #{tpu_custom_call.1} parent=51 // pred_region
          %356 = dma.done %s349, 256
        $region56: #{tpu_custom_call.1} parent=51 // pred_fallthru
          _
        %s357 = sand.u32 %s27, 1
        %s358 = scalar_lea.sflag [#allocation7], %s357
        %s359 = sand.u32 %s129, 1
        %s360 = smul.addr %s359, 256
        %s361 = scalar_lea.vmem [#allocation6], %s360
        // Predicated region
        $region57: #{tpu_custom_call.1} parent=51 // pred_check
          %p362 = pneg %p142
        $region58: #{tpu_custom_call.1} parent=51 // pred_check_branch
          %364 = sbr.rel (%p362) target = $region60
        $region59: #{tpu_custom_call.1} parent=51 // pred_region
          %365 = dma.done %s358, 4096
        $region60: #{tpu_custom_call.1} parent=51 // pred_fallthru
          _
        %s366 = sand.u32 %s27, 1
        %s367 = scalar_lea.sflag [#allocation7], %s366
        %s368 = sand.u32 %s155, 1
        %s369 = smul.addr %s368, 256
        %s370 = scalar_lea.vmem [#allocation8], %s369
        // Predicated region
        $region61: #{tpu_custom_call.1} parent=51 // pred_check
          %p371 = pneg %p168
        $region62: #{tpu_custom_call.1} parent=51 // pred_check_branch
          %373 = sbr.rel (%p371) target = $region64
        $region63: #{tpu_custom_call.1} parent=51 // pred_region
          %374 = dma.done %s367, 4096
        $region64: #{tpu_custom_call.1} parent=51 // pred_fallthru
          _
        // Predicated region
        $region65: #{tpu_custom_call.1} parent=51 // pred_check
          %p375 = pneg %p189
        $region66: #{tpu_custom_call.1} parent=51 // pred_check_branch
          %377 = sbr.rel (%p375) target = $region68
        $region67: #{tpu_custom_call.1} parent=51 // pred_region
          %378 = dma.done [#allocation10], 512
        $region68: #{tpu_custom_call.1} parent=51 // pred_fallthru
          _
        %p379 = pneg %p43
        %p380 = pneg %p40
        %p381 = pneg %p64
        %p382 = pneg %p61
        %p383 = scmp.lt.s32.totalorder %s27, 1
        %s384 = scalar_select %p383, %s27, 1
        %s385 = smul.addr %s384, 9
        %s386 = smul.addr %s385, 8
        %s387 = scalar_lea.vmem %s2, %s386
        %p388 = pneg %p90
        %p389 = pneg %p87
        %s390 = sand.u32 %s103, 1
        %s391 = scalar_lea.sflag [#allocation4], %s390
        %s392 = sand.u32 %s103, 1
        %s393 = smul.addr %s392, 16
        %s394 = scalar_lea.vmem [#allocation3], %s393
        %p395 = pneg %p116
        %p396 = pneg %p113
        %s397 = sand.u32 %s27, 1
        %s398 = scalar_lea.sflag [#allocation7], %s397
        %s399 = sand.u32 %s129, 1
        %s400 = smul.addr %s399, 256
        %s401 = scalar_lea.vmem [#allocation6], %s400
        %p402 = pneg %p142
        %p403 = pneg %p139
        %s404 = sand.u32 %s27, 1
        %s405 = scalar_lea.sflag [#allocation7], %s404
        %s406 = sand.u32 %s155, 1
        %s407 = smul.addr %s406, 256
        %s408 = scalar_lea.vmem [#allocation8], %s407
        %p409 = pneg %p168
        %p410 = pneg %p165
        %p411 = pneg %p189
        %p412 = pneg %p186
        %p413 = pneg %p210
        %p414 = pneg %p207
        %p415 = pneg %p231
        %p416 = pneg %p228
        %p417 = scmp.lt.s32.totalorder %s27, 1
        %s418 = scalar_select %p417, %s27, 1
        %s419 = smul.addr %s418, 9
        %s420 = smul.addr %s419, 8
        %s421 = scalar_lea.vmem %s2, %s420
        %p423 = scmp.eq.s32.totalorder %s27, 0
        // Predicated region
        $region69: #{tpu_custom_call.1} parent=51 // pred_check
          %p424 = pneg %p423
        $region70: #{tpu_custom_call.1} parent=51 // pred_check_branch
          %426 = sbr.rel (%p424) target = $region72
        $region71: #{tpu_custom_call.1} parent=51 // pred_region
          %v427 = vld [vmem:[%s0] sm:$0xff]
          %v428 = vld [vmem:[%s0 + $0x8] sm:$0xff]
          %v429 = vld [vmem:[%s1] sm:$0xff]
          %v430 = vld [vmem:[%s1 + $0x8] sm:$0xff]
          %v431 = vld [vmem:[%s1 + $0x10] sm:$0xff]
          %v432 = vld [vmem:[%s1 + $0x18] sm:$0xff]
          %v433 = vld [vmem:[%s1 + $0x20] sm:$0xff]
          %v434 = vld [vmem:[%s1 + $0x28] sm:$0xff]
          %v435 = vld [vmem:[%s1 + $0x30] sm:$0xff]
          %v436 = vld [vmem:[%s1 + $0x38] sm:$0xff]
          %v437 = vld [vmem:[%s1 + $0x40] sm:$0xff]
          %v438 = vld [vmem:[%s1 + $0x48] sm:$0xff]
          %v439 = vld [vmem:[%s1 + $0x50] sm:$0xff]
          %v440 = vld [vmem:[%s1 + $0x58] sm:$0xff]
          %v441 = vld [vmem:[%s1 + $0x60] sm:$0xff]
          %v442 = vld [vmem:[%s1 + $0x68] sm:$0xff]
          %v443 = vld [vmem:[%s1 + $0x70] sm:$0xff]
          %v444 = vld [vmem:[%s1 + $0x78] sm:$0xff]
          %445 = vmatprep.subr.mxu0 0.0
          %446 = vmatpush1.msra.mxu0 %v444
          %447 = vmatprep.subr.mxu0 0.0
          %448 = vmatpush1.msra.mxu0 %v443
          %449 = vmatprep.subr.mxu0 0.0
          %450 = vmatpush1.msra.mxu0 %v442
          %451 = vmatprep.subr.mxu0 0.0
          %452 = vmatpush1.msra.mxu0 %v441
          %453 = vmatprep.subr.mxu0 0.0
          %454 = vmatpush1.msra.mxu0 %v440
          %455 = vmatprep.subr.mxu0 0.0
          %456 = vmatpush1.msra.mxu0 %v439
          %457 = vmatprep.subr.mxu0 0.0
          %458 = vmatpush1.msra.mxu0 %v438
          %459 = vmatprep.subr.mxu0 0.0
          %460 = vmatpush1.msra.mxu0 %v437
          %461 = vmatprep.subr.mxu0 0.0
          %462 = vmatpush1.msra.mxu0 %v436
          %463 = vmatprep.subr.mxu0 0.0
          %464 = vmatpush1.msra.mxu0 %v435
          %465 = vmatprep.subr.mxu0 0.0
          %466 = vmatpush1.msra.mxu0 %v434
          %467 = vmatprep.subr.mxu0 0.0
          %468 = vmatpush1.msra.mxu0 %v433
          %469 = vmatprep.subr.mxu0 0.0
          %470 = vmatpush1.msra.mxu0 %v432
          %471 = vmatprep.subr.mxu0 0.0
          %472 = vmatpush1.msra.mxu0 %v431
          %473 = vmatprep.subr.mxu0 0.0
          %474 = vmatpush1.msra.mxu0 %v430
          %475 = vmatprep.subr.mxu0 0.0
          %476 = vmatpush1.msra.mxu0 %v429
          %477 = vmatprep.subr.mxu0 0.0
          %478 = vmatpush2.msra.mxu0 0.0
          %479 = vmatprep.subr.mxu0 0.0
          %480 = vmatpush2.msra.mxu0 0.0
          %481 = vmatprep.subr.mxu0 0.0
          %482 = vmatpush2.msra.mxu0 0.0
          %483 = vmatprep.subr.mxu0 0.0
          %484 = vmatpush2.msra.mxu0 0.0
          %485 = vmatprep.subr.mxu0 0.0
          %486 = vmatpush2.msra.mxu0 0.0
          %487 = vmatprep.subr.mxu0 0.0
          %488 = vmatpush2.msra.mxu0 0.0
          %489 = vmatprep.subr.mxu0 0.0
          %490 = vmatpush2.msra.mxu0 0.0
          %491 = vmatprep.subr.mxu0 0.0
          %492 = vmatpush2.msra.mxu0 0.0
          %493 = vmatprep.subr.mxu0 0.0
          %494 = vmatpush2.msra.mxu0 0.0
          %495 = vmatprep.subr.mxu0 0.0
          %496 = vmatpush2.msra.mxu0 0.0
          %497 = vmatprep.subr.mxu0 0.0
          %498 = vmatpush2.msra.mxu0 0.0
          %499 = vmatprep.subr.mxu0 0.0
          %500 = vmatpush2.msra.mxu0 0.0
          %501 = vmatprep.subr.mxu0 0.0
          %502 = vmatpush2.msra.mxu0 0.0
          %503 = vmatprep.subr.mxu0 0.0
          %504 = vmatpush2.msra.mxu0 0.0
          %505 = vmatprep.subr.mxu0 0.0
          %506 = vmatpush2.msra.mxu0 0.0
          %507 = vmatprep.subr.mxu0 0.0
          %508 = vmatpush2.msra.mxu0 0.0
          %509 = vmatprep.mubr.f32.mxu0 0.0
          %510 = vmatmul.mubr.f32.gmra.mxu0 %v427
          %v511 = vpop.f32.mrf.mxu0
          %v512 = vadd.f32 0.0, %v511
          %v513 = vpop.f32.mrf.mxu0
          %514 = vmatprep.mubr.f32.mxu0 0.0
          %515 = vmatmul.mubr.f32.gmra.mxu0 %v428
          %v516 = vpop.f32.mrf.mxu0
          %v517 = vadd.f32 0.0, %v516
          %v518 = vpop.f32.mrf.mxu0
          %519 = vdwg.mxu0
          %vm520 = vcmask 261120
          %521 = vst.msk [vmem:[#allocation2] sm:$0xff] %vm520, %v512
          %522 = vst.msk [vmem:[#allocation2 + $0x8] sm:$0xff] %vm520, %v517
        $region72: #{tpu_custom_call.1} parent=51 // pred_fallthru
          _
        %v523 = vld [vmem:[#allocation2] sm:$0xff]
        %v524 = vld [vmem:[#allocation2 + $0x8] sm:$0xff]
        %v525 = vld [vmem:[%s421] sm:$0xff]
        %v526 = vld [vmem:[%s421 + $0x8] sm:$0xff]
        %v527 = vld [vmem:[%s421 + $0x10] sm:$0xff]
        %v528 = vld [vmem:[%s421 + $0x18] sm:$0xff]
        %v529 = vld [vmem:[%s421 + $0x20] sm:$0xff]
        %v530 = vld [vmem:[%s421 + $0x28] sm:$0xff]
        %v531 = vld [vmem:[%s421 + $0x30] sm:$0xff]
        %v532 = vld [vmem:[%s421 + $0x38] sm:$0xff]
        %v533 = vld [vmem:[%s421 + $0x40] sm:$0xff]
        %v534 = vlaneseq
        %v535 = vshrl.u32 %v534, 7
        %v536 = vsub.s32 0, %v535
        %v537 = vrot.slane %v533, %v536
        %vm538 = vcmask 261120
        %v540 = vsel %vm538, %v523, 0
        %v543 = vsel %vm538, %v524, 0
        %545 = vmatprep.subr.mxu0 0.0
        %546 = vmatpush1.msra.mxu0 0.0
        %547 = vmatprep.subr.mxu0 0.0
        %548 = vmatpush1.msra.mxu0 0.0
        %549 = vmatprep.subr.mxu0 0.0
        %550 = vmatpush1.msra.mxu0 0.0
        %551 = vmatprep.subr.mxu0 0.0
        %552 = vmatpush1.msra.mxu0 0.0
        %553 = vmatprep.subr.mxu0 0.0
        %554 = vmatpush1.msra.mxu0 0.0
        %555 = vmatprep.subr.mxu0 0.0
        %556 = vmatpush1.msra.mxu0 0.0
        %557 = vmatprep.subr.mxu0 0.0
        %558 = vmatpush1.msra.mxu0 0.0
        %559 = vmatprep.subr.mxu0 0.0
        %560 = vmatpush1.msra.mxu0 0.0
        %561 = vmatprep.subr.mxu0 0.0
        %562 = vmatpush1.msra.mxu0 0.0
        %563 = vmatprep.subr.mxu0 0.0
        %564 = vmatpush1.msra.mxu0 0.0
        %565 = vmatprep.subr.mxu0 0.0
        %566 = vmatpush1.msra.mxu0 0.0
        %567 = vmatprep.subr.mxu0 0.0
        %568 = vmatpush1.msra.mxu0 0.0
        %569 = vmatprep.subr.mxu0 0.0
        %570 = vmatpush1.msra.mxu0 %v528
        %571 = vmatprep.subr.mxu0 0.0
        %572 = vmatpush1.msra.mxu0 %v527
        %573 = vmatprep.subr.mxu0 0.0
        %574 = vmatpush1.msra.mxu0 %v526
        %575 = vmatprep.subr.mxu0 0.0
        %576 = vmatpush1.msra.mxu0 %v525
        %577 = vmatprep.subr.mxu0 0.0
        %578 = vmatpush2.msra.mxu0 0.0
        %579 = vmatprep.subr.mxu0 0.0
        %580 = vmatpush2.msra.mxu0 0.0
        %581 = vmatprep.subr.mxu0 0.0
        %582 = vmatpush2.msra.mxu0 0.0
        %583 = vmatprep.subr.mxu0 0.0
        %584 = vmatpush2.msra.mxu0 0.0
        %585 = vmatprep.subr.mxu0 0.0
        %586 = vmatpush2.msra.mxu0 0.0
        %587 = vmatprep.subr.mxu0 0.0
        %588 = vmatpush2.msra.mxu0 0.0
        %589 = vmatprep.subr.mxu0 0.0
        %590 = vmatpush2.msra.mxu0 0.0
        %591 = vmatprep.subr.mxu0 0.0
        %592 = vmatpush2.msra.mxu0 0.0
        %593 = vmatprep.subr.mxu0 0.0
        %594 = vmatpush2.msra.mxu0 0.0
        %595 = vmatprep.subr.mxu0 0.0
        %596 = vmatpush2.msra.mxu0 0.0
        %597 = vmatprep.subr.mxu0 0.0
        %598 = vmatpush2.msra.mxu0 0.0
        %599 = vmatprep.subr.mxu0 0.0
        %600 = vmatpush2.msra.mxu0 0.0
        %601 = vmatprep.subr.mxu0 0.0
        %602 = vmatpush2.msra.mxu0 0.0
        %603 = vmatprep.subr.mxu0 0.0
        %604 = vmatpush2.msra.mxu0 0.0
        %605 = vmatprep.subr.mxu0 0.0
        %606 = vmatpush2.msra.mxu0 0.0
        %607 = vmatprep.subr.mxu0 0.0
        %608 = vmatpush2.msra.mxu0 0.0
        %609 = vmatprep.mubr.f32.mxu0 0.0
        %610 = vmatmul.mubr.f32.gmra.mxu0 %v540
        %v611 = vpop.f32.mrf.mxu0
        %v612 = vadd.f32 %v537, %v611
        %v613 = vpop.f32.mrf.mxu0
        %614 = vmatprep.mubr.f32.mxu0 0.0
        %615 = vmatmul.mubr.f32.gmra.mxu0 %v543
        %v616 = vpop.f32.mrf.mxu0
        %v617 = vadd.f32 %v537, %v616
        %v618 = vpop.f32.mrf.mxu0
        %619 = vdwg.mxu0
        %621 = vrot.lane.b32.xlu0 %v612, 96
        %v622 = vpop.permute.xlu0 %621
        %vm623 = vcmask 64512
        %v624 = vsel %vm623, %v612, 0
        %v626 = vsel %vm623, %v622, 0
        %628 = vmatprep.subr.mxu0 0.0
        %629 = vmatpush1.xpose.msra.mxu0 0.0
        %630 = vmatprep.subr.mxu0 0.0
        %631 = vmatpush1.xpose.msra.mxu0 0.0
        %632 = vmatprep.subr.mxu0 0.0
        %633 = vmatpush1.xpose.msra.mxu0 0.0
        %634 = vmatprep.subr.mxu0 0.0
        %635 = vmatpush1.xpose.msra.mxu0 0.0
        %636 = vmatprep.subr.mxu0 0.0
        %637 = vmatpush1.xpose.msra.mxu0 0.0
        %638 = vmatprep.subr.mxu0 0.0
        %639 = vmatpush1.xpose.msra.mxu0 0.0
        %640 = vmatprep.subr.mxu0 0.0
        %641 = vmatpush1.xpose.msra.mxu0 0.0
        %642 = vmatprep.subr.mxu0 0.0
        %643 = vmatpush1.xpose.msra.mxu0 0.0
        %644 = vmatprep.subr.mxu0 0.0
        %645 = vmatpush1.xpose.msra.mxu0 0.0
        %646 = vmatprep.subr.mxu0 0.0
        %647 = vmatpush1.xpose.msra.mxu0 0.0
        %648 = vmatprep.subr.mxu0 0.0
        %649 = vmatpush1.xpose.msra.mxu0 0.0
        %650 = vmatprep.subr.mxu0 0.0
        %651 = vmatpush1.xpose.msra.mxu0 0.0
        %652 = vmatprep.subr.mxu0 0.0
        %653 = vmatpush1.xpose.msra.mxu0 0.0
        %654 = vmatprep.subr.mxu0 0.0
        %655 = vmatpush1.xpose.msra.mxu0 0.0
        %656 = vmatprep.subr.mxu0 0.0
        %657 = vmatpush1.xpose.msra.mxu0 0.0
        %658 = vmatprep.subr.mxu0 0.0
        %659 = vmatpush1.xpose.msra.mxu0 %v626
        %660 = vmatprep.subr.mxu0 0.0
        %661 = vmatpush2.xpose.msra.mxu0 0.0
        %662 = vmatprep.subr.mxu0 0.0
        %663 = vmatpush2.xpose.msra.mxu0 0.0
        %664 = vmatprep.subr.mxu0 0.0
        %665 = vmatpush2.xpose.msra.mxu0 0.0
        %666 = vmatprep.subr.mxu0 0.0
        %667 = vmatpush2.xpose.msra.mxu0 0.0
        %668 = vmatprep.subr.mxu0 0.0
        %669 = vmatpush2.xpose.msra.mxu0 0.0
        %670 = vmatprep.subr.mxu0 0.0
        %671 = vmatpush2.xpose.msra.mxu0 0.0
        %672 = vmatprep.subr.mxu0 0.0
        %673 = vmatpush2.xpose.msra.mxu0 0.0
        %674 = vmatprep.subr.mxu0 0.0
        %675 = vmatpush2.xpose.msra.mxu0 0.0
        %676 = vmatprep.subr.mxu0 0.0
        %677 = vmatpush2.xpose.msra.mxu0 0.0
        %678 = vmatprep.subr.mxu0 0.0
        %679 = vmatpush2.xpose.msra.mxu0 0.0
        %680 = vmatprep.subr.mxu0 0.0
        %681 = vmatpush2.xpose.msra.mxu0 0.0
        %682 = vmatprep.subr.mxu0 0.0
        %683 = vmatpush2.xpose.msra.mxu0 0.0
        %684 = vmatprep.subr.mxu0 0.0
        %685 = vmatpush2.xpose.msra.mxu0 0.0
        %686 = vmatprep.subr.mxu0 0.0
        %687 = vmatpush2.xpose.msra.mxu0 0.0
        %688 = vmatprep.subr.mxu0 0.0
        %689 = vmatpush2.xpose.msra.mxu0 0.0
        %690 = vmatprep.subr.mxu0 0.0
        %691 = vmatpush2.xpose.msra.mxu0 0.0
        %692 = vmatprep.mubr.f32.mxu0 0.0
        %693 = vmatmul.mubr.f32.gmra.mxu0 %v624
        %v694 = vpop.f32.mrf.mxu0
        %v695 = vadd.f32 0.0, %v694
        %v696 = vpop.f32.mrf.mxu0
        %697 = vdwg.mxu0
        %699 = vrot.lane.b32.xlu0 %v617, 96
        %v700 = vpop.permute.xlu0 %699
        %v701 = vsel %vm623, %v617, 0
        %v703 = vsel %vm623, %v700, 0
        %705 = vmatprep.subr.mxu0 0.0
        %706 = vmatpush1.xpose.msra.mxu0 0.0
        %707 = vmatprep.subr.mxu0 0.0
        %708 = vmatpush1.xpose.msra.mxu0 0.0
        %709 = vmatprep.subr.mxu0 0.0
        %710 = vmatpush1.xpose.msra.mxu0 0.0
        %711 = vmatprep.subr.mxu0 0.0
        %712 = vmatpush1.xpose.msra.mxu0 0.0
        %713 = vmatprep.subr.mxu0 0.0
        %714 = vmatpush1.xpose.msra.mxu0 0.0
        %715 = vmatprep.subr.mxu0 0.0
        %716 = vmatpush1.xpose.msra.mxu0 0.0
        %717 = vmatprep.subr.mxu0 0.0
        %718 = vmatpush1.xpose.msra.mxu0 0.0
        %719 = vmatprep.subr.mxu0 0.0
        %720 = vmatpush1.xpose.msra.mxu0 0.0
        %721 = vmatprep.subr.mxu0 0.0
        %722 = vmatpush1.xpose.msra.mxu0 0.0
        %723 = vmatprep.subr.mxu0 0.0
        %724 = vmatpush1.xpose.msra.mxu0 0.0
        %725 = vmatprep.subr.mxu0 0.0
        %726 = vmatpush1.xpose.msra.mxu0 0.0
        %727 = vmatprep.subr.mxu0 0.0
        %728 = vmatpush1.xpose.msra.mxu0 0.0
        %729 = vmatprep.subr.mxu0 0.0
        %730 = vmatpush1.xpose.msra.mxu0 0.0
        %731 = vmatprep.subr.mxu0 0.0
        %732 = vmatpush1.xpose.msra.mxu0 0.0
        %733 = vmatprep.subr.mxu0 0.0
        %734 = vmatpush1.xpose.msra.mxu0 0.0
        %735 = vmatprep.subr.mxu0 0.0
        %736 = vmatpush1.xpose.msra.mxu0 %v703
        %737 = vmatprep.subr.mxu0 0.0
        %738 = vmatpush2.xpose.msra.mxu0 0.0
        %739 = vmatprep.subr.mxu0 0.0
        %740 = vmatpush2.xpose.msra.mxu0 0.0
        %741 = vmatprep.subr.mxu0 0.0
        %742 = vmatpush2.xpose.msra.mxu0 0.0
        %743 = vmatprep.subr.mxu0 0.0
        %744 = vmatpush2.xpose.msra.mxu0 0.0
        %745 = vmatprep.subr.mxu0 0.0
        %746 = vmatpush2.xpose.msra.mxu0 0.0
        %747 = vmatprep.subr.mxu0 0.0
        %748 = vmatpush2.xpose.msra.mxu0 0.0
        %749 = vmatprep.subr.mxu0 0.0
        %750 = vmatpush2.xpose.msra.mxu0 0.0
        %751 = vmatprep.subr.mxu0 0.0
        %752 = vmatpush2.xpose.msra.mxu0 0.0
        %753 = vmatprep.subr.mxu0 0.0
        %754 = vmatpush2.xpose.msra.mxu0 0.0
        %755 = vmatprep.subr.mxu0 0.0
        %756 = vmatpush2.xpose.msra.mxu0 0.0
        %757 = vmatprep.subr.mxu0 0.0
        %758 = vmatpush2.xpose.msra.mxu0 0.0
        %759 = vmatprep.subr.mxu0 0.0
        %760 = vmatpush2.xpose.msra.mxu0 0.0
        %761 = vmatprep.subr.mxu0 0.0
        %762 = vmatpush2.xpose.msra.mxu0 0.0
        %763 = vmatprep.subr.mxu0 0.0
        %764 = vmatpush2.xpose.msra.mxu0 0.0
        %765 = vmatprep.subr.mxu0 0.0
        %766 = vmatpush2.xpose.msra.mxu0 0.0
        %767 = vmatprep.subr.mxu0 0.0
        %768 = vmatpush2.xpose.msra.mxu0 0.0
        %769 = vmatprep.mubr.f32.mxu0 0.0
        %770 = vmatmul.mubr.f32.gmra.mxu0 %v701
        %v771 = vpop.f32.mrf.mxu0
        %v772 = vadd.f32 0.0, %v771
        %v773 = vpop.f32.mrf.mxu0
        %774 = vdwg.mxu0
        %v775 = vmul.f32 %v695, 0.35355338
        %v776 = vmul.f32 %v772, 0.35355338
        %v777 = vsel %vm623, %v775, -inf
        %778 = vmax.xlane.f32.xlu0 %v777
        %v779 = vpop.xlane.xlu0 %778
        %v780 = vsel %vm623, %v776, -inf
        %781 = vmax.xlane.f32.xlu0 %v780
        %v782 = vpop.xlane.xlu0 %781
        %v783 = vsub.f32 %v775, %v779
        %v784 = vsub.f32 %v776, %v782
        %v785 = vmul.f32 %v783, 1.442695
        %v786 = vpow.pop %v785
        %v787 = vmul.f32 %v784, 1.442695
        %v788 = vpow.pop %v787
        %v789 = vsel %vm623, %v786, 0.0
        %790 = vadd.xlane.f32.xlu0 %v789
        %v791 = vpop.xlane.xlu0 %790
        %v792 = vsel %vm623, %v788, 0.0
        %793 = vadd.xlane.f32.xlu0 %v792
        %v794 = vpop.xlane.xlu0 %793
        %v795 = vrcp.pop %v791
        %v796 = vmul.f32 %v786, %v795
        %v797 = vrcp.pop %v794
        %v798 = vmul.f32 %v788, %v797
        %799 = vrot.lane.b32.xlu0 %v612, 64
        %v800 = vpop.permute.xlu0 %799
        %v803 = vsel %vm623, %v796, 0
        %805 = vmatprep.subr.mxu0 0.0
        %806 = vmatpush1.msra.mxu0 0.0
        %807 = vmatprep.subr.mxu0 0.0
        %808 = vmatpush1.msra.mxu0 0.0
        %809 = vmatprep.subr.mxu0 0.0
        %810 = vmatpush1.msra.mxu0 0.0
        %811 = vmatprep.subr.mxu0 0.0
        %812 = vmatpush1.msra.mxu0 0.0
        %813 = vmatprep.subr.mxu0 0.0
        %814 = vmatpush1.msra.mxu0 0.0
        %815 = vmatprep.subr.mxu0 0.0
        %816 = vmatpush1.msra.mxu0 0.0
        %817 = vmatprep.subr.mxu0 0.0
        %818 = vmatpush1.msra.mxu0 0.0
        %819 = vmatprep.subr.mxu0 0.0
        %820 = vmatpush1.msra.mxu0 0.0
        %821 = vmatprep.subr.mxu0 0.0
        %822 = vmatpush1.msra.mxu0 0.0
        %823 = vmatprep.subr.mxu0 0.0
        %824 = vmatpush1.msra.mxu0 0.0
        %825 = vmatprep.subr.mxu0 0.0
        %826 = vmatpush1.msra.mxu0 0.0
        %827 = vmatprep.subr.mxu0 0.0
        %828 = vmatpush1.msra.mxu0 0.0
        %829 = vmatprep.subr.mxu0 0.0
        %830 = vmatpush1.msra.mxu0 0.0
        %831 = vmatprep.subr.mxu0 0.0
        %832 = vmatpush1.msra.mxu0 0.0
        %833 = vmatprep.subr.mxu0 0.0
        %834 = vmatpush1.msra.mxu0 0.0
        %835 = vmatprep.subr.mxu0 0.0
        %836 = vmatpush1.msra.mxu0 %v800
        %837 = vmatprep.subr.mxu0 0.0
        %838 = vmatpush2.msra.mxu0 0.0
        %839 = vmatprep.subr.mxu0 0.0
        %840 = vmatpush2.msra.mxu0 0.0
        %841 = vmatprep.subr.mxu0 0.0
        %842 = vmatpush2.msra.mxu0 0.0
        %843 = vmatprep.subr.mxu0 0.0
        %844 = vmatpush2.msra.mxu0 0.0
        %845 = vmatprep.subr.mxu0 0.0
        %846 = vmatpush2.msra.mxu0 0.0
        %847 = vmatprep.subr.mxu0 0.0
        %848 = vmatpush2.msra.mxu0 0.0
        %849 = vmatprep.subr.mxu0 0.0
        %850 = vmatpush2.msra.mxu0 0.0
        %851 = vmatprep.subr.mxu0 0.0
        %852 = vmatpush2.msra.mxu0 0.0
        %853 = vmatprep.subr.mxu0 0.0
        %854 = vmatpush2.msra.mxu0 0.0
        %855 = vmatprep.subr.mxu0 0.0
        %856 = vmatpush2.msra.mxu0 0.0
        %857 = vmatprep.subr.mxu0 0.0
        %858 = vmatpush2.msra.mxu0 0.0
        %859 = vmatprep.subr.mxu0 0.0
        %860 = vmatpush2.msra.mxu0 0.0
        %861 = vmatprep.subr.mxu0 0.0
        %862 = vmatpush2.msra.mxu0 0.0
        %863 = vmatprep.subr.mxu0 0.0
        %864 = vmatpush2.msra.mxu0 0.0
        %865 = vmatprep.subr.mxu0 0.0
        %866 = vmatpush2.msra.mxu0 0.0
        %867 = vmatprep.subr.mxu0 0.0
        %868 = vmatpush2.msra.mxu0 0.0
        %869 = vmatprep.mubr.f32.mxu0 0.0
        %870 = vmatmul.mubr.f32.gmra.mxu0 %v803
        %v871 = vpop.f32.mrf.mxu0
        %v872 = vadd.f32 0.0, %v871
        %v873 = vpop.f32.mrf.mxu0
        %874 = vdwg.mxu0
        %875 = vrot.lane.b32.xlu0 %v617, 64
        %v876 = vpop.permute.xlu0 %875
        %v879 = vsel %vm623, %v798, 0
        %881 = vmatprep.subr.mxu0 0.0
        %882 = vmatpush1.msra.mxu0 0.0
        %883 = vmatprep.subr.mxu0 0.0
        %884 = vmatpush1.msra.mxu0 0.0
        %885 = vmatprep.subr.mxu0 0.0
        %886 = vmatpush1.msra.mxu0 0.0
        %887 = vmatprep.subr.mxu0 0.0
        %888 = vmatpush1.msra.mxu0 0.0
        %889 = vmatprep.subr.mxu0 0.0
        %890 = vmatpush1.msra.mxu0 0.0
        %891 = vmatprep.subr.mxu0 0.0
        %892 = vmatpush1.msra.mxu0 0.0
        %893 = vmatprep.subr.mxu0 0.0
        %894 = vmatpush1.msra.mxu0 0.0
        %895 = vmatprep.subr.mxu0 0.0
        %896 = vmatpush1.msra.mxu0 0.0
        %897 = vmatprep.subr.mxu0 0.0
        %898 = vmatpush1.msra.mxu0 0.0
        %899 = vmatprep.subr.mxu0 0.0
        %900 = vmatpush1.msra.mxu0 0.0
        %901 = vmatprep.subr.mxu0 0.0
        %902 = vmatpush1.msra.mxu0 0.0
        %903 = vmatprep.subr.mxu0 0.0
        %904 = vmatpush1.msra.mxu0 0.0
        %905 = vmatprep.subr.mxu0 0.0
        %906 = vmatpush1.msra.mxu0 0.0
        %907 = vmatprep.subr.mxu0 0.0
        %908 = vmatpush1.msra.mxu0 0.0
        %909 = vmatprep.subr.mxu0 0.0
        %910 = vmatpush1.msra.mxu0 0.0
        %911 = vmatprep.subr.mxu0 0.0
        %912 = vmatpush1.msra.mxu0 %v876
        %913 = vmatprep.subr.mxu0 0.0
        %914 = vmatpush2.msra.mxu0 0.0
        %915 = vmatprep.subr.mxu0 0.0
        %916 = vmatpush2.msra.mxu0 0.0
        %917 = vmatprep.subr.mxu0 0.0
        %918 = vmatpush2.msra.mxu0 0.0
        %919 = vmatprep.subr.mxu0 0.0
        %920 = vmatpush2.msra.mxu0 0.0
        %921 = vmatprep.subr.mxu0 0.0
        %922 = vmatpush2.msra.mxu0 0.0
        %923 = vmatprep.subr.mxu0 0.0
        %924 = vmatpush2.msra.mxu0 0.0
        %925 = vmatprep.subr.mxu0 0.0
        %926 = vmatpush2.msra.mxu0 0.0
        %927 = vmatprep.subr.mxu0 0.0
        %928 = vmatpush2.msra.mxu0 0.0
        %929 = vmatprep.subr.mxu0 0.0
        %930 = vmatpush2.msra.mxu0 0.0
        %931 = vmatprep.subr.mxu0 0.0
        %932 = vmatpush2.msra.mxu0 0.0
        %933 = vmatprep.subr.mxu0 0.0
        %934 = vmatpush2.msra.mxu0 0.0
        %935 = vmatprep.subr.mxu0 0.0
        %936 = vmatpush2.msra.mxu0 0.0
        %937 = vmatprep.subr.mxu0 0.0
        %938 = vmatpush2.msra.mxu0 0.0
        %939 = vmatprep.subr.mxu0 0.0
        %940 = vmatpush2.msra.mxu0 0.0
        %941 = vmatprep.subr.mxu0 0.0
        %942 = vmatpush2.msra.mxu0 0.0
        %943 = vmatprep.subr.mxu0 0.0
        %944 = vmatpush2.msra.mxu0 0.0
        %945 = vmatprep.mubr.f32.mxu0 0.0
        %946 = vmatmul.mubr.f32.gmra.mxu0 %v879
        %v947 = vpop.f32.mrf.mxu0
        %v948 = vadd.f32 0.0, %v947
        %v949 = vpop.f32.mrf.mxu0
        %950 = vdwg.mxu0
        %951 = vrot.lane.b32.xlu0 %v612, 120
        %v952 = vpop.permute.xlu0 %951
        %953 = vrot.lane.b32.xlu0 %v612, 88
        %v954 = vpop.permute.xlu0 %953
        %v955 = vsel %vm623, %v952, 0
        %v957 = vsel %vm623, %v954, 0
        %959 = vmatprep.subr.mxu0 0.0
        %960 = vmatpush1.xpose.msra.mxu0 0.0
        %961 = vmatprep.subr.mxu0 0.0
        %962 = vmatpush1.xpose.msra.mxu0 0.0
        %963 = vmatprep.subr.mxu0 0.0
        %964 = vmatpush1.xpose.msra.mxu0 0.0
        %965 = vmatprep.subr.mxu0 0.0
        %966 = vmatpush1.xpose.msra.mxu0 0.0
        %967 = vmatprep.subr.mxu0 0.0
        %968 = vmatpush1.xpose.msra.mxu0 0.0
        %969 = vmatprep.subr.mxu0 0.0
        %970 = vmatpush1.xpose.msra.mxu0 0.0
        %971 = vmatprep.subr.mxu0 0.0
        %972 = vmatpush1.xpose.msra.mxu0 0.0
        %973 = vmatprep.subr.mxu0 0.0
        %974 = vmatpush1.xpose.msra.mxu0 0.0
        %975 = vmatprep.subr.mxu0 0.0
        %976 = vmatpush1.xpose.msra.mxu0 0.0
        %977 = vmatprep.subr.mxu0 0.0
        %978 = vmatpush1.xpose.msra.mxu0 0.0
        %979 = vmatprep.subr.mxu0 0.0
        %980 = vmatpush1.xpose.msra.mxu0 0.0
        %981 = vmatprep.subr.mxu0 0.0
        %982 = vmatpush1.xpose.msra.mxu0 0.0
        %983 = vmatprep.subr.mxu0 0.0
        %984 = vmatpush1.xpose.msra.mxu0 0.0
        %985 = vmatprep.subr.mxu0 0.0
        %986 = vmatpush1.xpose.msra.mxu0 0.0
        %987 = vmatprep.subr.mxu0 0.0
        %988 = vmatpush1.xpose.msra.mxu0 0.0
        %989 = vmatprep.subr.mxu0 0.0
        %990 = vmatpush1.xpose.msra.mxu0 %v957
        %991 = vmatprep.subr.mxu0 0.0
        %992 = vmatpush2.xpose.msra.mxu0 0.0
        %993 = vmatprep.subr.mxu0 0.0
        %994 = vmatpush2.xpose.msra.mxu0 0.0
        %995 = vmatprep.subr.mxu0 0.0
        %996 = vmatpush2.xpose.msra.mxu0 0.0
        %997 = vmatprep.subr.mxu0 0.0
        %998 = vmatpush2.xpose.msra.mxu0 0.0
        %999 = vmatprep.subr.mxu0 0.0
        %1000 = vmatpush2.xpose.msra.mxu0 0.0
        %1001 = vmatprep.subr.mxu0 0.0
        %1002 = vmatpush2.xpose.msra.mxu0 0.0
        %1003 = vmatprep.subr.mxu0 0.0
        %1004 = vmatpush2.xpose.msra.mxu0 0.0
        %1005 = vmatprep.subr.mxu0 0.0
        %1006 = vmatpush2.xpose.msra.mxu0 0.0
        %1007 = vmatprep.subr.mxu0 0.0
        %1008 = vmatpush2.xpose.msra.mxu0 0.0
        %1009 = vmatprep.subr.mxu0 0.0
        %1010 = vmatpush2.xpose.msra.mxu0 0.0
        %1011 = vmatprep.subr.mxu0 0.0
        %1012 = vmatpush2.xpose.msra.mxu0 0.0
        %1013 = vmatprep.subr.mxu0 0.0
        %1014 = vmatpush2.xpose.msra.mxu0 0.0
        %1015 = vmatprep.subr.mxu0 0.0
        %1016 = vmatpush2.xpose.msra.mxu0 0.0
        %1017 = vmatprep.subr.mxu0 0.0
        %1018 = vmatpush2.xpose.msra.mxu0 0.0
        %1019 = vmatprep.subr.mxu0 0.0
        %1020 = vmatpush2.xpose.msra.mxu0 0.0
        %1021 = vmatprep.subr.mxu0 0.0
        %1022 = vmatpush2.xpose.msra.mxu0 0.0
        %1023 = vmatprep.mubr.f32.mxu0 0.0
        %1024 = vmatmul.mubr.f32.gmra.mxu0 %v955
        %v1025 = vpop.f32.mrf.mxu0
        %v1026 = vadd.f32 0.0, %v1025
        %v1027 = vpop.f32.mrf.mxu0
        %1028 = vdwg.mxu0
        %1029 = vrot.lane.b32.xlu0 %v617, 120
        %v1030 = vpop.permute.xlu0 %1029
        %1031 = vrot.lane.b32.xlu0 %v617, 88
        %v1032 = vpop.permute.xlu0 %1031
        %v1033 = vsel %vm623, %v1030, 0
        %v1035 = vsel %vm623, %v1032, 0
        %1037 = vmatprep.subr.mxu0 0.0
        %1038 = vmatpush1.xpose.msra.mxu0 0.0
        %1039 = vmatprep.subr.mxu0 0.0
        %1040 = vmatpush1.xpose.msra.mxu0 0.0
        %1041 = vmatprep.subr.mxu0 0.0
        %1042 = vmatpush1.xpose.msra.mxu0 0.0
        %1043 = vmatprep.subr.mxu0 0.0
        %1044 = vmatpush1.xpose.msra.mxu0 0.0
        %1045 = vmatprep.subr.mxu0 0.0
        %1046 = vmatpush1.xpose.msra.mxu0 0.0
        %1047 = vmatprep.subr.mxu0 0.0
        %1048 = vmatpush1.xpose.msra.mxu0 0.0
        %1049 = vmatprep.subr.mxu0 0.0
        %1050 = vmatpush1.xpose.msra.mxu0 0.0
        %1051 = vmatprep.subr.mxu0 0.0
        %1052 = vmatpush1.xpose.msra.mxu0 0.0
        %1053 = vmatprep.subr.mxu0 0.0
        %1054 = vmatpush1.xpose.msra.mxu0 0.0
        %1055 = vmatprep.subr.mxu0 0.0
        %1056 = vmatpush1.xpose.msra.mxu0 0.0
        %1057 = vmatprep.subr.mxu0 0.0
        %1058 = vmatpush1.xpose.msra.mxu0 0.0
        %1059 = vmatprep.subr.mxu0 0.0
        %1060 = vmatpush1.xpose.msra.mxu0 0.0
        %1061 = vmatprep.subr.mxu0 0.0
        %1062 = vmatpush1.xpose.msra.mxu0 0.0
        %1063 = vmatprep.subr.mxu0 0.0
        %1064 = vmatpush1.xpose.msra.mxu0 0.0
        %1065 = vmatprep.subr.mxu0 0.0
        %1066 = vmatpush1.xpose.msra.mxu0 0.0
        %1067 = vmatprep.subr.mxu0 0.0
        %1068 = vmatpush1.xpose.msra.mxu0 %v1035
        %1069 = vmatprep.subr.mxu0 0.0
        %1070 = vmatpush2.xpose.msra.mxu0 0.0
        %1071 = vmatprep.subr.mxu0 0.0
        %1072 = vmatpush2.xpose.msra.mxu0 0.0
        %1073 = vmatprep.subr.mxu0 0.0
        %1074 = vmatpush2.xpose.msra.mxu0 0.0
        %1075 = vmatprep.subr.mxu0 0.0
        %1076 = vmatpush2.xpose.msra.mxu0 0.0
        %1077 = vmatprep.subr.mxu0 0.0
        %1078 = vmatpush2.xpose.msra.mxu0 0.0
        %1079 = vmatprep.subr.mxu0 0.0
        %1080 = vmatpush2.xpose.msra.mxu0 0.0
        %1081 = vmatprep.subr.mxu0 0.0
        %1082 = vmatpush2.xpose.msra.mxu0 0.0
        %1083 = vmatprep.subr.mxu0 0.0
        %1084 = vmatpush2.xpose.msra.mxu0 0.0
        %1085 = vmatprep.subr.mxu0 0.0
        %1086 = vmatpush2.xpose.msra.mxu0 0.0
        %1087 = vmatprep.subr.mxu0 0.0
        %1088 = vmatpush2.xpose.msra.mxu0 0.0
        %1089 = vmatprep.subr.mxu0 0.0
        %1090 = vmatpush2.xpose.msra.mxu0 0.0
        %1091 = vmatprep.subr.mxu0 0.0
        %1092 = vmatpush2.xpose.msra.mxu0 0.0
        %1093 = vmatprep.subr.mxu0 0.0
        %1094 = vmatpush2.xpose.msra.mxu0 0.0
        %1095 = vmatprep.subr.mxu0 0.0
        %1096 = vmatpush2.xpose.msra.mxu0 0.0
        %1097 = vmatprep.subr.mxu0 0.0
        %1098 = vmatpush2.xpose.msra.mxu0 0.0
        %1099 = vmatprep.subr.mxu0 0.0
        %1100 = vmatpush2.xpose.msra.mxu0 0.0
        %1101 = vmatprep.mubr.f32.mxu0 0.0
        %1102 = vmatmul.mubr.f32.gmra.mxu0 %v1033
        %v1103 = vpop.f32.mrf.mxu0
        %v1104 = vadd.f32 0.0, %v1103
        %v1105 = vpop.f32.mrf.mxu0
        %1106 = vdwg.mxu0
        %v1107 = vmul.f32 %v1026, 0.35355338
        %v1108 = vmul.f32 %v1104, 0.35355338
        %v1109 = vsel %vm623, %v1107, -inf
        %1110 = vmax.xlane.f32.xlu0 %v1109
        %v1111 = vpop.xlane.xlu0 %1110
        %v1112 = vsel %vm623, %v1108, -inf
        %1113 = vmax.xlane.f32.xlu0 %v1112
        %v1114 = vpop.xlane.xlu0 %1113
        %v1115 = vsub.f32 %v1107, %v1111
        %v1116 = vsub.f32 %v1108, %v1114
        %v1117 = vmul.f32 %v1115, 1.442695
        %v1118 = vpow.pop %v1117
        %v1119 = vmul.f32 %v1116, 1.442695
        %v1120 = vpow.pop %v1119
        %v1121 = vsel %vm623, %v1118, 0.0
        %1122 = vadd.xlane.f32.xlu0 %v1121
        %v1123 = vpop.xlane.xlu0 %1122
        %v1124 = vsel %vm623, %v1120, 0.0
        %1125 = vadd.xlane.f32.xlu0 %v1124
        %v1126 = vpop.xlane.xlu0 %1125
        %v1127 = vrcp.pop %v1123
        %v1128 = vmul.f32 %v1118, %v1127
        %v1129 = vrcp.pop %v1126
        %v1130 = vmul.f32 %v1120, %v1129
        %1131 = vrot.lane.b32.xlu0 %v612, 56
        %v1132 = vpop.permute.xlu0 %1131
        %v1135 = vsel %vm623, %v1128, 0
        %1137 = vmatprep.subr.mxu0 0.0
        %1138 = vmatpush1.msra.mxu0 0.0
        %1139 = vmatprep.subr.mxu0 0.0
        %1140 = vmatpush1.msra.mxu0 0.0
        %1141 = vmatprep.subr.mxu0 0.0
        %1142 = vmatpush1.msra.mxu0 0.0
        %1143 = vmatprep.subr.mxu0 0.0
        %1144 = vmatpush1.msra.mxu0 0.0
        %1145 = vmatprep.subr.mxu0 0.0
        %1146 = vmatpush1.msra.mxu0 0.0
        %1147 = vmatprep.subr.mxu0 0.0
        %1148 = vmatpush1.msra.mxu0 0.0
        %1149 = vmatprep.subr.mxu0 0.0
        %1150 = vmatpush1.msra.mxu0 0.0
        %1151 = vmatprep.subr.mxu0 0.0
        %1152 = vmatpush1.msra.mxu0 0.0
        %1153 = vmatprep.subr.mxu0 0.0
        %1154 = vmatpush1.msra.mxu0 0.0
        %1155 = vmatprep.subr.mxu0 0.0
        %1156 = vmatpush1.msra.mxu0 0.0
        %1157 = vmatprep.subr.mxu0 0.0
        %1158 = vmatpush1.msra.mxu0 0.0
        %1159 = vmatprep.subr.mxu0 0.0
        %1160 = vmatpush1.msra.mxu0 0.0
        %1161 = vmatprep.subr.mxu0 0.0
        %1162 = vmatpush1.msra.mxu0 0.0
        %1163 = vmatprep.subr.mxu0 0.0
        %1164 = vmatpush1.msra.mxu0 0.0
        %1165 = vmatprep.subr.mxu0 0.0
        %1166 = vmatpush1.msra.mxu0 0.0
        %1167 = vmatprep.subr.mxu0 0.0
        %1168 = vmatpush1.msra.mxu0 %v1132
        %1169 = vmatprep.subr.mxu0 0.0
        %1170 = vmatpush2.msra.mxu0 0.0
        %1171 = vmatprep.subr.mxu0 0.0
        %1172 = vmatpush2.msra.mxu0 0.0
        %1173 = vmatprep.subr.mxu0 0.0
        %1174 = vmatpush2.msra.mxu0 0.0
        %1175 = vmatprep.subr.mxu0 0.0
        %1176 = vmatpush2.msra.mxu0 0.0
        %1177 = vmatprep.subr.mxu0 0.0
        %1178 = vmatpush2.msra.mxu0 0.0
        %1179 = vmatprep.subr.mxu0 0.0
        %1180 = vmatpush2.msra.mxu0 0.0
        %1181 = vmatprep.subr.mxu0 0.0
        %1182 = vmatpush2.msra.mxu0 0.0
        %1183 = vmatprep.subr.mxu0 0.0
        %1184 = vmatpush2.msra.mxu0 0.0
        %1185 = vmatprep.subr.mxu0 0.0
        %1186 = vmatpush2.msra.mxu0 0.0
        %1187 = vmatprep.subr.mxu0 0.0
        %1188 = vmatpush2.msra.mxu0 0.0
        %1189 = vmatprep.subr.mxu0 0.0
        %1190 = vmatpush2.msra.mxu0 0.0
        %1191 = vmatprep.subr.mxu0 0.0
        %1192 = vmatpush2.msra.mxu0 0.0
        %1193 = vmatprep.subr.mxu0 0.0
        %1194 = vmatpush2.msra.mxu0 0.0
        %1195 = vmatprep.subr.mxu0 0.0
        %1196 = vmatpush2.msra.mxu0 0.0
        %1197 = vmatprep.subr.mxu0 0.0
        %1198 = vmatpush2.msra.mxu0 0.0
        %1199 = vmatprep.subr.mxu0 0.0
        %1200 = vmatpush2.msra.mxu0 0.0
        %1201 = vmatprep.mubr.f32.mxu0 0.0
        %1202 = vmatmul.mubr.f32.gmra.mxu0 %v1135
        %v1203 = vpop.f32.mrf.mxu0
        %v1204 = vadd.f32 0.0, %v1203
        %v1205 = vpop.f32.mrf.mxu0
        %1206 = vdwg.mxu0
        %1207 = vrot.lane.b32.xlu0 %v617, 56
        %v1208 = vpop.permute.xlu0 %1207
        %v1211 = vsel %vm623, %v1130, 0
        %1213 = vmatprep.subr.mxu0 0.0
        %1214 = vmatpush1.msra.mxu0 0.0
        %1215 = vmatprep.subr.mxu0 0.0
        %1216 = vmatpush1.msra.mxu0 0.0
        %1217 = vmatprep.subr.mxu0 0.0
        %1218 = vmatpush1.msra.mxu0 0.0
        %1219 = vmatprep.subr.mxu0 0.0
        %1220 = vmatpush1.msra.mxu0 0.0
        %1221 = vmatprep.subr.mxu0 0.0
        %1222 = vmatpush1.msra.mxu0 0.0
        %1223 = vmatprep.subr.mxu0 0.0
        %1224 = vmatpush1.msra.mxu0 0.0
        %1225 = vmatprep.subr.mxu0 0.0
        %1226 = vmatpush1.msra.mxu0 0.0
        %1227 = vmatprep.subr.mxu0 0.0
        %1228 = vmatpush1.msra.mxu0 0.0
        %1229 = vmatprep.subr.mxu0 0.0
        %1230 = vmatpush1.msra.mxu0 0.0
        %1231 = vmatprep.subr.mxu0 0.0
        %1232 = vmatpush1.msra.mxu0 0.0
        %1233 = vmatprep.subr.mxu0 0.0
        %1234 = vmatpush1.msra.mxu0 0.0
        %1235 = vmatprep.subr.mxu0 0.0
        %1236 = vmatpush1.msra.mxu0 0.0
        %1237 = vmatprep.subr.mxu0 0.0
        %1238 = vmatpush1.msra.mxu0 0.0
        %1239 = vmatprep.subr.mxu0 0.0
        %1240 = vmatpush1.msra.mxu0 0.0
        %1241 = vmatprep.subr.mxu0 0.0
        %1242 = vmatpush1.msra.mxu0 0.0
        %1243 = vmatprep.subr.mxu0 0.0
        %1244 = vmatpush1.msra.mxu0 %v1208
        %1245 = vmatprep.subr.mxu0 0.0
        %1246 = vmatpush2.msra.mxu0 0.0
        %1247 = vmatprep.subr.mxu0 0.0
        %1248 = vmatpush2.msra.mxu0 0.0
        %1249 = vmatprep.subr.mxu0 0.0
        %1250 = vmatpush2.msra.mxu0 0.0
        %1251 = vmatprep.subr.mxu0 0.0
        %1252 = vmatpush2.msra.mxu0 0.0
        %1253 = vmatprep.subr.mxu0 0.0
        %1254 = vmatpush2.msra.mxu0 0.0
        %1255 = vmatprep.subr.mxu0 0.0
        %1256 = vmatpush2.msra.mxu0 0.0
        %1257 = vmatprep.subr.mxu0 0.0
        %1258 = vmatpush2.msra.mxu0 0.0
        %1259 = vmatprep.subr.mxu0 0.0
        %1260 = vmatpush2.msra.mxu0 0.0
        %1261 = vmatprep.subr.mxu0 0.0
        %1262 = vmatpush2.msra.mxu0 0.0
        %1263 = vmatprep.subr.mxu0 0.0
        %1264 = vmatpush2.msra.mxu0 0.0
        %1265 = vmatprep.subr.mxu0 0.0
        %1266 = vmatpush2.msra.mxu0 0.0
        %1267 = vmatprep.subr.mxu0 0.0
        %1268 = vmatpush2.msra.mxu0 0.0
        %1269 = vmatprep.subr.mxu0 0.0
        %1270 = vmatpush2.msra.mxu0 0.0
        %1271 = vmatprep.subr.mxu0 0.0
        %1272 = vmatpush2.msra.mxu0 0.0
        %1273 = vmatprep.subr.mxu0 0.0
        %1274 = vmatpush2.msra.mxu0 0.0
        %1275 = vmatprep.subr.mxu0 0.0
        %1276 = vmatpush2.msra.mxu0 0.0
        %1277 = vmatprep.mubr.f32.mxu0 0.0
        %1278 = vmatmul.mubr.f32.gmra.mxu0 %v1211
        %v1279 = vpop.f32.mrf.mxu0
        %v1280 = vadd.f32 0.0, %v1279
        %v1281 = vpop.f32.mrf.mxu0
        %1282 = vdwg.mxu0
        %1283 = vrot.lane.b32.xlu0 %v612, 112
        %v1284 = vpop.permute.xlu0 %1283
        %1285 = vrot.lane.b32.xlu0 %v612, 80
        %v1286 = vpop.permute.xlu0 %1285
        %v1287 = vsel %vm623, %v1284, 0
        %v1289 = vsel %vm623, %v1286, 0
        %1291 = vmatprep.subr.mxu0 0.0
        %1292 = vmatpush1.xpose.msra.mxu0 0.0
        %1293 = vmatprep.subr.mxu0 0.0
        %1294 = vmatpush1.xpose.msra.mxu0 0.0
        %1295 = vmatprep.subr.mxu0 0.0
        %1296 = vmatpush1.xpose.msra.mxu0 0.0
        %1297 = vmatprep.subr.mxu0 0.0
        %1298 = vmatpush1.xpose.msra.mxu0 0.0
        %1299 = vmatprep.subr.mxu0 0.0
        %1300 = vmatpush1.xpose.msra.mxu0 0.0
        %1301 = vmatprep.subr.mxu0 0.0
        %1302 = vmatpush1.xpose.msra.mxu0 0.0
        %1303 = vmatprep.subr.mxu0 0.0
        %1304 = vmatpush1.xpose.msra.mxu0 0.0
        %1305 = vmatprep.subr.mxu0 0.0
        %1306 = vmatpush1.xpose.msra.mxu0 0.0
        %1307 = vmatprep.subr.mxu0 0.0
        %1308 = vmatpush1.xpose.msra.mxu0 0.0
        %1309 = vmatprep.subr.mxu0 0.0
        %1310 = vmatpush1.xpose.msra.mxu0 0.0
        %1311 = vmatprep.subr.mxu0 0.0
        %1312 = vmatpush1.xpose.msra.mxu0 0.0
        %1313 = vmatprep.subr.mxu0 0.0
        %1314 = vmatpush1.xpose.msra.mxu0 0.0
        %1315 = vmatprep.subr.mxu0 0.0
        %1316 = vmatpush1.xpose.msra.mxu0 0.0
        %1317 = vmatprep.subr.mxu0 0.0
        %1318 = vmatpush1.xpose.msra.mxu0 0.0
        %1319 = vmatprep.subr.mxu0 0.0
        %1320 = vmatpush1.xpose.msra.mxu0 0.0
        %1321 = vmatprep.subr.mxu0 0.0
        %1322 = vmatpush1.xpose.msra.mxu0 %v1289
        %1323 = vmatprep.subr.mxu0 0.0
        %1324 = vmatpush2.xpose.msra.mxu0 0.0
        %1325 = vmatprep.subr.mxu0 0.0
        %1326 = vmatpush2.xpose.msra.mxu0 0.0
        %1327 = vmatprep.subr.mxu0 0.0
        %1328 = vmatpush2.xpose.msra.mxu0 0.0
        %1329 = vmatprep.subr.mxu0 0.0
        %1330 = vmatpush2.xpose.msra.mxu0 0.0
        %1331 = vmatprep.subr.mxu0 0.0
        %1332 = vmatpush2.xpose.msra.mxu0 0.0
        %1333 = vmatprep.subr.mxu0 0.0
        %1334 = vmatpush2.xpose.msra.mxu0 0.0
        %1335 = vmatprep.subr.mxu0 0.0
        %1336 = vmatpush2.xpose.msra.mxu0 0.0
        %1337 = vmatprep.subr.mxu0 0.0
        %1338 = vmatpush2.xpose.msra.mxu0 0.0
        %1339 = vmatprep.subr.mxu0 0.0
        %1340 = vmatpush2.xpose.msra.mxu0 0.0
        %1341 = vmatprep.subr.mxu0 0.0
        %1342 = vmatpush2.xpose.msra.mxu0 0.0
        %1343 = vmatprep.subr.mxu0 0.0
        %1344 = vmatpush2.xpose.msra.mxu0 0.0
        %1345 = vmatprep.subr.mxu0 0.0
        %1346 = vmatpush2.xpose.msra.mxu0 0.0
        %1347 = vmatprep.subr.mxu0 0.0
        %1348 = vmatpush2.xpose.msra.mxu0 0.0
        %1349 = vmatprep.subr.mxu0 0.0
        %1350 = vmatpush2.xpose.msra.mxu0 0.0
        %1351 = vmatprep.subr.mxu0 0.0
        %1352 = vmatpush2.xpose.msra.mxu0 0.0
        %1353 = vmatprep.subr.mxu0 0.0
        %1354 = vmatpush2.xpose.msra.mxu0 0.0
        %1355 = vmatprep.mubr.f32.mxu0 0.0
        %1356 = vmatmul.mubr.f32.gmra.mxu0 %v1287
        %v1357 = vpop.f32.mrf.mxu0
        %v1358 = vadd.f32 0.0, %v1357
        %v1359 = vpop.f32.mrf.mxu0
        %1360 = vdwg.mxu0
        %1361 = vrot.lane.b32.xlu0 %v617, 112
        %v1362 = vpop.permute.xlu0 %1361
        %1363 = vrot.lane.b32.xlu0 %v617, 80
        %v1364 = vpop.permute.xlu0 %1363
        %v1365 = vsel %vm623, %v1362, 0
        %v1367 = vsel %vm623, %v1364, 0
        %1369 = vmatprep.subr.mxu0 0.0
        %1370 = vmatpush1.xpose.msra.mxu0 0.0
        %1371 = vmatprep.subr.mxu0 0.0
        %1372 = vmatpush1.xpose.msra.mxu0 0.0
        %1373 = vmatprep.subr.mxu0 0.0
        %1374 = vmatpush1.xpose.msra.mxu0 0.0
        %1375 = vmatprep.subr.mxu0 0.0
        %1376 = vmatpush1.xpose.msra.mxu0 0.0
        %1377 = vmatprep.subr.mxu0 0.0
        %1378 = vmatpush1.xpose.msra.mxu0 0.0
        %1379 = vmatprep.subr.mxu0 0.0
        %1380 = vmatpush1.xpose.msra.mxu0 0.0
        %1381 = vmatprep.subr.mxu0 0.0
        %1382 = vmatpush1.xpose.msra.mxu0 0.0
        %1383 = vmatprep.subr.mxu0 0.0
        %1384 = vmatpush1.xpose.msra.mxu0 0.0
        %1385 = vmatprep.subr.mxu0 0.0
        %1386 = vmatpush1.xpose.msra.mxu0 0.0
        %1387 = vmatprep.subr.mxu0 0.0
        %1388 = vmatpush1.xpose.msra.mxu0 0.0
        %1389 = vmatprep.subr.mxu0 0.0
        %1390 = vmatpush1.xpose.msra.mxu0 0.0
        %1391 = vmatprep.subr.mxu0 0.0
        %1392 = vmatpush1.xpose.msra.mxu0 0.0
        %1393 = vmatprep.subr.mxu0 0.0
        %1394 = vmatpush1.xpose.msra.mxu0 0.0
        %1395 = vmatprep.subr.mxu0 0.0
        %1396 = vmatpush1.xpose.msra.mxu0 0.0
        %1397 = vmatprep.subr.mxu0 0.0
        %1398 = vmatpush1.xpose.msra.mxu0 0.0
        %1399 = vmatprep.subr.mxu0 0.0
        %1400 = vmatpush1.xpose.msra.mxu0 %v1367
        %1401 = vmatprep.subr.mxu0 0.0
        %1402 = vmatpush2.xpose.msra.mxu0 0.0
        %1403 = vmatprep.subr.mxu0 0.0
        %1404 = vmatpush2.xpose.msra.mxu0 0.0
        %1405 = vmatprep.subr.mxu0 0.0
        %1406 = vmatpush2.xpose.msra.mxu0 0.0
        %1407 = vmatprep.subr.mxu0 0.0
        %1408 = vmatpush2.xpose.msra.mxu0 0.0
        %1409 = vmatprep.subr.mxu0 0.0
        %1410 = vmatpush2.xpose.msra.mxu0 0.0
        %1411 = vmatprep.subr.mxu0 0.0
        %1412 = vmatpush2.xpose.msra.mxu0 0.0
        %1413 = vmatprep.subr.mxu0 0.0
        %1414 = vmatpush2.xpose.msra.mxu0 0.0
        %1415 = vmatprep.subr.mxu0 0.0
        %1416 = vmatpush2.xpose.msra.mxu0 0.0
        %1417 = vmatprep.subr.mxu0 0.0
        %1418 = vmatpush2.xpose.msra.mxu0 0.0
        %1419 = vmatprep.subr.mxu0 0.0
        %1420 = vmatpush2.xpose.msra.mxu0 0.0
        %1421 = vmatprep.subr.mxu0 0.0
        %1422 = vmatpush2.xpose.msra.mxu0 0.0
        %1423 = vmatprep.subr.mxu0 0.0
        %1424 = vmatpush2.xpose.msra.mxu0 0.0
        %1425 = vmatprep.subr.mxu0 0.0
        %1426 = vmatpush2.xpose.msra.mxu0 0.0
        %1427 = vmatprep.subr.mxu0 0.0
        %1428 = vmatpush2.xpose.msra.mxu0 0.0
        %1429 = vmatprep.subr.mxu0 0.0
        %1430 = vmatpush2.xpose.msra.mxu0 0.0
        %1431 = vmatprep.subr.mxu0 0.0
        %1432 = vmatpush2.xpose.msra.mxu0 0.0
        %1433 = vmatprep.mubr.f32.mxu0 0.0
        %1434 = vmatmul.mubr.f32.gmra.mxu0 %v1365
        %v1435 = vpop.f32.mrf.mxu0
        %v1436 = vadd.f32 0.0, %v1435
        %v1437 = vpop.f32.mrf.mxu0
        %1438 = vdwg.mxu0
        %v1439 = vmul.f32 %v1358, 0.35355338
        %v1440 = vmul.f32 %v1436, 0.35355338
        %v1441 = vsel %vm623, %v1439, -inf
        %1442 = vmax.xlane.f32.xlu0 %v1441
        %v1443 = vpop.xlane.xlu0 %1442
        %v1444 = vsel %vm623, %v1440, -inf
        %1445 = vmax.xlane.f32.xlu0 %v1444
        %v1446 = vpop.xlane.xlu0 %1445
        %v1447 = vsub.f32 %v1439, %v1443
        %v1448 = vsub.f32 %v1440, %v1446
        %v1449 = vmul.f32 %v1447, 1.442695
        %v1450 = vpow.pop %v1449
        %v1451 = vmul.f32 %v1448, 1.442695
        %v1452 = vpow.pop %v1451
        %v1453 = vsel %vm623, %v1450, 0.0
        %1454 = vadd.xlane.f32.xlu0 %v1453
        %v1455 = vpop.xlane.xlu0 %1454
        %v1456 = vsel %vm623, %v1452, 0.0
        %1457 = vadd.xlane.f32.xlu0 %v1456
        %v1458 = vpop.xlane.xlu0 %1457
        %v1459 = vrcp.pop %v1455
        %v1460 = vmul.f32 %v1450, %v1459
        %v1461 = vrcp.pop %v1458
        %v1462 = vmul.f32 %v1452, %v1461
        %1463 = vrot.lane.b32.xlu0 %v612, 48
        %v1464 = vpop.permute.xlu0 %1463
        %v1467 = vsel %vm623, %v1460, 0
        %1469 = vmatprep.subr.mxu0 0.0
        %1470 = vmatpush1.msra.mxu0 0.0
        %1471 = vmatprep.subr.mxu0 0.0
        %1472 = vmatpush1.msra.mxu0 0.0
        %1473 = vmatprep.subr.mxu0 0.0
        %1474 = vmatpush1.msra.mxu0 0.0
        %1475 = vmatprep.subr.mxu0 0.0
        %1476 = vmatpush1.msra.mxu0 0.0
        %1477 = vmatprep.subr.mxu0 0.0
        %1478 = vmatpush1.msra.mxu0 0.0
        %1479 = vmatprep.subr.mxu0 0.0
        %1480 = vmatpush1.msra.mxu0 0.0
        %1481 = vmatprep.subr.mxu0 0.0
        %1482 = vmatpush1.msra.mxu0 0.0
        %1483 = vmatprep.subr.mxu0 0.0
        %1484 = vmatpush1.msra.mxu0 0.0
        %1485 = vmatprep.subr.mxu0 0.0
        %1486 = vmatpush1.msra.mxu0 0.0
        %1487 = vmatprep.subr.mxu0 0.0
        %1488 = vmatpush1.msra.mxu0 0.0
        %1489 = vmatprep.subr.mxu0 0.0
        %1490 = vmatpush1.msra.mxu0 0.0
        %1491 = vmatprep.subr.mxu0 0.0
        %1492 = vmatpush1.msra.mxu0 0.0
        %1493 = vmatprep.subr.mxu0 0.0
        %1494 = vmatpush1.msra.mxu0 0.0
        %1495 = vmatprep.subr.mxu0 0.0
        %1496 = vmatpush1.msra.mxu0 0.0
        %1497 = vmatprep.subr.mxu0 0.0
        %1498 = vmatpush1.msra.mxu0 0.0
        %1499 = vmatprep.subr.mxu0 0.0
        %1500 = vmatpush1.msra.mxu0 %v1464
        %1501 = vmatprep.subr.mxu0 0.0
        %1502 = vmatpush2.msra.mxu0 0.0
        %1503 = vmatprep.subr.mxu0 0.0
        %1504 = vmatpush2.msra.mxu0 0.0
        %1505 = vmatprep.subr.mxu0 0.0
        %1506 = vmatpush2.msra.mxu0 0.0
        %1507 = vmatprep.subr.mxu0 0.0
        %1508 = vmatpush2.msra.mxu0 0.0
        %1509 = vmatprep.subr.mxu0 0.0
        %1510 = vmatpush2.msra.mxu0 0.0
        %1511 = vmatprep.subr.mxu0 0.0
        %1512 = vmatpush2.msra.mxu0 0.0
        %1513 = vmatprep.subr.mxu0 0.0
        %1514 = vmatpush2.msra.mxu0 0.0
        %1515 = vmatprep.subr.mxu0 0.0
        %1516 = vmatpush2.msra.mxu0 0.0
        %1517 = vmatprep.subr.mxu0 0.0
        %1518 = vmatpush2.msra.mxu0 0.0
        %1519 = vmatprep.subr.mxu0 0.0
        %1520 = vmatpush2.msra.mxu0 0.0
        %1521 = vmatprep.subr.mxu0 0.0
        %1522 = vmatpush2.msra.mxu0 0.0
        %1523 = vmatprep.subr.mxu0 0.0
        %1524 = vmatpush2.msra.mxu0 0.0
        %1525 = vmatprep.subr.mxu0 0.0
        %1526 = vmatpush2.msra.mxu0 0.0
        %1527 = vmatprep.subr.mxu0 0.0
        %1528 = vmatpush2.msra.mxu0 0.0
        %1529 = vmatprep.subr.mxu0 0.0
        %1530 = vmatpush2.msra.mxu0 0.0
        %1531 = vmatprep.subr.mxu0 0.0
        %1532 = vmatpush2.msra.mxu0 0.0
        %1533 = vmatprep.mubr.f32.mxu0 0.0
        %1534 = vmatmul.mubr.f32.gmra.mxu0 %v1467
        %v1535 = vpop.f32.mrf.mxu0
        %v1536 = vadd.f32 0.0, %v1535
        %v1537 = vpop.f32.mrf.mxu0
        %1538 = vdwg.mxu0
        %1539 = vrot.lane.b32.xlu0 %v617, 48
        %v1540 = vpop.permute.xlu0 %1539
        %v1543 = vsel %vm623, %v1462, 0
        %1545 = vmatprep.subr.mxu0 0.0
        %1546 = vmatpush1.msra.mxu0 0.0
        %1547 = vmatprep.subr.mxu0 0.0
        %1548 = vmatpush1.msra.mxu0 0.0
        %1549 = vmatprep.subr.mxu0 0.0
        %1550 = vmatpush1.msra.mxu0 0.0
        %1551 = vmatprep.subr.mxu0 0.0
        %1552 = vmatpush1.msra.mxu0 0.0
        %1553 = vmatprep.subr.mxu0 0.0
        %1554 = vmatpush1.msra.mxu0 0.0
        %1555 = vmatprep.subr.mxu0 0.0
        %1556 = vmatpush1.msra.mxu0 0.0
        %1557 = vmatprep.subr.mxu0 0.0
        %1558 = vmatpush1.msra.mxu0 0.0
        %1559 = vmatprep.subr.mxu0 0.0
        %1560 = vmatpush1.msra.mxu0 0.0
        %1561 = vmatprep.subr.mxu0 0.0
        %1562 = vmatpush1.msra.mxu0 0.0
        %1563 = vmatprep.subr.mxu0 0.0
        %1564 = vmatpush1.msra.mxu0 0.0
        %1565 = vmatprep.subr.mxu0 0.0
        %1566 = vmatpush1.msra.mxu0 0.0
        %1567 = vmatprep.subr.mxu0 0.0
        %1568 = vmatpush1.msra.mxu0 0.0
        %1569 = vmatprep.subr.mxu0 0.0
        %1570 = vmatpush1.msra.mxu0 0.0
        %1571 = vmatprep.subr.mxu0 0.0
        %1572 = vmatpush1.msra.mxu0 0.0
        %1573 = vmatprep.subr.mxu0 0.0
        %1574 = vmatpush1.msra.mxu0 0.0
        %1575 = vmatprep.subr.mxu0 0.0
        %1576 = vmatpush1.msra.mxu0 %v1540
        %1577 = vmatprep.subr.mxu0 0.0
        %1578 = vmatpush2.msra.mxu0 0.0
        %1579 = vmatprep.subr.mxu0 0.0
        %1580 = vmatpush2.msra.mxu0 0.0
        %1581 = vmatprep.subr.mxu0 0.0
        %1582 = vmatpush2.msra.mxu0 0.0
        %1583 = vmatprep.subr.mxu0 0.0
        %1584 = vmatpush2.msra.mxu0 0.0
        %1585 = vmatprep.subr.mxu0 0.0
        %1586 = vmatpush2.msra.mxu0 0.0
        %1587 = vmatprep.subr.mxu0 0.0
        %1588 = vmatpush2.msra.mxu0 0.0
        %1589 = vmatprep.subr.mxu0 0.0
        %1590 = vmatpush2.msra.mxu0 0.0
        %1591 = vmatprep.subr.mxu0 0.0
        %1592 = vmatpush2.msra.mxu0 0.0
        %1593 = vmatprep.subr.mxu0 0.0
        %1594 = vmatpush2.msra.mxu0 0.0
        %1595 = vmatprep.subr.mxu0 0.0
        %1596 = vmatpush2.msra.mxu0 0.0
        %1597 = vmatprep.subr.mxu0 0.0
        %1598 = vmatpush2.msra.mxu0 0.0
        %1599 = vmatprep.subr.mxu0 0.0
        %1600 = vmatpush2.msra.mxu0 0.0
        %1601 = vmatprep.subr.mxu0 0.0
        %1602 = vmatpush2.msra.mxu0 0.0
        %1603 = vmatprep.subr.mxu0 0.0
        %1604 = vmatpush2.msra.mxu0 0.0
        %1605 = vmatprep.subr.mxu0 0.0
        %1606 = vmatpush2.msra.mxu0 0.0
        %1607 = vmatprep.subr.mxu0 0.0
        %1608 = vmatpush2.msra.mxu0 0.0
        %1609 = vmatprep.mubr.f32.mxu0 0.0
        %1610 = vmatmul.mubr.f32.gmra.mxu0 %v1543
        %v1611 = vpop.f32.mrf.mxu0
        %v1612 = vadd.f32 0.0, %v1611
        %v1613 = vpop.f32.mrf.mxu0
        %1614 = vdwg.mxu0
        %1615 = vrot.lane.b32.xlu0 %v612, 104
        %v1616 = vpop.permute.xlu0 %1615
        %1617 = vrot.lane.b32.xlu0 %v612, 72
        %v1618 = vpop.permute.xlu0 %1617
        %v1619 = vsel %vm623, %v1616, 0
        %v1621 = vsel %vm623, %v1618, 0
        %1623 = vmatprep.subr.mxu0 0.0
        %1624 = vmatpush1.xpose.msra.mxu0 0.0
        %1625 = vmatprep.subr.mxu0 0.0
        %1626 = vmatpush1.xpose.msra.mxu0 0.0
        %1627 = vmatprep.subr.mxu0 0.0
        %1628 = vmatpush1.xpose.msra.mxu0 0.0
        %1629 = vmatprep.subr.mxu0 0.0
        %1630 = vmatpush1.xpose.msra.mxu0 0.0
        %1631 = vmatprep.subr.mxu0 0.0
        %1632 = vmatpush1.xpose.msra.mxu0 0.0
        %1633 = vmatprep.subr.mxu0 0.0
        %1634 = vmatpush1.xpose.msra.mxu0 0.0
        %1635 = vmatprep.subr.mxu0 0.0
        %1636 = vmatpush1.xpose.msra.mxu0 0.0
        %1637 = vmatprep.subr.mxu0 0.0
        %1638 = vmatpush1.xpose.msra.mxu0 0.0
        %1639 = vmatprep.subr.mxu0 0.0
        %1640 = vmatpush1.xpose.msra.mxu0 0.0
        %1641 = vmatprep.subr.mxu0 0.0
        %1642 = vmatpush1.xpose.msra.mxu0 0.0
        %1643 = vmatprep.subr.mxu0 0.0
        %1644 = vmatpush1.xpose.msra.mxu0 0.0
        %1645 = vmatprep.subr.mxu0 0.0
        %1646 = vmatpush1.xpose.msra.mxu0 0.0
        %1647 = vmatprep.subr.mxu0 0.0
        %1648 = vmatpush1.xpose.msra.mxu0 0.0
        %1649 = vmatprep.subr.mxu0 0.0
        %1650 = vmatpush1.xpose.msra.mxu0 0.0
        %1651 = vmatprep.subr.mxu0 0.0
        %1652 = vmatpush1.xpose.msra.mxu0 0.0
        %1653 = vmatprep.subr.mxu0 0.0
        %1654 = vmatpush1.xpose.msra.mxu0 %v1621
        %1655 = vmatprep.subr.mxu0 0.0
        %1656 = vmatpush2.xpose.msra.mxu0 0.0
        %1657 = vmatprep.subr.mxu0 0.0
        %1658 = vmatpush2.xpose.msra.mxu0 0.0
        %1659 = vmatprep.subr.mxu0 0.0
        %1660 = vmatpush2.xpose.msra.mxu0 0.0
        %1661 = vmatprep.subr.mxu0 0.0
        %1662 = vmatpush2.xpose.msra.mxu0 0.0
        %1663 = vmatprep.subr.mxu0 0.0
        %1664 = vmatpush2.xpose.msra.mxu0 0.0
        %1665 = vmatprep.subr.mxu0 0.0
        %1666 = vmatpush2.xpose.msra.mxu0 0.0
        %1667 = vmatprep.subr.mxu0 0.0
        %1668 = vmatpush2.xpose.msra.mxu0 0.0
        %1669 = vmatprep.subr.mxu0 0.0
        %1670 = vmatpush2.xpose.msra.mxu0 0.0
        %1671 = vmatprep.subr.mxu0 0.0
        %1672 = vmatpush2.xpose.msra.mxu0 0.0
        %1673 = vmatprep.subr.mxu0 0.0
        %1674 = vmatpush2.xpose.msra.mxu0 0.0
        %1675 = vmatprep.subr.mxu0 0.0
        %1676 = vmatpush2.xpose.msra.mxu0 0.0
        %1677 = vmatprep.subr.mxu0 0.0
        %1678 = vmatpush2.xpose.msra.mxu0 0.0
        %1679 = vmatprep.subr.mxu0 0.0
        %1680 = vmatpush2.xpose.msra.mxu0 0.0
        %1681 = vmatprep.subr.mxu0 0.0
        %1682 = vmatpush2.xpose.msra.mxu0 0.0
        %1683 = vmatprep.subr.mxu0 0.0
        %1684 = vmatpush2.xpose.msra.mxu0 0.0
        %1685 = vmatprep.subr.mxu0 0.0
        %1686 = vmatpush2.xpose.msra.mxu0 0.0
        %1687 = vmatprep.mubr.f32.mxu0 0.0
        %1688 = vmatmul.mubr.f32.gmra.mxu0 %v1619
        %v1689 = vpop.f32.mrf.mxu0
        %v1690 = vadd.f32 0.0, %v1689
        %v1691 = vpop.f32.mrf.mxu0
        %1692 = vdwg.mxu0
        %1693 = vrot.lane.b32.xlu0 %v617, 104
        %v1694 = vpop.permute.xlu0 %1693
        %1695 = vrot.lane.b32.xlu0 %v617, 72
        %v1696 = vpop.permute.xlu0 %1695
        %v1697 = vsel %vm623, %v1694, 0
        %v1699 = vsel %vm623, %v1696, 0
        %1701 = vmatprep.subr.mxu0 0.0
        %1702 = vmatpush1.xpose.msra.mxu0 0.0
        %1703 = vmatprep.subr.mxu0 0.0
        %1704 = vmatpush1.xpose.msra.mxu0 0.0
        %1705 = vmatprep.subr.mxu0 0.0
        %1706 = vmatpush1.xpose.msra.mxu0 0.0
        %1707 = vmatprep.subr.mxu0 0.0
        %1708 = vmatpush1.xpose.msra.mxu0 0.0
        %1709 = vmatprep.subr.mxu0 0.0
        %1710 = vmatpush1.xpose.msra.mxu0 0.0
        %1711 = vmatprep.subr.mxu0 0.0
        %1712 = vmatpush1.xpose.msra.mxu0 0.0
        %1713 = vmatprep.subr.mxu0 0.0
        %1714 = vmatpush1.xpose.msra.mxu0 0.0
        %1715 = vmatprep.subr.mxu0 0.0
        %1716 = vmatpush1.xpose.msra.mxu0 0.0
        %1717 = vmatprep.subr.mxu0 0.0
        %1718 = vmatpush1.xpose.msra.mxu0 0.0
        %1719 = vmatprep.subr.mxu0 0.0
        %1720 = vmatpush1.xpose.msra.mxu0 0.0
        %1721 = vmatprep.subr.mxu0 0.0
        %1722 = vmatpush1.xpose.msra.mxu0 0.0
        %1723 = vmatprep.subr.mxu0 0.0
        %1724 = vmatpush1.xpose.msra.mxu0 0.0
        %1725 = vmatprep.subr.mxu0 0.0
        %1726 = vmatpush1.xpose.msra.mxu0 0.0
        %1727 = vmatprep.subr.mxu0 0.0
        %1728 = vmatpush1.xpose.msra.mxu0 0.0
        %1729 = vmatprep.subr.mxu0 0.0
        %1730 = vmatpush1.xpose.msra.mxu0 0.0
        %1731 = vmatprep.subr.mxu0 0.0
        %1732 = vmatpush1.xpose.msra.mxu0 %v1699
        %1733 = vmatprep.subr.mxu0 0.0
        %1734 = vmatpush2.xpose.msra.mxu0 0.0
        %1735 = vmatprep.subr.mxu0 0.0
        %1736 = vmatpush2.xpose.msra.mxu0 0.0
        %1737 = vmatprep.subr.mxu0 0.0
        %1738 = vmatpush2.xpose.msra.mxu0 0.0
        %1739 = vmatprep.subr.mxu0 0.0
        %1740 = vmatpush2.xpose.msra.mxu0 0.0
        %1741 = vmatprep.subr.mxu0 0.0
        %1742 = vmatpush2.xpose.msra.mxu0 0.0
        %1743 = vmatprep.subr.mxu0 0.0
        %1744 = vmatpush2.xpose.msra.mxu0 0.0
        %1745 = vmatprep.subr.mxu0 0.0
        %1746 = vmatpush2.xpose.msra.mxu0 0.0
        %1747 = vmatprep.subr.mxu0 0.0
        %1748 = vmatpush2.xpose.msra.mxu0 0.0
        %1749 = vmatprep.subr.mxu0 0.0
        %1750 = vmatpush2.xpose.msra.mxu0 0.0
        %1751 = vmatprep.subr.mxu0 0.0
        %1752 = vmatpush2.xpose.msra.mxu0 0.0
        %1753 = vmatprep.subr.mxu0 0.0
        %1754 = vmatpush2.xpose.msra.mxu0 0.0
        %1755 = vmatprep.subr.mxu0 0.0
        %1756 = vmatpush2.xpose.msra.mxu0 0.0
        %1757 = vmatprep.subr.mxu0 0.0
        %1758 = vmatpush2.xpose.msra.mxu0 0.0
        %1759 = vmatprep.subr.mxu0 0.0
        %1760 = vmatpush2.xpose.msra.mxu0 0.0
        %1761 = vmatprep.subr.mxu0 0.0
        %1762 = vmatpush2.xpose.msra.mxu0 0.0
        %1763 = vmatprep.subr.mxu0 0.0
        %1764 = vmatpush2.xpose.msra.mxu0 0.0
        %1765 = vmatprep.mubr.f32.mxu0 0.0
        %1766 = vmatmul.mubr.f32.gmra.mxu0 %v1697
        %v1767 = vpop.f32.mrf.mxu0
        %v1768 = vadd.f32 0.0, %v1767
        %v1769 = vpop.f32.mrf.mxu0
        %1770 = vdwg.mxu0
        %v1771 = vmul.f32 %v1690, 0.35355338
        %v1772 = vmul.f32 %v1768, 0.35355338
        %v1773 = vsel %vm623, %v1771, -inf
        %1774 = vmax.xlane.f32.xlu0 %v1773
        %v1775 = vpop.xlane.xlu0 %1774
        %v1776 = vsel %vm623, %v1772, -inf
        %1777 = vmax.xlane.f32.xlu0 %v1776
        %v1778 = vpop.xlane.xlu0 %1777
        %v1779 = vsub.f32 %v1771, %v1775
        %v1780 = vsub.f32 %v1772, %v1778
        %v1781 = vmul.f32 %v1779, 1.442695
        %v1782 = vpow.pop %v1781
        %v1783 = vmul.f32 %v1780, 1.442695
        %v1784 = vpow.pop %v1783
        %v1785 = vsel %vm623, %v1782, 0.0
        %1786 = vadd.xlane.f32.xlu0 %v1785
        %v1787 = vpop.xlane.xlu0 %1786
        %v1788 = vsel %vm623, %v1784, 0.0
        %1789 = vadd.xlane.f32.xlu0 %v1788
        %v1790 = vpop.xlane.xlu0 %1789
        %v1791 = vrcp.pop %v1787
        %v1792 = vmul.f32 %v1782, %v1791
        %v1793 = vrcp.pop %v1790
        %v1794 = vmul.f32 %v1784, %v1793
        %1795 = vrot.lane.b32.xlu0 %v612, 40
        %v1796 = vpop.permute.xlu0 %1795
        %v1799 = vsel %vm623, %v1792, 0
        %1801 = vmatprep.subr.mxu0 0.0
        %1802 = vmatpush1.msra.mxu0 0.0
        %1803 = vmatprep.subr.mxu0 0.0
        %1804 = vmatpush1.msra.mxu0 0.0
        %1805 = vmatprep.subr.mxu0 0.0
        %1806 = vmatpush1.msra.mxu0 0.0
        %1807 = vmatprep.subr.mxu0 0.0
        %1808 = vmatpush1.msra.mxu0 0.0
        %1809 = vmatprep.subr.mxu0 0.0
        %1810 = vmatpush1.msra.mxu0 0.0
        %1811 = vmatprep.subr.mxu0 0.0
        %1812 = vmatpush1.msra.mxu0 0.0
        %1813 = vmatprep.subr.mxu0 0.0
        %1814 = vmatpush1.msra.mxu0 0.0
        %1815 = vmatprep.subr.mxu0 0.0
        %1816 = vmatpush1.msra.mxu0 0.0
        %1817 = vmatprep.subr.mxu0 0.0
        %1818 = vmatpush1.msra.mxu0 0.0
        %1819 = vmatprep.subr.mxu0 0.0
        %1820 = vmatpush1.msra.mxu0 0.0
        %1821 = vmatprep.subr.mxu0 0.0
        %1822 = vmatpush1.msra.mxu0 0.0
        %1823 = vmatprep.subr.mxu0 0.0
        %1824 = vmatpush1.msra.mxu0 0.0
        %1825 = vmatprep.subr.mxu0 0.0
        %1826 = vmatpush1.msra.mxu0 0.0
        %1827 = vmatprep.subr.mxu0 0.0
        %1828 = vmatpush1.msra.mxu0 0.0
        %1829 = vmatprep.subr.mxu0 0.0
        %1830 = vmatpush1.msra.mxu0 0.0
        %1831 = vmatprep.subr.mxu0 0.0
        %1832 = vmatpush1.msra.mxu0 %v1796
        %1833 = vmatprep.subr.mxu0 0.0
        %1834 = vmatpush2.msra.mxu0 0.0
        %1835 = vmatprep.subr.mxu0 0.0
        %1836 = vmatpush2.msra.mxu0 0.0
        %1837 = vmatprep.subr.mxu0 0.0
        %1838 = vmatpush2.msra.mxu0 0.0
        %1839 = vmatprep.subr.mxu0 0.0
        %1840 = vmatpush2.msra.mxu0 0.0
        %1841 = vmatprep.subr.mxu0 0.0
        %1842 = vmatpush2.msra.mxu0 0.0
        %1843 = vmatprep.subr.mxu0 0.0
        %1844 = vmatpush2.msra.mxu0 0.0
        %1845 = vmatprep.subr.mxu0 0.0
        %1846 = vmatpush2.msra.mxu0 0.0
        %1847 = vmatprep.subr.mxu0 0.0
        %1848 = vmatpush2.msra.mxu0 0.0
        %1849 = vmatprep.subr.mxu0 0.0
        %1850 = vmatpush2.msra.mxu0 0.0
        %1851 = vmatprep.subr.mxu0 0.0
        %1852 = vmatpush2.msra.mxu0 0.0
        %1853 = vmatprep.subr.mxu0 0.0
        %1854 = vmatpush2.msra.mxu0 0.0
        %1855 = vmatprep.subr.mxu0 0.0
        %1856 = vmatpush2.msra.mxu0 0.0
        %1857 = vmatprep.subr.mxu0 0.0
        %1858 = vmatpush2.msra.mxu0 0.0
        %1859 = vmatprep.subr.mxu0 0.0
        %1860 = vmatpush2.msra.mxu0 0.0
        %1861 = vmatprep.subr.mxu0 0.0
        %1862 = vmatpush2.msra.mxu0 0.0
        %1863 = vmatprep.subr.mxu0 0.0
        %1864 = vmatpush2.msra.mxu0 0.0
        %1865 = vmatprep.mubr.f32.mxu0 0.0
        %1866 = vmatmul.mubr.f32.gmra.mxu0 %v1799
        %v1867 = vpop.f32.mrf.mxu0
        %v1868 = vadd.f32 0.0, %v1867
        %v1869 = vpop.f32.mrf.mxu0
        %1870 = vdwg.mxu0
        %1871 = vrot.lane.b32.xlu0 %v617, 40
        %v1872 = vpop.permute.xlu0 %1871
        %v1875 = vsel %vm623, %v1794, 0
        %1877 = vmatprep.subr.mxu0 0.0
        %1878 = vmatpush1.msra.mxu0 0.0
        %1879 = vmatprep.subr.mxu0 0.0
        %1880 = vmatpush1.msra.mxu0 0.0
        %1881 = vmatprep.subr.mxu0 0.0
        %1882 = vmatpush1.msra.mxu0 0.0
        %1883 = vmatprep.subr.mxu0 0.0
        %1884 = vmatpush1.msra.mxu0 0.0
        %1885 = vmatprep.subr.mxu0 0.0
        %1886 = vmatpush1.msra.mxu0 0.0
        %1887 = vmatprep.subr.mxu0 0.0
        %1888 = vmatpush1.msra.mxu0 0.0
        %1889 = vmatprep.subr.mxu0 0.0
        %1890 = vmatpush1.msra.mxu0 0.0
        %1891 = vmatprep.subr.mxu0 0.0
        %1892 = vmatpush1.msra.mxu0 0.0
        %1893 = vmatprep.subr.mxu0 0.0
        %1894 = vmatpush1.msra.mxu0 0.0
        %1895 = vmatprep.subr.mxu0 0.0
        %1896 = vmatpush1.msra.mxu0 0.0
        %1897 = vmatprep.subr.mxu0 0.0
        %1898 = vmatpush1.msra.mxu0 0.0
        %1899 = vmatprep.subr.mxu0 0.0
        %1900 = vmatpush1.msra.mxu0 0.0
        %1901 = vmatprep.subr.mxu0 0.0
        %1902 = vmatpush1.msra.mxu0 0.0
        %1903 = vmatprep.subr.mxu0 0.0
        %1904 = vmatpush1.msra.mxu0 0.0
        %1905 = vmatprep.subr.mxu0 0.0
        %1906 = vmatpush1.msra.mxu0 0.0
        %1907 = vmatprep.subr.mxu0 0.0
        %1908 = vmatpush1.msra.mxu0 %v1872
        %1909 = vmatprep.subr.mxu0 0.0
        %1910 = vmatpush2.msra.mxu0 0.0
        %1911 = vmatprep.subr.mxu0 0.0
        %1912 = vmatpush2.msra.mxu0 0.0
        %1913 = vmatprep.subr.mxu0 0.0
        %1914 = vmatpush2.msra.mxu0 0.0
        %1915 = vmatprep.subr.mxu0 0.0
        %1916 = vmatpush2.msra.mxu0 0.0
        %1917 = vmatprep.subr.mxu0 0.0
        %1918 = vmatpush2.msra.mxu0 0.0
        %1919 = vmatprep.subr.mxu0 0.0
        %1920 = vmatpush2.msra.mxu0 0.0
        %1921 = vmatprep.subr.mxu0 0.0
        %1922 = vmatpush2.msra.mxu0 0.0
        %1923 = vmatprep.subr.mxu0 0.0
        %1924 = vmatpush2.msra.mxu0 0.0
        %1925 = vmatprep.subr.mxu0 0.0
        %1926 = vmatpush2.msra.mxu0 0.0
        %1927 = vmatprep.subr.mxu0 0.0
        %1928 = vmatpush2.msra.mxu0 0.0
        %1929 = vmatprep.subr.mxu0 0.0
        %1930 = vmatpush2.msra.mxu0 0.0
        %1931 = vmatprep.subr.mxu0 0.0
        %1932 = vmatpush2.msra.mxu0 0.0
        %1933 = vmatprep.subr.mxu0 0.0
        %1934 = vmatpush2.msra.mxu0 0.0
        %1935 = vmatprep.subr.mxu0 0.0
        %1936 = vmatpush2.msra.mxu0 0.0
        %1937 = vmatprep.subr.mxu0 0.0
        %1938 = vmatpush2.msra.mxu0 0.0
        %1939 = vmatprep.subr.mxu0 0.0
        %1940 = vmatpush2.msra.mxu0 0.0
        %1941 = vmatprep.mubr.f32.mxu0 0.0
        %1942 = vmatmul.mubr.f32.gmra.mxu0 %v1875
        %v1943 = vpop.f32.mrf.mxu0
        %v1944 = vadd.f32 0.0, %v1943
        %v1945 = vpop.f32.mrf.mxu0
        %1946 = vdwg.mxu0
        %1949 = vrot.lane.b32.xlu0 %v1204, 8
        %v1950 = vpop.permute.xlu0 %1949
        %1951 = vrot.lane.b32.xlu0 %v1280, 8
        %v1952 = vpop.permute.xlu0 %1951
        %1957 = vrot.lane.b32.xlu0 %v1536, 16
        %v1958 = vpop.permute.xlu0 %1957
        %1959 = vrot.lane.b32.xlu0 %v1612, 16
        %v1960 = vpop.permute.xlu0 %1959
        %1965 = vrot.lane.b32.xlu0 %v1868, 24
        %v1966 = vpop.permute.xlu0 %1965
        %1967 = vrot.lane.b32.xlu0 %v1944, 24
        %v1968 = vpop.permute.xlu0 %1967
        %v1971 = vsel %vm623, %v872, %v1950
        %v1972 = vsel %vm623, %v948, %v1952
        %vm1973 = vcmask 130048
        %v1974 = vsel %vm1973, %v1971, %v1958
        %v1975 = vsel %vm1973, %v1972, %v1960
        %vm1976 = vcmask 195584
        %v1977 = vsel %vm1976, %v1974, %v1966
        %v1978 = vsel %vm1976, %v1975, %v1968
        %v1979 = vlaneseq
        %v1980 = vshrl.u32 %v1979, 7
        %v1981 = vsub.s32 1, %v1980
        %v1982 = vrot.slane %v533, %v1981
        %v1984 = vsel %vm538, %v1977, 0
        %v1987 = vsel %vm538, %v1978, 0
        %1989 = vmatprep.subr.mxu0 0.0
        %1990 = vmatpush1.msra.mxu0 0.0
        %1991 = vmatprep.subr.mxu0 0.0
        %1992 = vmatpush1.msra.mxu0 0.0
        %1993 = vmatprep.subr.mxu0 0.0
        %1994 = vmatpush1.msra.mxu0 0.0
        %1995 = vmatprep.subr.mxu0 0.0
        %1996 = vmatpush1.msra.mxu0 0.0
        %1997 = vmatprep.subr.mxu0 0.0
        %1998 = vmatpush1.msra.mxu0 0.0
        %1999 = vmatprep.subr.mxu0 0.0
        %2000 = vmatpush1.msra.mxu0 0.0
        %2001 = vmatprep.subr.mxu0 0.0
        %2002 = vmatpush1.msra.mxu0 0.0
        %2003 = vmatprep.subr.mxu0 0.0
        %2004 = vmatpush1.msra.mxu0 0.0
        %2005 = vmatprep.subr.mxu0 0.0
        %2006 = vmatpush1.msra.mxu0 0.0
        %2007 = vmatprep.subr.mxu0 0.0
        %2008 = vmatpush1.msra.mxu0 0.0
        %2009 = vmatprep.subr.mxu0 0.0
        %2010 = vmatpush1.msra.mxu0 0.0
        %2011 = vmatprep.subr.mxu0 0.0
        %2012 = vmatpush1.msra.mxu0 0.0
        %2013 = vmatprep.subr.mxu0 0.0
        %2014 = vmatpush1.msra.mxu0 %v532
        %2015 = vmatprep.subr.mxu0 0.0
        %2016 = vmatpush1.msra.mxu0 %v531
        %2017 = vmatprep.subr.mxu0 0.0
        %2018 = vmatpush1.msra.mxu0 %v530
        %2019 = vmatprep.subr.mxu0 0.0
        %2020 = vmatpush1.msra.mxu0 %v529
        %2021 = vmatprep.subr.mxu0 0.0
        %2022 = vmatpush2.msra.mxu0 0.0
        %2023 = vmatprep.subr.mxu0 0.0
        %2024 = vmatpush2.msra.mxu0 0.0
        %2025 = vmatprep.subr.mxu0 0.0
        %2026 = vmatpush2.msra.mxu0 0.0
        %2027 = vmatprep.subr.mxu0 0.0
        %2028 = vmatpush2.msra.mxu0 0.0
        %2029 = vmatprep.subr.mxu0 0.0
        %2030 = vmatpush2.msra.mxu0 0.0
        %2031 = vmatprep.subr.mxu0 0.0
        %2032 = vmatpush2.msra.mxu0 0.0
        %2033 = vmatprep.subr.mxu0 0.0
        %2034 = vmatpush2.msra.mxu0 0.0
        %2035 = vmatprep.subr.mxu0 0.0
        %2036 = vmatpush2.msra.mxu0 0.0
        %2037 = vmatprep.subr.mxu0 0.0
        %2038 = vmatpush2.msra.mxu0 0.0
        %2039 = vmatprep.subr.mxu0 0.0
        %2040 = vmatpush2.msra.mxu0 0.0
        %2041 = vmatprep.subr.mxu0 0.0
        %2042 = vmatpush2.msra.mxu0 0.0
        %2043 = vmatprep.subr.mxu0 0.0
        %2044 = vmatpush2.msra.mxu0 0.0
        %2045 = vmatprep.subr.mxu0 0.0
        %2046 = vmatpush2.msra.mxu0 0.0
        %2047 = vmatprep.subr.mxu0 0.0
        %2048 = vmatpush2.msra.mxu0 0.0
        %2049 = vmatprep.subr.mxu0 0.0
        %2050 = vmatpush2.msra.mxu0 0.0
        %2051 = vmatprep.subr.mxu0 0.0
        %2052 = vmatpush2.msra.mxu0 0.0
        %2053 = vmatprep.mubr.f32.mxu0 0.0
        %2054 = vmatmul.mubr.f32.gmra.mxu0 %v1984
        %v2055 = vpop.f32.mrf.mxu0
        %v2056 = vadd.f32 %v1982, %v2055
        %v2057 = vpop.f32.mrf.mxu0
        %2058 = vmatprep.mubr.f32.mxu0 0.0
        %2059 = vmatmul.mubr.f32.gmra.mxu0 %v1987
        %v2060 = vpop.f32.mrf.mxu0
        %v2061 = vadd.f32 %v1982, %v2060
        %v2062 = vpop.f32.mrf.mxu0
        %2063 = vdwg.mxu0
        %v2064 = vadd.f32 %v523, %v2056
        %v2065 = vadd.f32 %v524, %v2061
        %v2066 = vsel %vm538, %v2064, 0.0
        %2067 = vadd.xlane.f32.xlu0 %v2066
        %v2068 = vpop.xlane.xlu0 %2067
        %v2069 = vsel %vm538, %v2065, 0.0
        %2070 = vadd.xlane.f32.xlu0 %v2069
        %v2071 = vpop.xlane.xlu0 %2070
        %v2072 = vrcp.pop 32.0
        %v2073 = vmul.f32 %v2068, %v2072
        %v2074 = vmul.f32 %v2071, %v2072
        %v2075 = vsub.f32 %v2064, %v2073
        %v2076 = vsub.f32 %v2065, %v2074
        %v2077 = vmul.f32 %v2075, %v2075
        %v2078 = vmul.f32 %v2076, %v2076
        %v2079 = vsel %vm538, %v2077, 0.0
        %2080 = vadd.xlane.f32.xlu0 %v2079
        %v2081 = vpop.xlane.xlu0 %2080
        %v2082 = vsel %vm538, %v2078, 0.0
        %2083 = vadd.xlane.f32.xlu0 %v2082
        %v2084 = vpop.xlane.xlu0 %2083
        %v2085 = vmul.f32 %v2081, %v2072
        %v2086 = vmul.f32 %v2084, %v2072
        %v2087 = vadd.f32 %v2085, 1e-05
        %v2088 = vadd.f32 %v2086, 1e-05
        %v2089 = vrsqrt.pop %v2087
        %v2090 = vrsqrt.pop %v2088
        %v2091 = vmul.f32 %v2075, %v2089
        %v2092 = vmul.f32 %v2076, %v2090
        %v2093 = vlaneseq
        %v2094 = vshrl.u32 %v2093, 7
        %v2095 = vsub.s32 2, %v2094
        %v2096 = vrot.slane %v533, %v2095
        %v2097 = vmul.f32 %v2091, %v2096
        %v2098 = vmul.f32 %v2092, %v2096
        %v2099 = vlaneseq
        %v2100 = vshrl.u32 %v2099, 7
        %v2101 = vsub.s32 3, %v2100
        %v2102 = vrot.slane %v533, %v2101
        %v2103 = vadd.f32 %v2097, %v2102
        %v2104 = vadd.f32 %v2098, %v2102
        %v2105 = vld [vmem:[%s361] sm:$0xff]
        %v2106 = vld [vmem:[%s361 + $0x8] sm:$0xff]
        %v2107 = vld [vmem:[%s361 + $0x10] sm:$0xff]
        %v2108 = vld [vmem:[%s361 + $0x18] sm:$0xff]
        %v2109 = vld [vmem:[%s361 + $0x20] sm:$0xff]
        %v2110 = vld [vmem:[%s361 + $0x28] sm:$0xff]
        %v2111 = vld [vmem:[%s361 + $0x30] sm:$0xff]
        %v2112 = vld [vmem:[%s361 + $0x38] sm:$0xff]
        %v2113 = vld [vmem:[%s361 + $0x40] sm:$0xff]
        %v2114 = vld [vmem:[%s361 + $0x48] sm:$0xff]
        %v2115 = vld [vmem:[%s361 + $0x50] sm:$0xff]
        %v2116 = vld [vmem:[%s361 + $0x58] sm:$0xff]
        %v2117 = vld [vmem:[%s361 + $0x60] sm:$0xff]
        %v2118 = vld [vmem:[%s361 + $0x68] sm:$0xff]
        %v2119 = vld [vmem:[%s361 + $0x70] sm:$0xff]
        %v2120 = vld [vmem:[%s361 + $0x78] sm:$0xff]
        %v2121 = vld [vmem:[%s361 + $0x80] sm:$0xff]
        %v2122 = vld [vmem:[%s361 + $0x88] sm:$0xff]
        %v2123 = vld [vmem:[%s361 + $0x90] sm:$0xff]
        %v2124 = vld [vmem:[%s361 + $0x98] sm:$0xff]
        %v2125 = vld [vmem:[%s361 + $0xa0] sm:$0xff]
        %v2126 = vld [vmem:[%s361 + $0xa8] sm:$0xff]
        %v2127 = vld [vmem:[%s361 + $0xb0] sm:$0xff]
        %v2128 = vld [vmem:[%s361 + $0xb8] sm:$0xff]
        %v2129 = vld [vmem:[%s361 + $0xc0] sm:$0xff]
        %v2130 = vld [vmem:[%s361 + $0xc8] sm:$0xff]
        %v2131 = vld [vmem:[%s361 + $0xd0] sm:$0xff]
        %v2132 = vld [vmem:[%s361 + $0xd8] sm:$0xff]
        %v2133 = vld [vmem:[%s361 + $0xe0] sm:$0xff]
        %v2134 = vld [vmem:[%s361 + $0xe8] sm:$0xff]
        %v2135 = vld [vmem:[%s361 + $0xf0] sm:$0xff]
        %v2136 = vld [vmem:[%s361 + $0xf8] sm:$0xff]
        %v2137 = vld [vmem:[%s370] sm:$0xff]
        %v2138 = vld [vmem:[%s370 + $0x8] sm:$0xff]
        %v2139 = vld [vmem:[%s370 + $0x10] sm:$0xff]
        %v2140 = vld [vmem:[%s370 + $0x18] sm:$0xff]
        %v2141 = vld [vmem:[%s370 + $0x20] sm:$0xff]
        %v2142 = vld [vmem:[%s370 + $0x28] sm:$0xff]
        %v2143 = vld [vmem:[%s370 + $0x30] sm:$0xff]
        %v2144 = vld [vmem:[%s370 + $0x38] sm:$0xff]
        %v2145 = vld [vmem:[%s370 + $0x40] sm:$0xff]
        %v2146 = vld [vmem:[%s370 + $0x48] sm:$0xff]
        %v2147 = vld [vmem:[%s370 + $0x50] sm:$0xff]
        %v2148 = vld [vmem:[%s370 + $0x58] sm:$0xff]
        %v2149 = vld [vmem:[%s370 + $0x60] sm:$0xff]
        %v2150 = vld [vmem:[%s370 + $0x68] sm:$0xff]
        %v2151 = vld [vmem:[%s370 + $0x70] sm:$0xff]
        %v2152 = vld [vmem:[%s370 + $0x78] sm:$0xff]
        %v2153 = vld [vmem:[%s370 + $0x80] sm:$0xff]
        %v2154 = vld [vmem:[%s370 + $0x88] sm:$0xff]
        %v2155 = vld [vmem:[%s370 + $0x90] sm:$0xff]
        %v2156 = vld [vmem:[%s370 + $0x98] sm:$0xff]
        %v2157 = vld [vmem:[%s370 + $0xa0] sm:$0xff]
        %v2158 = vld [vmem:[%s370 + $0xa8] sm:$0xff]
        %v2159 = vld [vmem:[%s370 + $0xb0] sm:$0xff]
        %v2160 = vld [vmem:[%s370 + $0xb8] sm:$0xff]
        %v2161 = vld [vmem:[%s370 + $0xc0] sm:$0xff]
        %v2162 = vld [vmem:[%s370 + $0xc8] sm:$0xff]
        %v2163 = vld [vmem:[%s370 + $0xd0] sm:$0xff]
        %v2164 = vld [vmem:[%s370 + $0xd8] sm:$0xff]
        %v2165 = vld [vmem:[%s370 + $0xe0] sm:$0xff]
        %v2166 = vld [vmem:[%s370 + $0xe8] sm:$0xff]
        %v2167 = vld [vmem:[%s370 + $0xf0] sm:$0xff]
        %v2168 = vld [vmem:[%s370 + $0xf8] sm:$0xff]
        %v2169 = vld [vmem:[%s352] sm:$0xff]
        %v2170 = vld [vmem:[%s352 + $0x8] sm:$0xff]
        %v2171 = vpack.c.bf16 %v2104, %v2103
        %v2174 = vlaneseq
        %v2175 = vshrl.u32 %v2174, 7
        %v2176 = vsub.s32 0, %v2175
        %v2177 = vrot.slane %v2169, %v2176
        %v2178 = vlaneseq
        %v2179 = vshrl.u32 %v2178, 7
        %v2180 = vsub.s32 1, %v2179
        %v2181 = vrot.slane %v2169, %v2180
        %v2182 = vlaneseq
        %v2183 = vshrl.u32 %v2182, 7
        %v2184 = vsub.s32 2, %v2183
        %v2185 = vrot.slane %v2169, %v2184
        %v2186 = vlaneseq
        %v2187 = vshrl.u32 %v2186, 7
        %v2188 = vsub.s32 3, %v2187
        %v2189 = vrot.slane %v2169, %v2188
        %v2190 = vlaneseq
        %v2191 = vshrl.u32 %v2190, 7
        %v2192 = vsub.s32 4, %v2191
        %v2193 = vrot.slane %v2169, %v2192
        %v2194 = vlaneseq
        %v2195 = vshrl.u32 %v2194, 7
        %v2196 = vsub.s32 5, %v2195
        %v2197 = vrot.slane %v2169, %v2196
        %v2198 = vlaneseq
        %v2199 = vshrl.u32 %v2198, 7
        %v2200 = vsub.s32 6, %v2199
        %v2201 = vrot.slane %v2169, %v2200
        %v2202 = vlaneseq
        %v2203 = vshrl.u32 %v2202, 7
        %v2204 = vsub.s32 7, %v2203
        %v2205 = vrot.slane %v2169, %v2204
        %v2206 = vlaneseq
        %v2207 = vshrl.u32 %v2206, 7
        %v2208 = vsub.s32 0, %v2207
        %v2209 = vrot.slane %v2170, %v2208
        %v2210 = vlaneseq
        %v2211 = vshrl.u32 %v2210, 7
        %v2212 = vsub.s32 1, %v2211
        %v2213 = vrot.slane %v2170, %v2212
        %v2214 = vlaneseq
        %v2215 = vshrl.u32 %v2214, 7
        %v2216 = vsub.s32 2, %v2215
        %v2217 = vrot.slane %v2170, %v2216
        %v2218 = vlaneseq
        %v2219 = vshrl.u32 %v2218, 7
        %v2220 = vsub.s32 3, %v2219
        %v2221 = vrot.slane %v2170, %v2220
        %v2222 = vlaneseq
        %v2223 = vshrl.u32 %v2222, 7
        %v2224 = vsub.s32 4, %v2223
        %v2225 = vrot.slane %v2170, %v2224
        %v2226 = vlaneseq
        %v2227 = vshrl.u32 %v2226, 7
        %v2228 = vsub.s32 5, %v2227
        %v2229 = vrot.slane %v2170, %v2228
        %v2230 = vlaneseq
        %v2231 = vshrl.u32 %v2230, 7
        %v2232 = vsub.s32 6, %v2231
        %v2233 = vrot.slane %v2170, %v2232
        %v2234 = vlaneseq
        %v2235 = vshrl.u32 %v2234, 7
        %v2236 = vsub.s32 7, %v2235
        %v2237 = vrot.slane %v2170, %v2236
        %v2286 = vunpack.c.l.b16 %v2105
        %v2287 = vunpack.c.h.b16 %v2105
        %v2288 = vunpack.c.l.b16 %v2106
        %v2289 = vunpack.c.h.b16 %v2106
        %v2290 = vunpack.c.l.b16 %v2107
        %v2291 = vunpack.c.h.b16 %v2107
        %v2292 = vunpack.c.l.b16 %v2108
        %v2293 = vunpack.c.h.b16 %v2108
        %v2294 = vunpack.c.l.b16 %v2109
        %v2295 = vunpack.c.h.b16 %v2109
        %v2296 = vunpack.c.l.b16 %v2110
        %v2297 = vunpack.c.h.b16 %v2110
        %v2298 = vunpack.c.l.b16 %v2111
        %v2299 = vunpack.c.h.b16 %v2111
        %v2300 = vunpack.c.l.b16 %v2112
        %v2301 = vunpack.c.h.b16 %v2112
        %v2302 = vunpack.c.l.b16 %v2113
        %v2303 = vunpack.c.h.b16 %v2113
        %v2304 = vunpack.c.l.b16 %v2114
        %v2305 = vunpack.c.h.b16 %v2114
        %v2306 = vunpack.c.l.b16 %v2115
        %v2307 = vunpack.c.h.b16 %v2115
        %v2308 = vunpack.c.l.b16 %v2116
        %v2309 = vunpack.c.h.b16 %v2116
        %v2310 = vunpack.c.l.b16 %v2117
        %v2311 = vunpack.c.h.b16 %v2117
        %v2312 = vunpack.c.l.b16 %v2118
        %v2313 = vunpack.c.h.b16 %v2118
        %v2314 = vunpack.c.l.b16 %v2119
        %v2315 = vunpack.c.h.b16 %v2119
        %v2316 = vunpack.c.l.b16 %v2120
        %v2317 = vunpack.c.h.b16 %v2120
        %v2318 = vunpack.c.l.b16 %v2121
        %v2319 = vunpack.c.h.b16 %v2121
        %v2320 = vunpack.c.l.b16 %v2122
        %v2321 = vunpack.c.h.b16 %v2122
        %v2322 = vunpack.c.l.b16 %v2123
        %v2323 = vunpack.c.h.b16 %v2123
        %v2324 = vunpack.c.l.b16 %v2124
        %v2325 = vunpack.c.h.b16 %v2124
        %v2326 = vunpack.c.l.b16 %v2125
        %v2327 = vunpack.c.h.b16 %v2125
        %v2328 = vunpack.c.l.b16 %v2126
        %v2329 = vunpack.c.h.b16 %v2126
        %v2330 = vunpack.c.l.b16 %v2127
        %v2331 = vunpack.c.h.b16 %v2127
        %v2332 = vunpack.c.l.b16 %v2128
        %v2333 = vunpack.c.h.b16 %v2128
        %v2334 = vunpack.c.l.b16 %v2129
        %v2335 = vunpack.c.h.b16 %v2129
        %v2336 = vunpack.c.l.b16 %v2130
        %v2337 = vunpack.c.h.b16 %v2130
        %v2338 = vunpack.c.l.b16 %v2131
        %v2339 = vunpack.c.h.b16 %v2131
        %v2340 = vunpack.c.l.b16 %v2132
        %v2341 = vunpack.c.h.b16 %v2132
        %v2342 = vunpack.c.l.b16 %v2133
        %v2343 = vunpack.c.h.b16 %v2133
        %v2344 = vunpack.c.l.b16 %v2134
        %v2345 = vunpack.c.h.b16 %v2134
        %v2346 = vunpack.c.l.b16 %v2135
        %v2347 = vunpack.c.h.b16 %v2135
        %v2348 = vunpack.c.l.b16 %v2136
        %v2349 = vunpack.c.h.b16 %v2136
        %v2350 = vpack.c.b16 %v2302, %v2286
        %v2351 = vpack.c.b16 %v2303, %v2287
        %v2352 = vpack.c.b16 %v2304, %v2288
        %v2353 = vpack.c.b16 %v2305, %v2289
        %v2354 = vpack.c.b16 %v2306, %v2290
        %v2355 = vpack.c.b16 %v2307, %v2291
        %v2356 = vpack.c.b16 %v2308, %v2292
        %v2357 = vpack.c.b16 %v2309, %v2293
        %v2358 = vpack.c.b16 %v2310, %v2294
        %v2359 = vpack.c.b16 %v2311, %v2295
        %v2360 = vpack.c.b16 %v2312, %v2296
        %v2361 = vpack.c.b16 %v2313, %v2297
        %v2362 = vpack.c.b16 %v2314, %v2298
        %v2363 = vpack.c.b16 %v2315, %v2299
        %v2364 = vpack.c.b16 %v2316, %v2300
        %v2365 = vpack.c.b16 %v2317, %v2301
        %v2366 = vpack.c.b16 %v2334, %v2318
        %v2367 = vpack.c.b16 %v2335, %v2319
        %v2368 = vpack.c.b16 %v2336, %v2320
        %v2369 = vpack.c.b16 %v2337, %v2321
        %v2370 = vpack.c.b16 %v2338, %v2322
        %v2371 = vpack.c.b16 %v2339, %v2323
        %v2372 = vpack.c.b16 %v2340, %v2324
        %v2373 = vpack.c.b16 %v2341, %v2325
        %v2374 = vpack.c.b16 %v2342, %v2326
        %v2375 = vpack.c.b16 %v2343, %v2327
        %v2376 = vpack.c.b16 %v2344, %v2328
        %v2377 = vpack.c.b16 %v2345, %v2329
        %v2378 = vpack.c.b16 %v2346, %v2330
        %v2379 = vpack.c.b16 %v2347, %v2331
        %v2380 = vpack.c.b16 %v2348, %v2332
        %v2381 = vpack.c.b16 %v2349, %v2333
        %v2415 = vsel %vm538, %v2171, 0
        %2417 = vmatprep.subr.bf16.mxu0 0
        %2418 = vmatpush1.bf16.msra.mxu0 0
        %2419 = vmatprep.subr.bf16.mxu0 0
        %2420 = vmatpush1.bf16.msra.mxu0 0
        %2421 = vmatprep.subr.bf16.mxu0 0
        %2422 = vmatpush1.bf16.msra.mxu0 0
        %2423 = vmatprep.subr.bf16.mxu0 0
        %2424 = vmatpush1.bf16.msra.mxu0 0
        %2425 = vmatprep.subr.bf16.mxu0 0
        %2426 = vmatpush1.bf16.msra.mxu0 0
        %2427 = vmatprep.subr.bf16.mxu0 0
        %2428 = vmatpush1.bf16.msra.mxu0 0
        %2429 = vmatprep.subr.bf16.mxu0 %v2367
        %2430 = vmatpush1.bf16.msra.mxu0 %v2366
        %2431 = vmatprep.subr.bf16.mxu0 %v2351
        %2432 = vmatpush1.bf16.msra.mxu0 %v2350
        %2433 = vmatprep.subr.bf16.mxu0 0
        %2434 = vmatpush2.bf16.msra.mxu0 0
        %2435 = vmatprep.subr.bf16.mxu0 0
        %2436 = vmatpush2.bf16.msra.mxu0 0
        %2437 = vmatprep.subr.bf16.mxu0 0
        %2438 = vmatpush2.bf16.msra.mxu0 0
        %2439 = vmatprep.subr.bf16.mxu0 0
        %2440 = vmatpush2.bf16.msra.mxu0 0
        %2441 = vmatprep.subr.bf16.mxu0 0
        %2442 = vmatpush2.bf16.msra.mxu0 0
        %2443 = vmatprep.subr.bf16.mxu0 0
        %2444 = vmatpush2.bf16.msra.mxu0 0
        %2445 = vmatprep.subr.bf16.mxu0 0
        %2446 = vmatpush2.bf16.msra.mxu0 0
        %2447 = vmatprep.subr.bf16.mxu0 0
        %2448 = vmatpush2.bf16.msra.mxu0 0
        %2449 = vmatprep.mubr.bf16.mxu0 0
        %2450 = vmatmul.mubr.bf16.gmra.mxu0 %v2415
        %v2451 = vpop.f32.mrf.mxu0
        %v2452 = vadd.f32 %v2177, %v2451
        %v2453 = vpop.f32.mrf.mxu0
        %v2454 = vadd.f32 %v2181, %v2453
        %v2455 = vpop.f32.mrf.mxu0
        %v2456 = vadd.f32 %v2177, %v2455
        %v2457 = vpop.f32.mrf.mxu0
        %v2458 = vadd.f32 %v2181, %v2457
        %2459 = vdwg.mxu0
        %2460 = vmatprep.subr.bf16.mxu0 0
        %2461 = vmatpush1.bf16.msra.mxu0 0
        %2462 = vmatprep.subr.bf16.mxu0 0
        %2463 = vmatpush1.bf16.msra.mxu0 0
        %2464 = vmatprep.subr.bf16.mxu0 0
        %2465 = vmatpush1.bf16.msra.mxu0 0
        %2466 = vmatprep.subr.bf16.mxu0 0
        %2467 = vmatpush1.bf16.msra.mxu0 0
        %2468 = vmatprep.subr.bf16.mxu0 0
        %2469 = vmatpush1.bf16.msra.mxu0 0
        %2470 = vmatprep.subr.bf16.mxu0 0
        %2471 = vmatpush1.bf16.msra.mxu0 0
        %2472 = vmatprep.subr.bf16.mxu0 %v2369
        %2473 = vmatpush1.bf16.msra.mxu0 %v2368
        %2474 = vmatprep.subr.bf16.mxu0 %v2353
        %2475 = vmatpush1.bf16.msra.mxu0 %v2352
        %2476 = vmatprep.subr.bf16.mxu0 0
        %2477 = vmatpush2.bf16.msra.mxu0 0
        %2478 = vmatprep.subr.bf16.mxu0 0
        %2479 = vmatpush2.bf16.msra.mxu0 0
        %2480 = vmatprep.subr.bf16.mxu0 0
        %2481 = vmatpush2.bf16.msra.mxu0 0
        %2482 = vmatprep.subr.bf16.mxu0 0
        %2483 = vmatpush2.bf16.msra.mxu0 0
        %2484 = vmatprep.subr.bf16.mxu0 0
        %2485 = vmatpush2.bf16.msra.mxu0 0
        %2486 = vmatprep.subr.bf16.mxu0 0
        %2487 = vmatpush2.bf16.msra.mxu0 0
        %2488 = vmatprep.subr.bf16.mxu0 0
        %2489 = vmatpush2.bf16.msra.mxu0 0
        %2490 = vmatprep.subr.bf16.mxu0 0
        %2491 = vmatpush2.bf16.msra.mxu0 0
        %2492 = vmatprep.mubr.bf16.mxu0 0
        %2493 = vmatmul.mubr.bf16.gmra.mxu0 %v2415
        %v2494 = vpop.f32.mrf.mxu0
        %v2495 = vadd.f32 %v2185, %v2494
        %v2496 = vpop.f32.mrf.mxu0
        %v2497 = vadd.f32 %v2189, %v2496
        %v2498 = vpop.f32.mrf.mxu0
        %v2499 = vadd.f32 %v2185, %v2498
        %v2500 = vpop.f32.mrf.mxu0
        %v2501 = vadd.f32 %v2189, %v2500
        %2502 = vdwg.mxu0
        %2503 = vmatprep.subr.bf16.mxu0 0
        %2504 = vmatpush1.bf16.msra.mxu0 0
        %2505 = vmatprep.subr.bf16.mxu0 0
        %2506 = vmatpush1.bf16.msra.mxu0 0
        %2507 = vmatprep.subr.bf16.mxu0 0
        %2508 = vmatpush1.bf16.msra.mxu0 0
        %2509 = vmatprep.subr.bf16.mxu0 0
        %2510 = vmatpush1.bf16.msra.mxu0 0
        %2511 = vmatprep.subr.bf16.mxu0 0
        %2512 = vmatpush1.bf16.msra.mxu0 0
        %2513 = vmatprep.subr.bf16.mxu0 0
        %2514 = vmatpush1.bf16.msra.mxu0 0
        %2515 = vmatprep.subr.bf16.mxu0 %v2371
        %2516 = vmatpush1.bf16.msra.mxu0 %v2370
        %2517 = vmatprep.subr.bf16.mxu0 %v2355
        %2518 = vmatpush1.bf16.msra.mxu0 %v2354
        %2519 = vmatprep.subr.bf16.mxu0 0
        %2520 = vmatpush2.bf16.msra.mxu0 0
        %2521 = vmatprep.subr.bf16.mxu0 0
        %2522 = vmatpush2.bf16.msra.mxu0 0
        %2523 = vmatprep.subr.bf16.mxu0 0
        %2524 = vmatpush2.bf16.msra.mxu0 0
        %2525 = vmatprep.subr.bf16.mxu0 0
        %2526 = vmatpush2.bf16.msra.mxu0 0
        %2527 = vmatprep.subr.bf16.mxu0 0
        %2528 = vmatpush2.bf16.msra.mxu0 0
        %2529 = vmatprep.subr.bf16.mxu0 0
        %2530 = vmatpush2.bf16.msra.mxu0 0
        %2531 = vmatprep.subr.bf16.mxu0 0
        %2532 = vmatpush2.bf16.msra.mxu0 0
        %2533 = vmatprep.subr.bf16.mxu0 0
        %2534 = vmatpush2.bf16.msra.mxu0 0
        %2535 = vmatprep.mubr.bf16.mxu0 0
        %2536 = vmatmul.mubr.bf16.gmra.mxu0 %v2415
        %v2537 = vpop.f32.mrf.mxu0
        %v2538 = vadd.f32 %v2193, %v2537
        %v2539 = vpop.f32.mrf.mxu0
        %v2540 = vadd.f32 %v2197, %v2539
        %v2541 = vpop.f32.mrf.mxu0
        %v2542 = vadd.f32 %v2193, %v2541
        %v2543 = vpop.f32.mrf.mxu0
        %v2544 = vadd.f32 %v2197, %v2543
        %2545 = vdwg.mxu0
        %2546 = vmatprep.subr.bf16.mxu0 0
        %2547 = vmatpush1.bf16.msra.mxu0 0
        %2548 = vmatprep.subr.bf16.mxu0 0
        %2549 = vmatpush1.bf16.msra.mxu0 0
        %2550 = vmatprep.subr.bf16.mxu0 0
        %2551 = vmatpush1.bf16.msra.mxu0 0
        %2552 = vmatprep.subr.bf16.mxu0 0
        %2553 = vmatpush1.bf16.msra.mxu0 0
        %2554 = vmatprep.subr.bf16.mxu0 0
        %2555 = vmatpush1.bf16.msra.mxu0 0
        %2556 = vmatprep.subr.bf16.mxu0 0
        %2557 = vmatpush1.bf16.msra.mxu0 0
        %2558 = vmatprep.subr.bf16.mxu0 %v2373
        %2559 = vmatpush1.bf16.msra.mxu0 %v2372
        %2560 = vmatprep.subr.bf16.mxu0 %v2357
        %2561 = vmatpush1.bf16.msra.mxu0 %v2356
        %2562 = vmatprep.subr.bf16.mxu0 0
        %2563 = vmatpush2.bf16.msra.mxu0 0
        %2564 = vmatprep.subr.bf16.mxu0 0
        %2565 = vmatpush2.bf16.msra.mxu0 0
        %2566 = vmatprep.subr.bf16.mxu0 0
        %2567 = vmatpush2.bf16.msra.mxu0 0
        %2568 = vmatprep.subr.bf16.mxu0 0
        %2569 = vmatpush2.bf16.msra.mxu0 0
        %2570 = vmatprep.subr.bf16.mxu0 0
        %2571 = vmatpush2.bf16.msra.mxu0 0
        %2572 = vmatprep.subr.bf16.mxu0 0
        %2573 = vmatpush2.bf16.msra.mxu0 0
        %2574 = vmatprep.subr.bf16.mxu0 0
        %2575 = vmatpush2.bf16.msra.mxu0 0
        %2576 = vmatprep.subr.bf16.mxu0 0
        %2577 = vmatpush2.bf16.msra.mxu0 0
        %2578 = vmatprep.mubr.bf16.mxu0 0
        %2579 = vmatmul.mubr.bf16.gmra.mxu0 %v2415
        %v2580 = vpop.f32.mrf.mxu0
        %v2581 = vadd.f32 %v2201, %v2580
        %v2582 = vpop.f32.mrf.mxu0
        %v2583 = vadd.f32 %v2205, %v2582
        %v2584 = vpop.f32.mrf.mxu0
        %v2585 = vadd.f32 %v2201, %v2584
        %v2586 = vpop.f32.mrf.mxu0
        %v2587 = vadd.f32 %v2205, %v2586
        %2588 = vdwg.mxu0
        %2589 = vmatprep.subr.bf16.mxu0 0
        %2590 = vmatpush1.bf16.msra.mxu0 0
        %2591 = vmatprep.subr.bf16.mxu0 0
        %2592 = vmatpush1.bf16.msra.mxu0 0
        %2593 = vmatprep.subr.bf16.mxu0 0
        %2594 = vmatpush1.bf16.msra.mxu0 0
        %2595 = vmatprep.subr.bf16.mxu0 0
        %2596 = vmatpush1.bf16.msra.mxu0 0
        %2597 = vmatprep.subr.bf16.mxu0 0
        %2598 = vmatpush1.bf16.msra.mxu0 0
        %2599 = vmatprep.subr.bf16.mxu0 0
        %2600 = vmatpush1.bf16.msra.mxu0 0
        %2601 = vmatprep.subr.bf16.mxu0 %v2375
        %2602 = vmatpush1.bf16.msra.mxu0 %v2374
        %2603 = vmatprep.subr.bf16.mxu0 %v2359
        %2604 = vmatpush1.bf16.msra.mxu0 %v2358
        %2605 = vmatprep.subr.bf16.mxu0 0
        %2606 = vmatpush2.bf16.msra.mxu0 0
        %2607 = vmatprep.subr.bf16.mxu0 0
        %2608 = vmatpush2.bf16.msra.mxu0 0
        %2609 = vmatprep.subr.bf16.mxu0 0
        %2610 = vmatpush2.bf16.msra.mxu0 0
        %2611 = vmatprep.subr.bf16.mxu0 0
        %2612 = vmatpush2.bf16.msra.mxu0 0
        %2613 = vmatprep.subr.bf16.mxu0 0
        %2614 = vmatpush2.bf16.msra.mxu0 0
        %2615 = vmatprep.subr.bf16.mxu0 0
        %2616 = vmatpush2.bf16.msra.mxu0 0
        %2617 = vmatprep.subr.bf16.mxu0 0
        %2618 = vmatpush2.bf16.msra.mxu0 0
        %2619 = vmatprep.subr.bf16.mxu0 0
        %2620 = vmatpush2.bf16.msra.mxu0 0
        %2621 = vmatprep.mubr.bf16.mxu0 0
        %2622 = vmatmul.mubr.bf16.gmra.mxu0 %v2415
        %v2623 = vpop.f32.mrf.mxu0
        %v2624 = vadd.f32 %v2209, %v2623
        %v2625 = vpop.f32.mrf.mxu0
        %v2626 = vadd.f32 %v2213, %v2625
        %v2627 = vpop.f32.mrf.mxu0
        %v2628 = vadd.f32 %v2209, %v2627
        %v2629 = vpop.f32.mrf.mxu0
        %v2630 = vadd.f32 %v2213, %v2629
        %2631 = vdwg.mxu0
        %2632 = vmatprep.subr.bf16.mxu0 0
        %2633 = vmatpush1.bf16.msra.mxu0 0
        %2634 = vmatprep.subr.bf16.mxu0 0
        %2635 = vmatpush1.bf16.msra.mxu0 0
        %2636 = vmatprep.subr.bf16.mxu0 0
        %2637 = vmatpush1.bf16.msra.mxu0 0
        %2638 = vmatprep.subr.bf16.mxu0 0
        %2639 = vmatpush1.bf16.msra.mxu0 0
        %2640 = vmatprep.subr.bf16.mxu0 0
        %2641 = vmatpush1.bf16.msra.mxu0 0
        %2642 = vmatprep.subr.bf16.mxu0 0
        %2643 = vmatpush1.bf16.msra.mxu0 0
        %2644 = vmatprep.subr.bf16.mxu0 %v2377
        %2645 = vmatpush1.bf16.msra.mxu0 %v2376
        %2646 = vmatprep.subr.bf16.mxu0 %v2361
        %2647 = vmatpush1.bf16.msra.mxu0 %v2360
        %2648 = vmatprep.subr.bf16.mxu0 0
        %2649 = vmatpush2.bf16.msra.mxu0 0
        %2650 = vmatprep.subr.bf16.mxu0 0
        %2651 = vmatpush2.bf16.msra.mxu0 0
        %2652 = vmatprep.subr.bf16.mxu0 0
        %2653 = vmatpush2.bf16.msra.mxu0 0
        %2654 = vmatprep.subr.bf16.mxu0 0
        %2655 = vmatpush2.bf16.msra.mxu0 0
        %2656 = vmatprep.subr.bf16.mxu0 0
        %2657 = vmatpush2.bf16.msra.mxu0 0
        %2658 = vmatprep.subr.bf16.mxu0 0
        %2659 = vmatpush2.bf16.msra.mxu0 0
        %2660 = vmatprep.subr.bf16.mxu0 0
        %2661 = vmatpush2.bf16.msra.mxu0 0
        %2662 = vmatprep.subr.bf16.mxu0 0
        %2663 = vmatpush2.bf16.msra.mxu0 0
        %2664 = vmatprep.mubr.bf16.mxu0 0
        %2665 = vmatmul.mubr.bf16.gmra.mxu0 %v2415
        %v2666 = vpop.f32.mrf.mxu0
        %v2667 = vadd.f32 %v2217, %v2666
        %v2668 = vpop.f32.mrf.mxu0
        %v2669 = vadd.f32 %v2221, %v2668
        %v2670 = vpop.f32.mrf.mxu0
        %v2671 = vadd.f32 %v2217, %v2670
        %v2672 = vpop.f32.mrf.mxu0
        %v2673 = vadd.f32 %v2221, %v2672
        %2674 = vdwg.mxu0
        %2675 = vmatprep.subr.bf16.mxu0 0
        %2676 = vmatpush1.bf16.msra.mxu0 0
        %2677 = vmatprep.subr.bf16.mxu0 0
        %2678 = vmatpush1.bf16.msra.mxu0 0
        %2679 = vmatprep.subr.bf16.mxu0 0
        %2680 = vmatpush1.bf16.msra.mxu0 0
        %2681 = vmatprep.subr.bf16.mxu0 0
        %2682 = vmatpush1.bf16.msra.mxu0 0
        %2683 = vmatprep.subr.bf16.mxu0 0
        %2684 = vmatpush1.bf16.msra.mxu0 0
        %2685 = vmatprep.subr.bf16.mxu0 0
        %2686 = vmatpush1.bf16.msra.mxu0 0
        %2687 = vmatprep.subr.bf16.mxu0 %v2379
        %2688 = vmatpush1.bf16.msra.mxu0 %v2378
        %2689 = vmatprep.subr.bf16.mxu0 %v2363
        %2690 = vmatpush1.bf16.msra.mxu0 %v2362
        %2691 = vmatprep.subr.bf16.mxu0 0
        %2692 = vmatpush2.bf16.msra.mxu0 0
        %2693 = vmatprep.subr.bf16.mxu0 0
        %2694 = vmatpush2.bf16.msra.mxu0 0
        %2695 = vmatprep.subr.bf16.mxu0 0
        %2696 = vmatpush2.bf16.msra.mxu0 0
        %2697 = vmatprep.subr.bf16.mxu0 0
        %2698 = vmatpush2.bf16.msra.mxu0 0
        %2699 = vmatprep.subr.bf16.mxu0 0
        %2700 = vmatpush2.bf16.msra.mxu0 0
        %2701 = vmatprep.subr.bf16.mxu0 0
        %2702 = vmatpush2.bf16.msra.mxu0 0
        %2703 = vmatprep.subr.bf16.mxu0 0
        %2704 = vmatpush2.bf16.msra.mxu0 0
        %2705 = vmatprep.subr.bf16.mxu0 0
        %2706 = vmatpush2.bf16.msra.mxu0 0
        %2707 = vmatprep.mubr.bf16.mxu0 0
        %2708 = vmatmul.mubr.bf16.gmra.mxu0 %v2415
        %v2709 = vpop.f32.mrf.mxu0
        %v2710 = vadd.f32 %v2225, %v2709
        %v2711 = vpop.f32.mrf.mxu0
        %v2712 = vadd.f32 %v2229, %v2711
        %v2713 = vpop.f32.mrf.mxu0
        %v2714 = vadd.f32 %v2225, %v2713
        %v2715 = vpop.f32.mrf.mxu0
        %v2716 = vadd.f32 %v2229, %v2715
        %2717 = vdwg.mxu0
        %2718 = vmatprep.subr.bf16.mxu0 0
        %2719 = vmatpush1.bf16.msra.mxu0 0
        %2720 = vmatprep.subr.bf16.mxu0 0
        %2721 = vmatpush1.bf16.msra.mxu0 0
        %2722 = vmatprep.subr.bf16.mxu0 0
        %2723 = vmatpush1.bf16.msra.mxu0 0
        %2724 = vmatprep.subr.bf16.mxu0 0
        %2725 = vmatpush1.bf16.msra.mxu0 0
        %2726 = vmatprep.subr.bf16.mxu0 0
        %2727 = vmatpush1.bf16.msra.mxu0 0
        %2728 = vmatprep.subr.bf16.mxu0 0
        %2729 = vmatpush1.bf16.msra.mxu0 0
        %2730 = vmatprep.subr.bf16.mxu0 %v2381
        %2731 = vmatpush1.bf16.msra.mxu0 %v2380
        %2732 = vmatprep.subr.bf16.mxu0 %v2365
        %2733 = vmatpush1.bf16.msra.mxu0 %v2364
        %2734 = vmatprep.subr.bf16.mxu0 0
        %2735 = vmatpush2.bf16.msra.mxu0 0
        %2736 = vmatprep.subr.bf16.mxu0 0
        %2737 = vmatpush2.bf16.msra.mxu0 0
        %2738 = vmatprep.subr.bf16.mxu0 0
        %2739 = vmatpush2.bf16.msra.mxu0 0
        %2740 = vmatprep.subr.bf16.mxu0 0
        %2741 = vmatpush2.bf16.msra.mxu0 0
        %2742 = vmatprep.subr.bf16.mxu0 0
        %2743 = vmatpush2.bf16.msra.mxu0 0
        %2744 = vmatprep.subr.bf16.mxu0 0
        %2745 = vmatpush2.bf16.msra.mxu0 0
        %2746 = vmatprep.subr.bf16.mxu0 0
        %2747 = vmatpush2.bf16.msra.mxu0 0
        %2748 = vmatprep.subr.bf16.mxu0 0
        %2749 = vmatpush2.bf16.msra.mxu0 0
        %2750 = vmatprep.mubr.bf16.mxu0 0
        %2751 = vmatmul.mubr.bf16.gmra.mxu0 %v2415
        %v2752 = vpop.f32.mrf.mxu0
        %v2753 = vadd.f32 %v2233, %v2752
        %v2754 = vpop.f32.mrf.mxu0
        %v2755 = vadd.f32 %v2237, %v2754
        %v2756 = vpop.f32.mrf.mxu0
        %v2757 = vadd.f32 %v2233, %v2756
        %v2758 = vpop.f32.mrf.mxu0
        %v2759 = vadd.f32 %v2237, %v2758
        %2760 = vdwg.mxu0
        %v2761 = vmax.f32 %v2452, 0.0
        %v2762 = vmax.f32 %v2454, 0.0
        %v2763 = vmax.f32 %v2495, 0.0
        %v2764 = vmax.f32 %v2497, 0.0
        %v2765 = vmax.f32 %v2538, 0.0
        %v2766 = vmax.f32 %v2540, 0.0
        %v2767 = vmax.f32 %v2581, 0.0
        %v2768 = vmax.f32 %v2583, 0.0
        %v2769 = vmax.f32 %v2624, 0.0
        %v2770 = vmax.f32 %v2626, 0.0
        %v2771 = vmax.f32 %v2667, 0.0
        %v2772 = vmax.f32 %v2669, 0.0
        %v2773 = vmax.f32 %v2710, 0.0
        %v2774 = vmax.f32 %v2712, 0.0
        %v2775 = vmax.f32 %v2753, 0.0
        %v2776 = vmax.f32 %v2755, 0.0
        %v2777 = vmax.f32 %v2456, 0.0
        %v2778 = vmax.f32 %v2458, 0.0
        %v2779 = vmax.f32 %v2499, 0.0
        %v2780 = vmax.f32 %v2501, 0.0
        %v2781 = vmax.f32 %v2542, 0.0
        %v2782 = vmax.f32 %v2544, 0.0
        %v2783 = vmax.f32 %v2585, 0.0
        %v2784 = vmax.f32 %v2587, 0.0
        %v2785 = vmax.f32 %v2628, 0.0
        %v2786 = vmax.f32 %v2630, 0.0
        %v2787 = vmax.f32 %v2671, 0.0
        %v2788 = vmax.f32 %v2673, 0.0
        %v2789 = vmax.f32 %v2714, 0.0
        %v2790 = vmax.f32 %v2716, 0.0
        %v2791 = vmax.f32 %v2757, 0.0
        %v2792 = vmax.f32 %v2759, 0.0
        %v2793 = vpack.c.bf16 %v2777, %v2761
        %v2794 = vpack.c.bf16 %v2778, %v2762
        %v2795 = vpack.c.bf16 %v2779, %v2763
        %v2796 = vpack.c.bf16 %v2780, %v2764
        %v2797 = vpack.c.bf16 %v2781, %v2765
        %v2798 = vpack.c.bf16 %v2782, %v2766
        %v2799 = vpack.c.bf16 %v2783, %v2767
        %v2800 = vpack.c.bf16 %v2784, %v2768
        %v2801 = vpack.c.bf16 %v2785, %v2769
        %v2802 = vpack.c.bf16 %v2786, %v2770
        %v2803 = vpack.c.bf16 %v2787, %v2771
        %v2804 = vpack.c.bf16 %v2788, %v2772
        %v2805 = vpack.c.bf16 %v2789, %v2773
        %v2806 = vpack.c.bf16 %v2790, %v2774
        %v2807 = vpack.c.bf16 %v2791, %v2775
        %v2808 = vpack.c.bf16 %v2792, %v2776
        %v2809 = vlaneseq
        %v2810 = vshrl.u32 %v2809, 7
        %v2811 = vsub.s32 4, %v2810
        %v2812 = vrot.slane %v533, %v2811
        %v2845 = vunpack.c.l.b16 %v2137
        %v2846 = vunpack.c.h.b16 %v2137
        %v2847 = vunpack.c.l.b16 %v2138
        %v2848 = vunpack.c.h.b16 %v2138
        %v2849 = vunpack.c.l.b16 %v2139
        %v2850 = vunpack.c.h.b16 %v2139
        %v2851 = vunpack.c.l.b16 %v2140
        %v2852 = vunpack.c.h.b16 %v2140
        %v2853 = vunpack.c.l.b16 %v2141
        %v2854 = vunpack.c.h.b16 %v2141
        %v2855 = vunpack.c.l.b16 %v2142
        %v2856 = vunpack.c.h.b16 %v2142
        %v2857 = vunpack.c.l.b16 %v2143
        %v2858 = vunpack.c.h.b16 %v2143
        %v2859 = vunpack.c.l.b16 %v2144
        %v2860 = vunpack.c.h.b16 %v2144
        %v2861 = vunpack.c.l.b16 %v2145
        %v2862 = vunpack.c.h.b16 %v2145
        %v2863 = vunpack.c.l.b16 %v2146
        %v2864 = vunpack.c.h.b16 %v2146
        %v2865 = vunpack.c.l.b16 %v2147
        %v2866 = vunpack.c.h.b16 %v2147
        %v2867 = vunpack.c.l.b16 %v2148
        %v2868 = vunpack.c.h.b16 %v2148
        %v2869 = vunpack.c.l.b16 %v2149
        %v2870 = vunpack.c.h.b16 %v2149
        %v2871 = vunpack.c.l.b16 %v2150
        %v2872 = vunpack.c.h.b16 %v2150
        %v2873 = vunpack.c.l.b16 %v2151
        %v2874 = vunpack.c.h.b16 %v2151
        %v2875 = vunpack.c.l.b16 %v2152
        %v2876 = vunpack.c.h.b16 %v2152
        %v2877 = vunpack.c.l.b16 %v2153
        %v2878 = vunpack.c.h.b16 %v2153
        %v2879 = vunpack.c.l.b16 %v2154
        %v2880 = vunpack.c.h.b16 %v2154
        %v2881 = vunpack.c.l.b16 %v2155
        %v2882 = vunpack.c.h.b16 %v2155
        %v2883 = vunpack.c.l.b16 %v2156
        %v2884 = vunpack.c.h.b16 %v2156
        %v2885 = vunpack.c.l.b16 %v2157
        %v2886 = vunpack.c.h.b16 %v2157
        %v2887 = vunpack.c.l.b16 %v2158
        %v2888 = vunpack.c.h.b16 %v2158
        %v2889 = vunpack.c.l.b16 %v2159
        %v2890 = vunpack.c.h.b16 %v2159
        %v2891 = vunpack.c.l.b16 %v2160
        %v2892 = vunpack.c.h.b16 %v2160
        %v2893 = vunpack.c.l.b16 %v2161
        %v2894 = vunpack.c.h.b16 %v2161
        %v2895 = vunpack.c.l.b16 %v2162
        %v2896 = vunpack.c.h.b16 %v2162
        %v2897 = vunpack.c.l.b16 %v2163
        %v2898 = vunpack.c.h.b16 %v2163
        %v2899 = vunpack.c.l.b16 %v2164
        %v2900 = vunpack.c.h.b16 %v2164
        %v2901 = vunpack.c.l.b16 %v2165
        %v2902 = vunpack.c.h.b16 %v2165
        %v2903 = vunpack.c.l.b16 %v2166
        %v2904 = vunpack.c.h.b16 %v2166
        %v2905 = vunpack.c.l.b16 %v2167
        %v2906 = vunpack.c.h.b16 %v2167
        %v2907 = vunpack.c.l.b16 %v2168
        %v2908 = vunpack.c.h.b16 %v2168
        %v2909 = vpack.c.b16 %v2861, %v2845
        %v2910 = vpack.c.b16 %v2862, %v2846
        %v2911 = vpack.c.b16 %v2863, %v2847
        %v2912 = vpack.c.b16 %v2864, %v2848
        %v2913 = vpack.c.b16 %v2865, %v2849
        %v2914 = vpack.c.b16 %v2866, %v2850
        %v2915 = vpack.c.b16 %v2867, %v2851
        %v2916 = vpack.c.b16 %v2868, %v2852
        %v2917 = vpack.c.b16 %v2869, %v2853
        %v2918 = vpack.c.b16 %v2870, %v2854
        %v2919 = vpack.c.b16 %v2871, %v2855
        %v2920 = vpack.c.b16 %v2872, %v2856
        %v2921 = vpack.c.b16 %v2873, %v2857
        %v2922 = vpack.c.b16 %v2874, %v2858
        %v2923 = vpack.c.b16 %v2875, %v2859
        %v2924 = vpack.c.b16 %v2876, %v2860
        %v2925 = vpack.c.b16 %v2893, %v2877
        %v2926 = vpack.c.b16 %v2894, %v2878
        %v2927 = vpack.c.b16 %v2895, %v2879
        %v2928 = vpack.c.b16 %v2896, %v2880
        %v2929 = vpack.c.b16 %v2897, %v2881
        %v2930 = vpack.c.b16 %v2898, %v2882
        %v2931 = vpack.c.b16 %v2899, %v2883
        %v2932 = vpack.c.b16 %v2900, %v2884
        %v2933 = vpack.c.b16 %v2901, %v2885
        %v2934 = vpack.c.b16 %v2902, %v2886
        %v2935 = vpack.c.b16 %v2903, %v2887
        %v2936 = vpack.c.b16 %v2904, %v2888
        %v2937 = vpack.c.b16 %v2905, %v2889
        %v2938 = vpack.c.b16 %v2906, %v2890
        %v2939 = vpack.c.b16 %v2907, %v2891
        %v2940 = vpack.c.b16 %v2908, %v2892
        %2973 = vmatprep.subr.bf16.mxu0 0
        %2974 = vmatpush1.bf16.xpose.msra.mxu0 0
        %2975 = vmatprep.subr.bf16.mxu0 0
        %2976 = vmatpush1.bf16.xpose.msra.mxu0 0
        %2977 = vmatprep.subr.bf16.mxu0 0
        %2978 = vmatpush1.bf16.xpose.msra.mxu0 0
        %2979 = vmatprep.subr.bf16.mxu0 0
        %2980 = vmatpush1.bf16.xpose.msra.mxu0 0
        %2981 = vmatprep.subr.bf16.mxu0 0
        %2982 = vmatpush1.bf16.xpose.msra.mxu0 0
        %2983 = vmatprep.subr.bf16.mxu0 0
        %2984 = vmatpush1.bf16.xpose.msra.mxu0 0
        %2985 = vmatprep.subr.bf16.mxu0 %v2926
        %2986 = vmatpush1.bf16.xpose.msra.mxu0 %v2925
        %2987 = vmatprep.subr.bf16.mxu0 %v2910
        %2988 = vmatpush1.bf16.xpose.msra.mxu0 %v2909
        %2989 = vmatprep.subr.bf16.mxu0 0
        %2990 = vmatpush2.bf16.xpose.msra.mxu0 0
        %2991 = vmatprep.subr.bf16.mxu0 0
        %2992 = vmatpush2.bf16.xpose.msra.mxu0 0
        %2993 = vmatprep.subr.bf16.mxu0 0
        %2994 = vmatpush2.bf16.xpose.msra.mxu0 0
        %2995 = vmatprep.subr.bf16.mxu0 0
        %2996 = vmatpush2.bf16.xpose.msra.mxu0 0
        %2997 = vmatprep.subr.bf16.mxu0 0
        %2998 = vmatpush2.bf16.xpose.msra.mxu0 0
        %2999 = vmatprep.subr.bf16.mxu0 0
        %3000 = vmatpush2.bf16.xpose.msra.mxu0 0
        %3001 = vmatprep.subr.bf16.mxu0 0
        %3002 = vmatpush2.bf16.xpose.msra.mxu0 0
        %3003 = vmatprep.subr.bf16.mxu0 0
        %3004 = vmatpush2.bf16.xpose.msra.mxu0 0
        %3005 = vmatprep.mubr.bf16.mxu0 %v2794
        %3006 = vmatmul.mubr.bf16.gmra.mxu0 %v2793
        %v3007 = vpop.f32.mrf.mxu0
        %v3008 = vadd.f32 %v2812, %v3007
        %v3009 = vpop.f32.mrf.mxu0
        %v3010 = vpop.f32.mrf.mxu0
        %v3011 = vadd.f32 %v2812, %v3010
        %v3012 = vpop.f32.mrf.mxu0
        %3013 = vdwg.mxu0
        %3014 = vmatprep.subr.bf16.mxu0 0
        %3015 = vmatpush1.bf16.xpose.msra.mxu0 0
        %3016 = vmatprep.subr.bf16.mxu0 0
        %3017 = vmatpush1.bf16.xpose.msra.mxu0 0
        %3018 = vmatprep.subr.bf16.mxu0 0
        %3019 = vmatpush1.bf16.xpose.msra.mxu0 0
        %3020 = vmatprep.subr.bf16.mxu0 0
        %3021 = vmatpush1.bf16.xpose.msra.mxu0 0
        %3022 = vmatprep.subr.bf16.mxu0 0
        %3023 = vmatpush1.bf16.xpose.msra.mxu0 0
        %3024 = vmatprep.subr.bf16.mxu0 0
        %3025 = vmatpush1.bf16.xpose.msra.mxu0 0
        %3026 = vmatprep.subr.bf16.mxu0 %v2928
        %3027 = vmatpush1.bf16.xpose.msra.mxu0 %v2927
        %3028 = vmatprep.subr.bf16.mxu0 %v2912
        %3029 = vmatpush1.bf16.xpose.msra.mxu0 %v2911
        %3030 = vmatprep.subr.bf16.mxu0 0
        %3031 = vmatpush2.bf16.xpose.msra.mxu0 0
        %3032 = vmatprep.subr.bf16.mxu0 0
        %3033 = vmatpush2.bf16.xpose.msra.mxu0 0
        %3034 = vmatprep.subr.bf16.mxu0 0
        %3035 = vmatpush2.bf16.xpose.msra.mxu0 0
        %3036 = vmatprep.subr.bf16.mxu0 0
        %3037 = vmatpush2.bf16.xpose.msra.mxu0 0
        %3038 = vmatprep.subr.bf16.mxu0 0
        %3039 = vmatpush2.bf16.xpose.msra.mxu0 0
        %3040 = vmatprep.subr.bf16.mxu0 0
        %3041 = vmatpush2.bf16.xpose.msra.mxu0 0
        %3042 = vmatprep.subr.bf16.mxu0 0
        %3043 = vmatpush2.bf16.xpose.msra.mxu0 0
        %3044 = vmatprep.subr.bf16.mxu0 0
        %3045 = vmatpush2.bf16.xpose.msra.mxu0 0
        %3046 = vmatprep.mubr.bf16.mxu0 %v2796
        %3047 = vmatmul.mubr.bf16.gmra.mxu0 %v2795
        %v3048 = vpop.f32.mrf.mxu0
        %v3049 = vadd.f32 %v3008, %v3048
        %v3050 = vpop.f32.mrf.mxu0
        %v3051 = vpop.f32.mrf.mxu0
        %v3052 = vadd.f32 %v3011, %v3051
        %v3053 = vpop.f32.mrf.mxu0
        %3054 = vdwg.mxu0
        %3055 = vmatprep.subr.bf16.mxu0 0
        %3056 = vmatpush1.bf16.xpose.msra.mxu0 0
        %3057 = vmatprep.subr.bf16.mxu0 0
        %3058 = vmatpush1.bf16.xpose.msra.mxu0 0
        %3059 = vmatprep.subr.bf16.mxu0 0
        %3060 = vmatpush1.bf16.xpose.msra.mxu0 0
        %3061 = vmatprep.subr.bf16.mxu0 0
        %3062 = vmatpush1.bf16.xpose.msra.mxu0 0
        %3063 = vmatprep.subr.bf16.mxu0 0
        %3064 = vmatpush1.bf16.xpose.msra.mxu0 0
        %3065 = vmatprep.subr.bf16.mxu0 0
        %3066 = vmatpush1.bf16.xpose.msra.mxu0 0
        %3067 = vmatprep.subr.bf16.mxu0 %v2930
        %3068 = vmatpush1.bf16.xpose.msra.mxu0 %v2929
        %3069 = vmatprep.subr.bf16.mxu0 %v2914
        %3070 = vmatpush1.bf16.xpose.msra.mxu0 %v2913
        %3071 = vmatprep.subr.bf16.mxu0 0
        %3072 = vmatpush2.bf16.xpose.msra.mxu0 0
        %3073 = vmatprep.subr.bf16.mxu0 0
        %3074 = vmatpush2.bf16.xpose.msra.mxu0 0
        %3075 = vmatprep.subr.bf16.mxu0 0
        %3076 = vmatpush2.bf16.xpose.msra.mxu0 0
        %3077 = vmatprep.subr.bf16.mxu0 0
        %3078 = vmatpush2.bf16.xpose.msra.mxu0 0
        %3079 = vmatprep.subr.bf16.mxu0 0
        %3080 = vmatpush2.bf16.xpose.msra.mxu0 0
        %3081 = vmatprep.subr.bf16.mxu0 0
        %3082 = vmatpush2.bf16.xpose.msra.mxu0 0
        %3083 = vmatprep.subr.bf16.mxu0 0
        %3084 = vmatpush2.bf16.xpose.msra.mxu0 0
        %3085 = vmatprep.subr.bf16.mxu0 0
        %3086 = vmatpush2.bf16.xpose.msra.mxu0 0
        %3087 = vmatprep.mubr.bf16.mxu0 %v2798
        %3088 = vmatmul.mubr.bf16.gmra.mxu0 %v2797
        %v3089 = vpop.f32.mrf.mxu0
        %v3090 = vadd.f32 %v3049, %v3089
        %v3091 = vpop.f32.mrf.mxu0
        %v3092 = vpop.f32.mrf.mxu0
        %v3093 = vadd.f32 %v3052, %v3092
        %v3094 = vpop.f32.mrf.mxu0
        %3095 = vdwg.mxu0
        %3096 = vmatprep.subr.bf16.mxu0 0
        %3097 = vmatpush1.bf16.xpose.msra.mxu0 0
        %3098 = vmatprep.subr.bf16.mxu0 0
        %3099 = vmatpush1.bf16.xpose.msra.mxu0 0
        %3100 = vmatprep.subr.bf16.mxu0 0
        %3101 = vmatpush1.bf16.xpose.msra.mxu0 0
        %3102 = vmatprep.subr.bf16.mxu0 0
        %3103 = vmatpush1.bf16.xpose.msra.mxu0 0
        %3104 = vmatprep.subr.bf16.mxu0 0
        %3105 = vmatpush1.bf16.xpose.msra.mxu0 0
        %3106 = vmatprep.subr.bf16.mxu0 0
        %3107 = vmatpush1.bf16.xpose.msra.mxu0 0
        %3108 = vmatprep.subr.bf16.mxu0 %v2932
        %3109 = vmatpush1.bf16.xpose.msra.mxu0 %v2931
        %3110 = vmatprep.subr.bf16.mxu0 %v2916
        %3111 = vmatpush1.bf16.xpose.msra.mxu0 %v2915
        %3112 = vmatprep.subr.bf16.mxu0 0
        %3113 = vmatpush2.bf16.xpose.msra.mxu0 0
        %3114 = vmatprep.subr.bf16.mxu0 0
        %3115 = vmatpush2.bf16.xpose.msra.mxu0 0
        %3116 = vmatprep.subr.bf16.mxu0 0
        %3117 = vmatpush2.bf16.xpose.msra.mxu0 0
        %3118 = vmatprep.subr.bf16.mxu0 0
        %3119 = vmatpush2.bf16.xpose.msra.mxu0 0
        %3120 = vmatprep.subr.bf16.mxu0 0
        %3121 = vmatpush2.bf16.xpose.msra.mxu0 0
        %3122 = vmatprep.subr.bf16.mxu0 0
        %3123 = vmatpush2.bf16.xpose.msra.mxu0 0
        %3124 = vmatprep.subr.bf16.mxu0 0
        %3125 = vmatpush2.bf16.xpose.msra.mxu0 0
        %3126 = vmatprep.subr.bf16.mxu0 0
        %3127 = vmatpush2.bf16.xpose.msra.mxu0 0
        %3128 = vmatprep.mubr.bf16.mxu0 %v2800
        %3129 = vmatmul.mubr.bf16.gmra.mxu0 %v2799
        %v3130 = vpop.f32.mrf.mxu0
        %v3131 = vadd.f32 %v3090, %v3130
        %v3132 = vpop.f32.mrf.mxu0
        %v3133 = vpop.f32.mrf.mxu0
        %v3134 = vadd.f32 %v3093, %v3133
        %v3135 = vpop.f32.mrf.mxu0
        %3136 = vdwg.mxu0
        %3137 = vmatprep.subr.bf16.mxu0 0
        %3138 = vmatpush1.bf16.xpose.msra.mxu0 0
        %3139 = vmatprep.subr.bf16.mxu0 0
        %3140 = vmatpush1.bf16.xpose.msra.mxu0 0
        %3141 = vmatprep.subr.bf16.mxu0 0
        %3142 = vmatpush1.bf16.xpose.msra.mxu0 0
        %3143 = vmatprep.subr.bf16.mxu0 0
        %3144 = vmatpush1.bf16.xpose.msra.mxu0 0
        %3145 = vmatprep.subr.bf16.mxu0 0
        %3146 = vmatpush1.bf16.xpose.msra.mxu0 0
        %3147 = vmatprep.subr.bf16.mxu0 0
        %3148 = vmatpush1.bf16.xpose.msra.mxu0 0
        %3149 = vmatprep.subr.bf16.mxu0 %v2934
        %3150 = vmatpush1.bf16.xpose.msra.mxu0 %v2933
        %3151 = vmatprep.subr.bf16.mxu0 %v2918
        %3152 = vmatpush1.bf16.xpose.msra.mxu0 %v2917
        %3153 = vmatprep.subr.bf16.mxu0 0
        %3154 = vmatpush2.bf16.xpose.msra.mxu0 0
        %3155 = vmatprep.subr.bf16.mxu0 0
        %3156 = vmatpush2.bf16.xpose.msra.mxu0 0
        %3157 = vmatprep.subr.bf16.mxu0 0
        %3158 = vmatpush2.bf16.xpose.msra.mxu0 0
        %3159 = vmatprep.subr.bf16.mxu0 0
        %3160 = vmatpush2.bf16.xpose.msra.mxu0 0
        %3161 = vmatprep.subr.bf16.mxu0 0
        %3162 = vmatpush2.bf16.xpose.msra.mxu0 0
        %3163 = vmatprep.subr.bf16.mxu0 0
        %3164 = vmatpush2.bf16.xpose.msra.mxu0 0
        %3165 = vmatprep.subr.bf16.mxu0 0
        %3166 = vmatpush2.bf16.xpose.msra.mxu0 0
        %3167 = vmatprep.subr.bf16.mxu0 0
        %3168 = vmatpush2.bf16.xpose.msra.mxu0 0
        %3169 = vmatprep.mubr.bf16.mxu0 %v2802
        %3170 = vmatmul.mubr.bf16.gmra.mxu0 %v2801
        %v3171 = vpop.f32.mrf.mxu0
        %v3172 = vadd.f32 %v3131, %v3171
        %v3173 = vpop.f32.mrf.mxu0
        %v3174 = vpop.f32.mrf.mxu0
        %v3175 = vadd.f32 %v3134, %v3174
        %v3176 = vpop.f32.mrf.mxu0
        %3177 = vdwg.mxu0
        %3178 = vmatprep.subr.bf16.mxu0 0
        %3179 = vmatpush1.bf16.xpose.msra.mxu0 0
        %3180 = vmatprep.subr.bf16.mxu0 0
        %3181 = vmatpush1.bf16.xpose.msra.mxu0 0
        %3182 = vmatprep.subr.bf16.mxu0 0
        %3183 = vmatpush1.bf16.xpose.msra.mxu0 0
        %3184 = vmatprep.subr.bf16.mxu0 0
        %3185 = vmatpush1.bf16.xpose.msra.mxu0 0
        %3186 = vmatprep.subr.bf16.mxu0 0
        %3187 = vmatpush1.bf16.xpose.msra.mxu0 0
        %3188 = vmatprep.subr.bf16.mxu0 0
        %3189 = vmatpush1.bf16.xpose.msra.mxu0 0
        %3190 = vmatprep.subr.bf16.mxu0 %v2936
        %3191 = vmatpush1.bf16.xpose.msra.mxu0 %v2935
        %3192 = vmatprep.subr.bf16.mxu0 %v2920
        %3193 = vmatpush1.bf16.xpose.msra.mxu0 %v2919
        %3194 = vmatprep.subr.bf16.mxu0 0
        %3195 = vmatpush2.bf16.xpose.msra.mxu0 0
        %3196 = vmatprep.subr.bf16.mxu0 0
        %3197 = vmatpush2.bf16.xpose.msra.mxu0 0
        %3198 = vmatprep.subr.bf16.mxu0 0
        %3199 = vmatpush2.bf16.xpose.msra.mxu0 0
        %3200 = vmatprep.subr.bf16.mxu0 0
        %3201 = vmatpush2.bf16.xpose.msra.mxu0 0
        %3202 = vmatprep.subr.bf16.mxu0 0
        %3203 = vmatpush2.bf16.xpose.msra.mxu0 0
        %3204 = vmatprep.subr.bf16.mxu0 0
        %3205 = vmatpush2.bf16.xpose.msra.mxu0 0
        %3206 = vmatprep.subr.bf16.mxu0 0
        %3207 = vmatpush2.bf16.xpose.msra.mxu0 0
        %3208 = vmatprep.subr.bf16.mxu0 0
        %3209 = vmatpush2.bf16.xpose.msra.mxu0 0
        %3210 = vmatprep.mubr.bf16.mxu0 %v2804
        %3211 = vmatmul.mubr.bf16.gmra.mxu0 %v2803
        %v3212 = vpop.f32.mrf.mxu0
        %v3213 = vadd.f32 %v3172, %v3212
        %v3214 = vpop.f32.mrf.mxu0
        %v3215 = vpop.f32.mrf.mxu0
        %v3216 = vadd.f32 %v3175, %v3215
        %v3217 = vpop.f32.mrf.mxu0
        %3218 = vdwg.mxu0
        %3219 = vmatprep.subr.bf16.mxu0 0
        %3220 = vmatpush1.bf16.xpose.msra.mxu0 0
        %3221 = vmatprep.subr.bf16.mxu0 0
        %3222 = vmatpush1.bf16.xpose.msra.mxu0 0
        %3223 = vmatprep.subr.bf16.mxu0 0
        %3224 = vmatpush1.bf16.xpose.msra.mxu0 0
        %3225 = vmatprep.subr.bf16.mxu0 0
        %3226 = vmatpush1.bf16.xpose.msra.mxu0 0
        %3227 = vmatprep.subr.bf16.mxu0 0
        %3228 = vmatpush1.bf16.xpose.msra.mxu0 0
        %3229 = vmatprep.subr.bf16.mxu0 0
        %3230 = vmatpush1.bf16.xpose.msra.mxu0 0
        %3231 = vmatprep.subr.bf16.mxu0 %v2938
        %3232 = vmatpush1.bf16.xpose.msra.mxu0 %v2937
        %3233 = vmatprep.subr.bf16.mxu0 %v2922
        %3234 = vmatpush1.bf16.xpose.msra.mxu0 %v2921
        %3235 = vmatprep.subr.bf16.mxu0 0
        %3236 = vmatpush2.bf16.xpose.msra.mxu0 0
        %3237 = vmatprep.subr.bf16.mxu0 0
        %3238 = vmatpush2.bf16.xpose.msra.mxu0 0
        %3239 = vmatprep.subr.bf16.mxu0 0
        %3240 = vmatpush2.bf16.xpose.msra.mxu0 0
        %3241 = vmatprep.subr.bf16.mxu0 0
        %3242 = vmatpush2.bf16.xpose.msra.mxu0 0
        %3243 = vmatprep.subr.bf16.mxu0 0
        %3244 = vmatpush2.bf16.xpose.msra.mxu0 0
        %3245 = vmatprep.subr.bf16.mxu0 0
        %3246 = vmatpush2.bf16.xpose.msra.mxu0 0
        %3247 = vmatprep.subr.bf16.mxu0 0
        %3248 = vmatpush2.bf16.xpose.msra.mxu0 0
        %3249 = vmatprep.subr.bf16.mxu0 0
        %3250 = vmatpush2.bf16.xpose.msra.mxu0 0
        %3251 = vmatprep.mubr.bf16.mxu0 %v2806
        %3252 = vmatmul.mubr.bf16.gmra.mxu0 %v2805
        %v3253 = vpop.f32.mrf.mxu0
        %v3254 = vadd.f32 %v3213, %v3253
        %v3255 = vpop.f32.mrf.mxu0
        %v3256 = vpop.f32.mrf.mxu0
        %v3257 = vadd.f32 %v3216, %v3256
        %v3258 = vpop.f32.mrf.mxu0
        %3259 = vdwg.mxu0
        %3260 = vmatprep.subr.bf16.mxu0 0
        %3261 = vmatpush1.bf16.xpose.msra.mxu0 0
        %3262 = vmatprep.subr.bf16.mxu0 0
        %3263 = vmatpush1.bf16.xpose.msra.mxu0 0
        %3264 = vmatprep.subr.bf16.mxu0 0
        %3265 = vmatpush1.bf16.xpose.msra.mxu0 0
        %3266 = vmatprep.subr.bf16.mxu0 0
        %3267 = vmatpush1.bf16.xpose.msra.mxu0 0
        %3268 = vmatprep.subr.bf16.mxu0 0
        %3269 = vmatpush1.bf16.xpose.msra.mxu0 0
        %3270 = vmatprep.subr.bf16.mxu0 0
        %3271 = vmatpush1.bf16.xpose.msra.mxu0 0
        %3272 = vmatprep.subr.bf16.mxu0 %v2940
        %3273 = vmatpush1.bf16.xpose.msra.mxu0 %v2939
        %3274 = vmatprep.subr.bf16.mxu0 %v2924
        %3275 = vmatpush1.bf16.xpose.msra.mxu0 %v2923
        %3276 = vmatprep.subr.bf16.mxu0 0
        %3277 = vmatpush2.bf16.xpose.msra.mxu0 0
        %3278 = vmatprep.subr.bf16.mxu0 0
        %3279 = vmatpush2.bf16.xpose.msra.mxu0 0
        %3280 = vmatprep.subr.bf16.mxu0 0
        %3281 = vmatpush2.bf16.xpose.msra.mxu0 0
        %3282 = vmatprep.subr.bf16.mxu0 0
        %3283 = vmatpush2.bf16.xpose.msra.mxu0 0
        %3284 = vmatprep.subr.bf16.mxu0 0
        %3285 = vmatpush2.bf16.xpose.msra.mxu0 0
        %3286 = vmatprep.subr.bf16.mxu0 0
        %3287 = vmatpush2.bf16.xpose.msra.mxu0 0
        %3288 = vmatprep.subr.bf16.mxu0 0
        %3289 = vmatpush2.bf16.xpose.msra.mxu0 0
        %3290 = vmatprep.subr.bf16.mxu0 0
        %3291 = vmatpush2.bf16.xpose.msra.mxu0 0
        %3292 = vmatprep.mubr.bf16.mxu0 %v2808
        %3293 = vmatmul.mubr.bf16.gmra.mxu0 %v2807
        %v3294 = vpop.f32.mrf.mxu0
        %v3295 = vadd.f32 %v3254, %v3294
        %v3296 = vpop.f32.mrf.mxu0
        %v3297 = vpop.f32.mrf.mxu0
        %v3298 = vadd.f32 %v3257, %v3297
        %v3299 = vpop.f32.mrf.mxu0
        %3300 = vdwg.mxu0
        %v3301 = vadd.f32 %v2103, %v3295
        %v3302 = vadd.f32 %v2104, %v3298
        %v3303 = vsel %vm538, %v3301, 0.0
        %3304 = vadd.xlane.f32.xlu0 %v3303
        %v3305 = vpop.xlane.xlu0 %3304
        %v3306 = vsel %vm538, %v3302, 0.0
        %3307 = vadd.xlane.f32.xlu0 %v3306
        %v3308 = vpop.xlane.xlu0 %3307
        %v3309 = vmul.f32 %v3305, %v2072
        %v3310 = vmul.f32 %v3308, %v2072
        %v3311 = vsub.f32 %v3301, %v3309
        %v3312 = vsub.f32 %v3302, %v3310
        %v3313 = vmul.f32 %v3311, %v3311
        %v3314 = vmul.f32 %v3312, %v3312
        %v3315 = vsel %vm538, %v3313, 0.0
        %3316 = vadd.xlane.f32.xlu0 %v3315
        %v3317 = vpop.xlane.xlu0 %3316
        %v3318 = vsel %vm538, %v3314, 0.0
        %3319 = vadd.xlane.f32.xlu0 %v3318
        %v3320 = vpop.xlane.xlu0 %3319
        %v3321 = vmul.f32 %v3317, %v2072
        %v3322 = vmul.f32 %v3320, %v2072
        %v3323 = vadd.f32 %v3321, 1e-05
        %v3324 = vadd.f32 %v3322, 1e-05
        %v3325 = vrsqrt.pop %v3323
        %v3326 = vrsqrt.pop %v3324
        %v3327 = vmul.f32 %v3311, %v3325
        %v3328 = vmul.f32 %v3312, %v3326
        %v3329 = vlaneseq
        %v3330 = vshrl.u32 %v3329, 7
        %v3331 = vsub.s32 5, %v3330
        %v3332 = vrot.slane %v533, %v3331
        %v3333 = vmul.f32 %v3327, %v3332
        %v3334 = vmul.f32 %v3328, %v3332
        %v3335 = vlaneseq
        %v3336 = vshrl.u32 %v3335, 7
        %v3337 = vsub.s32 6, %v3336
        %v3338 = vrot.slane %v533, %v3337
        %v3339 = vadd.f32 %v3333, %v3338
        %v3340 = vadd.f32 %v3334, %v3338
        %3341 = vst.msk [vmem:[#allocation2] sm:$0xff] %vm538, %v3339
        %3342 = vst.msk [vmem:[#allocation2 + $0x8] sm:$0xff] %vm538, %v3340
        %p3343 = scmp.eq.s32.totalorder %s27, 1
        // Predicated region
        $region73: #{tpu_custom_call.1} parent=51 // pred_check
          %p3344 = pneg %p3343
        $region74: #{tpu_custom_call.1} parent=51 // pred_check_branch
          %3346 = sbr.rel (%p3344) target = $region76
        $region75: #{tpu_custom_call.1} parent=51 // pred_region
          %v3348 = vrot.slane %v3339, 7
          %v3351 = vrot.slane %v3340, 6
          %vm3353 = vcmask 1040384
          %v3354 = vsel %vm3353, %v3348, %v3351
          %v3355 = vld [vmem:[#allocation9] sm:$0xff]
          %v3356 = vld [vmem:[#allocation9 + $0x8] sm:$0xff]
          %v3357 = vld [vmem:[#allocation9 + $0x10] sm:$0xff]
          %v3358 = vld [vmem:[#allocation9 + $0x18] sm:$0xff]
          %v3359 = vld [vmem:[%s7] sm:$0x1]
          %v3361 = vlaneseq
          %v3362 = vshrl.u32 %v3361, 7
          %v3363 = vsub.s32 0, %v3362
          %v3364 = vrot.slane %v3359, %v3363
          %v3367 = vsel %vm538, %v3354, 0
          %3369 = vmatprep.subr.mxu0 0.0
          %3370 = vmatpush1.msra.mxu0 0.0
          %3371 = vmatprep.subr.mxu0 0.0
          %3372 = vmatpush1.msra.mxu0 0.0
          %3373 = vmatprep.subr.mxu0 0.0
          %3374 = vmatpush1.msra.mxu0 0.0
          %3375 = vmatprep.subr.mxu0 0.0
          %3376 = vmatpush1.msra.mxu0 0.0
          %3377 = vmatprep.subr.mxu0 0.0
          %3378 = vmatpush1.msra.mxu0 0.0
          %3379 = vmatprep.subr.mxu0 0.0
          %3380 = vmatpush1.msra.mxu0 0.0
          %3381 = vmatprep.subr.mxu0 0.0
          %3382 = vmatpush1.msra.mxu0 0.0
          %3383 = vmatprep.subr.mxu0 0.0
          %3384 = vmatpush1.msra.mxu0 0.0
          %3385 = vmatprep.subr.mxu0 0.0
          %3386 = vmatpush1.msra.mxu0 0.0
          %3387 = vmatprep.subr.mxu0 0.0
          %3388 = vmatpush1.msra.mxu0 0.0
          %3389 = vmatprep.subr.mxu0 0.0
          %3390 = vmatpush1.msra.mxu0 0.0
          %3391 = vmatprep.subr.mxu0 0.0
          %3392 = vmatpush1.msra.mxu0 0.0
          %3393 = vmatprep.subr.mxu0 0.0
          %3394 = vmatpush1.msra.mxu0 %v3358
          %3395 = vmatprep.subr.mxu0 0.0
          %3396 = vmatpush1.msra.mxu0 %v3357
          %3397 = vmatprep.subr.mxu0 0.0
          %3398 = vmatpush1.msra.mxu0 %v3356
          %3399 = vmatprep.subr.mxu0 0.0
          %3400 = vmatpush1.msra.mxu0 %v3355
          %3401 = vmatprep.subr.mxu0 0.0
          %3402 = vmatpush2.msra.mxu0 0.0
          %3403 = vmatprep.subr.mxu0 0.0
          %3404 = vmatpush2.msra.mxu0 0.0
          %3405 = vmatprep.subr.mxu0 0.0
          %3406 = vmatpush2.msra.mxu0 0.0
          %3407 = vmatprep.subr.mxu0 0.0
          %3408 = vmatpush2.msra.mxu0 0.0
          %3409 = vmatprep.subr.mxu0 0.0
          %3410 = vmatpush2.msra.mxu0 0.0
          %3411 = vmatprep.subr.mxu0 0.0
          %3412 = vmatpush2.msra.mxu0 0.0
          %3413 = vmatprep.subr.mxu0 0.0
          %3414 = vmatpush2.msra.mxu0 0.0
          %3415 = vmatprep.subr.mxu0 0.0
          %3416 = vmatpush2.msra.mxu0 0.0
          %3417 = vmatprep.subr.mxu0 0.0
          %3418 = vmatpush2.msra.mxu0 0.0
          %3419 = vmatprep.subr.mxu0 0.0
          %3420 = vmatpush2.msra.mxu0 0.0
          %3421 = vmatprep.subr.mxu0 0.0
          %3422 = vmatpush2.msra.mxu0 0.0
          %3423 = vmatprep.subr.mxu0 0.0
          %3424 = vmatpush2.msra.mxu0 0.0
          %3425 = vmatprep.subr.mxu0 0.0
          %3426 = vmatpush2.msra.mxu0 0.0
          %3427 = vmatprep.subr.mxu0 0.0
          %3428 = vmatpush2.msra.mxu0 0.0
          %3429 = vmatprep.subr.mxu0 0.0
          %3430 = vmatpush2.msra.mxu0 0.0
          %3431 = vmatprep.subr.mxu0 0.0
          %3432 = vmatpush2.msra.mxu0 0.0
          %3433 = vmatprep.mubr.f32.mxu0 0.0
          %3434 = vmatmul.mubr.f32.gmra.mxu0 %v3367
          %v3435 = vpop.f32.mrf.mxu0
          %v3436 = vadd.f32 %v3364, %v3435
          %v3437 = vpop.f32.mrf.mxu0
          %3438 = vdwg.mxu0
          %3439 = vst [vmem:[#allocation11] sm:$0x3] %v3436
        $region76: #{tpu_custom_call.1} parent=51 // pred_fallthru
          _
        // Predicated region
        $region77: #{tpu_custom_call.1} parent=51 // pred_check
          %p3440 = pneg %p228
        $region78: #{tpu_custom_call.1} parent=51 // pred_check_branch
          %3442 = sbr.rel (%p3440) target = $region80
        $region79: #{tpu_custom_call.1} parent=51 // pred_region
          %s3444 = ssub.s32 32, 32
          %3445 = vsyncadd [#allocation5], %s3444
          %s3447 = sshll.u32 [#allocation11], 4
          %s3448 = int_to_ptr.vmem [resolvable:$true] %s3447
          %3450 = dma.vmem_to_hbm [thread:$0]  %s3448, 32, %s8, [#allocation5]
        $region80: #{tpu_custom_call.1} parent=51 // pred_fallthru
          _
        // Predicated region
        $region81: #{tpu_custom_call.1} parent=51 // pred_check
          %p3451 = pneg %p228
        $region82: #{tpu_custom_call.1} parent=51 // pred_check_branch
          %3453 = sbr.rel (%p3451) target = $region84
        $region83: #{tpu_custom_call.1} parent=51 // pred_region
          %3454 = dma.done [#allocation5], 32
        $region84: #{tpu_custom_call.1} parent=51 // pred_fallthru
          _
      $region52: #{tpu_custom_call.1} parent=5 // pred_fallthru
        _
      %p3455 = scmp.le.s32.totalorder 2, %s22
      // Predicated region
      $region85: #{tpu_custom_call.1} parent=5 // pred_check
        %p3456 = pneg %p3455
      $region86: #{tpu_custom_call.1} parent=5 // pred_check_branch
        %3458 = sbr.rel (%p3456) target = $region88
      $region87: #{tpu_custom_call.1} parent=5 // pred_region
        %s3459 = ssub.s32 %s22, 2
      $region88: #{tpu_custom_call.1} parent=5 // pred_fallthru
        _
    $region6: #{tpu_custom_call.1} parent=1 // loop_footer
      %s26 = sadd.s32 1, %s22
    $region7: #{tpu_custom_call.1} parent=1 // loop_footer_branch
      %21 = sbr.rel target = $region3
    $region8: #{tpu_custom_call.1} parent=1 // loop_exit
      _
    %3460 = vsyncpa [#allocation4], 1
    %s3461 = scalar_lea.sflag [#allocation4], 1
    %3462 = vsyncpa %s3461, 1
    %3463 = vsyncpa [#allocation7], 1
    %s3464 = scalar_lea.sflag [#allocation7], 1
    %3465 = vsyncpa %s3464, 1
    %3466 = vsyncpa [#allocation10], 1
    %3467 = vsyncpa [#allocation5], 1
    %s3468 = scalar_lea.sflag [#allocation5], 1
    %3469 = vsyncpa %s3468, 1

</llo_original>
